<compile_context>
chip_gen: v6e
topology: v6e:2x2x1
jax: 0.10.0
libtpu: 0.0.40
codegen_flags: <defaults>
</compile_context>

<pallas_src>
import numpy as np
import jax
import jax.numpy as jnp
from jax.experimental import pallas as pl
from jax.experimental.pallas import tpu as pltpu


# ----------------------------- Pallas kernel -----------------------------

def net_kernel(x_ref, t1_ref, cb1_ref, t2_ref, cb2_ref,
               wf1_ref, fb1_ref, wf2_ref, fb2_ref, o_ref):
    """Whole-network forward for one batch tile.

    x_ref  : (bt, 28, 28) f32   input images
    t1_ref : (5, 28, 240) bf16  conv1 banded matrices (one per kernel row);
                                output lane = parity*120 + jp*10 + co
    cb1_ref: (1, 120) f32       conv1 bias tiled over the 12 pooled columns
    t2_ref : (5, 120, 240) bf16 conv2 banded matrices; output lane =
                                d*80 + q'*20 + co, conv column = min(2q'+d, 7)
    cb2_ref: (1, 80)  f32       conv2 bias tiled over the 4 pooled columns
    wf1_ref: (320, 50) bf16     fc1 weight, rows permuted to (p', q', ci) order
    fb1_ref: (1, 50)  f32
    wf2_ref: (50, 10) bf16
    fb2_ref: (1, 10)  f32
    o_ref  : (bt, 10) f32       log_softmax output
    """
    bt = x_ref.shape[0]
    xv = x_ref[...]                                          # (bt, 28, 28) f32

    # ---- conv1 (1->10, k=5) as 5 banded matmuls over the kernel rows ----
    c1 = None
    for ki in range(5):
        slab = xv[:, ki:ki + 24, :].reshape(bt * 24, 28)
        part = jnp.dot(slab.astype(jnp.bfloat16), t1_ref[ki],
                       preferred_element_type=jnp.float32)   # (bt*24, 240)
        c1 = part if c1 is None else c1 + part
    # MaxPool2d(2,2,ceil): columns = max of the two contiguous parity halves...
    cp = jnp.maximum(c1[:, 0:120], c1[:, 120:240])            # (bt*24, 120)
    cp = cp.reshape(bt, 24, 120)
    # ...rows = non-overlapping pairs; then bias + ReLU (bias commutes w/ max).
    rows = [jnp.maximum(cp[:, 2 * p:2 * p + 1, :],
                        cp[:, 2 * p + 1:2 * p + 2, :]) for p in range(12)]
    a1 = jnp.concatenate(rows, axis=1)                        # (bt, 12, 120)
    a1 = jnp.maximum(a1 + cb1_ref[...], 0.0)                  # lane = u*10 + ci

    # ---- conv2 (10->20, k=5) + Dropout2d (eval identity) ----
    y = None
    for ki in range(5):
        slab = a1[:, ki:ki + 8, :].reshape(bt * 8, 120)
        part = jnp.dot(slab.astype(jnp.bfloat16), t2_ref[ki],
                       preferred_element_type=jnp.float32)    # (bt*8, 240)
        y = part if y is None else y + part
    # MaxPool2d(3,2,ceil): columns via the 3 duplicated-window 80-lane slabs
    # (edge window repeats column 7; max is idempotent)...
    ycp = jnp.maximum(jnp.maximum(y[:, 0:80], y[:, 80:160]), y[:, 160:240])
    ycp = ycp.reshape(bt, 8, 80)                              # (bt, 8, 80)
    # ...rows: windows {0,1,2},{2,3,4},{4,5,6},{6,7}; then bias + ReLU.
    pieces = []
    for p in range(4):
        m = jnp.maximum(ycp[:, 2 * p:2 * p + 1, :],
                        ycp[:, 2 * p + 1:2 * p + 2, :])
        if 2 * p + 2 <= 7:
            m = jnp.maximum(m, ycp[:, 2 * p + 2:2 * p + 3, :])
        pieces.append(m)                                      # (bt, 1, 80)
    a2 = jnp.concatenate(pieces, axis=1)                      # (bt, 4, 80)
    a2 = jnp.maximum(a2 + cb2_ref[...], 0.0)
    feat = a2.reshape(bt, 320).astype(jnp.bfloat16)           # lane = p*80+q*20+ci

    # ---- fc1 + Dropout (identity) + ReLU + fc2 + log_softmax ----
    h = jnp.dot(feat, wf1_ref[...],
                preferred_element_type=jnp.float32) + fb1_ref[...]
    h = jnp.maximum(h, 0.0).astype(jnp.bfloat16)
    logits = jnp.dot(h, wf2_ref[...],
                     preferred_element_type=jnp.float32) + fb2_ref[...]
    mx = jnp.max(logits, axis=-1, keepdims=True)
    lse = mx + jnp.log(jnp.sum(jnp.exp(logits - mx), axis=-1, keepdims=True))
    o_ref[...] = logits - lse


# ------------------------------ pallas_call wrapper ------------------------------

def _pick_batch_tile(padded_batch):
    """Multiple-of-8 tile dividing padded_batch, <=64 rows, >=2 grid steps."""
    bt = min(64, padded_batch // 2)
    bt = max(8, bt - bt % 8)
    while padded_batch % bt:
        bt -= 8
    return bt


def net_forward(x_nchw, params):
    B = x_nchw.shape[0]
    x = x_nchw.reshape(B, 28, 28)          # NCHW -> (B,28,28): C=1, free reshape
    Bp = max(16, -(-B // 8) * 8)           # pad so output blocks are (8,·)-aligned
    if Bp != B:                            # and the parallel axis has >=2 steps
        x = jnp.pad(x, ((0, Bp - B), (0, 0), (0, 0)))
    bt = _pick_batch_tile(Bp)

    # Per-step VMEM (inputs + weights + live intermediates) stays ~6 MiB at
    # bt=64, inside the default scoped VMEM limit on v5e/v6e/v7x -> no
    # vmem_limit_bytes override needed.
    out = pl.pallas_call(
        net_kernel,
        out_shape=jax.ShapeDtypeStruct((Bp, 10), jnp.float32),
        grid=(Bp // bt,),
        in_specs=[
            pl.BlockSpec((bt, 28, 28), lambda i: (i, 0, 0)),
            pl.BlockSpec((5, 28, 240), lambda i: (0, 0, 0)),
            pl.BlockSpec((1, 120), lambda i: (0, 0)),
            pl.BlockSpec((5, 120, 240), lambda i: (0, 0, 0)),
            pl.BlockSpec((1, 80), lambda i: (0, 0)),
            pl.BlockSpec((320, 50), lambda i: (0, 0)),
            pl.BlockSpec((1, 50), lambda i: (0, 0)),
            pl.BlockSpec((50, 10), lambda i: (0, 0)),
            pl.BlockSpec((1, 10), lambda i: (0, 0)),
        ],
        out_specs=pl.BlockSpec((bt, 10), lambda i: (i, 0)),
        compiler_params=pltpu.CompilerParams(
            dimension_semantics=("parallel",)),
    )(x, params["t1"], params["cb1"], params["t2"], params["cb2"],
      params["wf1"], params["fb1"], params["wf2"], params["fb2"])
    return out[:B]


# ------------------------- parameter preparation (host, once) -------------------------

def prepare_params(tp):
    """Convert PyTorch layouts to the fused kernel's banded/permuted layouts."""
    w1 = np.asarray(tp["conv1_w"], np.float32)    # (10, 1, 5, 5)
    b1 = np.asarray(tp["conv1_b"], np.float32)    # (10,)
    w2 = np.asarray(tp["conv2_w"], np.float32)    # (20, 10, 5, 5)
    b2 = np.asarray(tp["conv2_b"], np.float32)    # (20,)
    f1w = np.asarray(tp["fc1_w"], np.float32)     # (50, 320) over NCHW flatten
    f1b = np.asarray(tp["fc1_b"], np.float32)     # (50,)
    f2w = np.asarray(tp["fc2_w"], np.float32)     # (10, 50)
    f2b = np.asarray(tp["fc2_b"], np.float32)     # (10,)

    # conv1 banded matrices: T1[ki, j+kj, par*120 + jp*10 + co] = w1[co,0,ki,kj]
    # with conv column j = 2*jp + par.  The parity split makes the 2x2 pool's
    # column reduction a max of two contiguous 120-lane slabs.
    t1 = np.zeros((5, 28, 240), np.float32)
    for ki in range(5):
        for j in range(24):
            jp, par = divmod(j, 2)
            col0 = par * 120 + jp * 10
            for kj in range(5):
                t1[ki, j + kj, col0:col0 + 10] = w1[:, 0, ki, kj]
    cb1 = np.tile(b1, 12).reshape(1, 120)

    # conv2 banded matrices over a1's lane order (u*10 + ci):
    # T2[ki, (q+kj)*10+ci, d*80 + q'*20 + co] = w2[co,ci,ki,kj] with
    # q = min(2*q'+d, 7)  (ceil-mode window duplication; max is idempotent).
    t2 = np.zeros((5, 120, 240), np.float32)
    for ki in range(5):
        for d in range(3):
            for qp in range(4):
                q = min(2 * qp + d, 7)
                col0 = d * 80 + qp * 20
                for kj in range(5):
                    u = q + kj
                    t2[ki, u * 10:(u + 1) * 10, col0:col0 + 20] = w2[:, :, ki, kj].T
    cb2 = np.tile(b2, 4).reshape(1, 80)

    # fc1 weight rows permuted from PyTorch's NCHW flatten (ci*16 + p*4 + q)
    # to the kernel's (p*80 + q*20 + ci) feature order.
    wf1 = f1w.T.reshape(20, 4, 4, 50).transpose(1, 2, 0, 3).reshape(320, 50)

    return {
        "t1": jnp.asarray(t1, jnp.bfloat16),
        "cb1": jnp.asarray(cb1, jnp.float32),
        "t2": jnp.asarray(t2, jnp.bfloat16),
        "cb2": jnp.asarray(cb2, jnp.float32),
        "wf1": jnp.asarray(wf1, jnp.bfloat16),
        "fb1": jnp.asarray(f1b.reshape(1, 50), jnp.float32),
        "wf2": jnp.asarray(f2w.T, jnp.bfloat16),
        "fb2": jnp.asarray(f2b.reshape(1, 10), jnp.float32),
    }


if __name__ == "__main__":
    keys = jax.random.split(jax.random.PRNGKey(0), 9)
    # Synthetic parameters in PyTorch layouts (Conv2d: (Cout,Cin,kh,kw),
    # Linear: (out,in)); converted once by prepare_params.
    torch_params = {
        "conv1_w": jax.random.normal(keys[0], (10, 1, 5, 5), jnp.float32) * 0.1,
        "conv1_b": jax.random.normal(keys[1], (10,), jnp.float32) * 0.1,
        "conv2_w": jax.random.normal(keys[2], (20, 10, 5, 5), jnp.float32) * 0.05,
        "conv2_b": jax.random.normal(keys[3], (20,), jnp.float32) * 0.1,
        "fc1_w": jax.random.normal(keys[4], (50, 320), jnp.float32) * 0.05,
        "fc1_b": jax.random.normal(keys[5], (50,), jnp.float32) * 0.1,
        "fc2_w": jax.random.normal(keys[6], (10, 50), jnp.float32) * 0.1,
        "fc2_b": jax.random.normal(keys[7], (10,), jnp.float32) * 0.1,
    }
    params = prepare_params(torch_params)

    # Input consistent with the module: fc expects 320 = 20*4*4 -> 28x28 input.
    x = jax.random.normal(keys[8], (2, 1, 28, 28), jnp.float32)

    out = jax.block_until_ready(jax.jit(net_forward)(x, params))
    assert out.shape == (2, 10)
    assert bool(jnp.all(jnp.isfinite(out)))
    # log_softmax rows must normalize (self-consistency, precision-independent).
    assert bool(jnp.allclose(jnp.exp(out).sum(-1), 1.0, atol=1e-3))
    print("KERNEL_OK")
</pallas_src>

<mosaic_0001>
module attributes {stable_mosaic.version = 11 : i64} {
  func.func @net_kernel(%arg0: i32, %arg1: memref<8x28x28xf32, #tpu.memory_space<vmem>>, %arg2: memref<5x28x240xbf16, #tpu.memory_space<vmem>>, %arg3: memref<1x120xf32, #tpu.memory_space<vmem>>, %arg4: memref<5x120x240xbf16, #tpu.memory_space<vmem>>, %arg5: memref<1x80xf32, #tpu.memory_space<vmem>>, %arg6: memref<320x50xbf16, #tpu.memory_space<vmem>>, %arg7: memref<1x50xf32, #tpu.memory_space<vmem>>, %arg8: memref<50x10xbf16, #tpu.memory_space<vmem>>, %arg9: memref<1x10xf32, #tpu.memory_space<vmem>>, %arg10: memref<8x10xf32, #tpu.memory_space<vmem>>) attributes {dimension_semantics = [#tpu.dimension_semantics<parallel>], iteration_bounds = array<i64: 2>, scalar_prefetch = 0 : i64, scratch_operands = 0 : i64, tpu.core_type = #tpu.core_type<tc>, window_params = [{transform_indices = @transform_0, window_bounds = array<i64: 8, 28, 28>}, {pipeline_mode = #tpu.pipeline_mode<synchronous>, transform_indices = @transform_1, window_bounds = array<i64: 5, 28, 240>}, {pipeline_mode = #tpu.pipeline_mode<synchronous>, transform_indices = @transform_2, window_bounds = array<i64: 1, 120>}, {pipeline_mode = #tpu.pipeline_mode<synchronous>, transform_indices = @transform_3, window_bounds = array<i64: 5, 120, 240>}, {pipeline_mode = #tpu.pipeline_mode<synchronous>, transform_indices = @transform_4, window_bounds = array<i64: 1, 80>}, {pipeline_mode = #tpu.pipeline_mode<synchronous>, transform_indices = @transform_5, window_bounds = array<i64: 320, 50>}, {pipeline_mode = #tpu.pipeline_mode<synchronous>, transform_indices = @transform_6, window_bounds = array<i64: 1, 50>}, {pipeline_mode = #tpu.pipeline_mode<synchronous>, transform_indices = @transform_7, window_bounds = array<i64: 50, 10>}, {pipeline_mode = #tpu.pipeline_mode<synchronous>, transform_indices = @transform_8, window_bounds = array<i64: 1, 10>}, {transform_indices = @transform_9, window_bounds = array<i64: 8, 10>}]} {
    %c0 = arith.constant 0 : index
    %c0_0 = arith.constant 0 : index
    %c0_1 = arith.constant 0 : index
    %0 = vector.load %arg1[%c0, %c0_0, %c0_1] : memref<8x28x28xf32, #tpu.memory_space<vmem>>, vector<8x28x28xf32>
    %1 = vector.extract_strided_slice %0 {offsets = [0, 0, 0], sizes = [8, 24, 28], strides = [1, 1, 1]} : vector<8x28x28xf32> to vector<8x24x28xf32>
    %2 = vector.shape_cast %1 : vector<8x24x28xf32> to vector<192x28xf32>
    %3 = arith.truncf %2 : vector<192x28xf32> to vector<192x28xbf16>
    %c0_2 = arith.constant 0 : index
    %c0_3 = arith.constant 0 : index
    %c0_4 = arith.constant 0 : index
    %4 = vector.load %arg2[%c0_2, %c0_3, %c0_4] : memref<5x28x240xbf16, #tpu.memory_space<vmem>>, vector<1x28x240xbf16>
    %5 = vector.shape_cast %4 : vector<1x28x240xbf16> to vector<28x240xbf16>
    %cst = arith.constant dense<0.000000e+00> : vector<192x240xf32>
    %6 = tpu.matmul %3, %5, %cst {dimension_numbers = #tpu.dot_dimension_numbers<[1], [0], [0], [1], [0, 0, 1, 1], [], []>} : vector<192x28xbf16>, vector<28x240xbf16>, vector<192x240xf32> -> vector<192x240xf32>
    %7 = vector.extract_strided_slice %0 {offsets = [0, 1, 0], sizes = [8, 24, 28], strides = [1, 1, 1]} : vector<8x28x28xf32> to vector<8x24x28xf32>
    %8 = vector.shape_cast %7 : vector<8x24x28xf32> to vector<192x28xf32>
    %9 = arith.truncf %8 : vector<192x28xf32> to vector<192x28xbf16>
    %c1 = arith.constant 1 : index
    %c0_5 = arith.constant 0 : index
    %c0_6 = arith.constant 0 : index
    %10 = vector.load %arg2[%c1, %c0_5, %c0_6] : memref<5x28x240xbf16, #tpu.memory_space<vmem>>, vector<1x28x240xbf16>
    %11 = vector.shape_cast %10 : vector<1x28x240xbf16> to vector<28x240xbf16>
    %cst_7 = arith.constant dense<0.000000e+00> : vector<192x240xf32>
    %12 = tpu.matmul %9, %11, %cst_7 {dimension_numbers = #tpu.dot_dimension_numbers<[1], [0], [0], [1], [0, 0, 1, 1], [], []>} : vector<192x28xbf16>, vector<28x240xbf16>, vector<192x240xf32> -> vector<192x240xf32>
    %13 = arith.addf %6, %12 : vector<192x240xf32>
    %14 = vector.extract_strided_slice %0 {offsets = [0, 2, 0], sizes = [8, 24, 28], strides = [1, 1, 1]} : vector<8x28x28xf32> to vector<8x24x28xf32>
    %15 = vector.shape_cast %14 : vector<8x24x28xf32> to vector<192x28xf32>
    %16 = arith.truncf %15 : vector<192x28xf32> to vector<192x28xbf16>
    %c2 = arith.constant 2 : index
    %c0_8 = arith.constant 0 : index
    %c0_9 = arith.constant 0 : index
    %17 = vector.load %arg2[%c2, %c0_8, %c0_9] : memref<5x28x240xbf16, #tpu.memory_space<vmem>>, vector<1x28x240xbf16>
    %18 = vector.shape_cast %17 : vector<1x28x240xbf16> to vector<28x240xbf16>
    %cst_10 = arith.constant dense<0.000000e+00> : vector<192x240xf32>
    %19 = tpu.matmul %16, %18, %cst_10 {dimension_numbers = #tpu.dot_dimension_numbers<[1], [0], [0], [1], [0, 0, 1, 1], [], []>} : vector<192x28xbf16>, vector<28x240xbf16>, vector<192x240xf32> -> vector<192x240xf32>
    %20 = arith.addf %13, %19 : vector<192x240xf32>
    %21 = vector.extract_strided_slice %0 {offsets = [0, 3, 0], sizes = [8, 24, 28], strides = [1, 1, 1]} : vector<8x28x28xf32> to vector<8x24x28xf32>
    %22 = vector.shape_cast %21 : vector<8x24x28xf32> to vector<192x28xf32>
    %23 = arith.truncf %22 : vector<192x28xf32> to vector<192x28xbf16>
    %c3 = arith.constant 3 : index
    %c0_11 = arith.constant 0 : index
    %c0_12 = arith.constant 0 : index
    %24 = vector.load %arg2[%c3, %c0_11, %c0_12] : memref<5x28x240xbf16, #tpu.memory_space<vmem>>, vector<1x28x240xbf16>
    %25 = vector.shape_cast %24 : vector<1x28x240xbf16> to vector<28x240xbf16>
    %cst_13 = arith.constant dense<0.000000e+00> : vector<192x240xf32>
    %26 = tpu.matmul %23, %25, %cst_13 {dimension_numbers = #tpu.dot_dimension_numbers<[1], [0], [0], [1], [0, 0, 1, 1], [], []>} : vector<192x28xbf16>, vector<28x240xbf16>, vector<192x240xf32> -> vector<192x240xf32>
    %27 = arith.addf %20, %26 : vector<192x240xf32>
    %28 = vector.extract_strided_slice %0 {offsets = [0, 4, 0], sizes = [8, 24, 28], strides = [1, 1, 1]} : vector<8x28x28xf32> to vector<8x24x28xf32>
    %29 = vector.shape_cast %28 : vector<8x24x28xf32> to vector<192x28xf32>
    %30 = arith.truncf %29 : vector<192x28xf32> to vector<192x28xbf16>
    %c4 = arith.constant 4 : index
    %c0_14 = arith.constant 0 : index
    %c0_15 = arith.constant 0 : index
    %31 = vector.load %arg2[%c4, %c0_14, %c0_15] : memref<5x28x240xbf16, #tpu.memory_space<vmem>>, vector<1x28x240xbf16>
    %32 = vector.shape_cast %31 : vector<1x28x240xbf16> to vector<28x240xbf16>
    %cst_16 = arith.constant dense<0.000000e+00> : vector<192x240xf32>
    %33 = tpu.matmul %30, %32, %cst_16 {dimension_numbers = #tpu.dot_dimension_numbers<[1], [0], [0], [1], [0, 0, 1, 1], [], []>} : vector<192x28xbf16>, vector<28x240xbf16>, vector<192x240xf32> -> vector<192x240xf32>
    %34 = arith.addf %27, %33 : vector<192x240xf32>
    %35 = vector.extract_strided_slice %34 {offsets = [0, 0], sizes = [192, 120], strides = [1, 1]} : vector<192x240xf32> to vector<192x120xf32>
    %36 = vector.extract_strided_slice %34 {offsets = [0, 120], sizes = [192, 120], strides = [1, 1]} : vector<192x240xf32> to vector<192x120xf32>
    %37 = arith.maximumf %35, %36 : vector<192x120xf32>
    %38 = vector.shape_cast %37 : vector<192x120xf32> to vector<8x24x120xf32>
    %39 = vector.extract_strided_slice %38 {offsets = [0, 0, 0], sizes = [8, 1, 120], strides = [1, 1, 1]} : vector<8x24x120xf32> to vector<8x1x120xf32>
    %40 = vector.extract_strided_slice %38 {offsets = [0, 1, 0], sizes = [8, 1, 120], strides = [1, 1, 1]} : vector<8x24x120xf32> to vector<8x1x120xf32>
    %41 = arith.maximumf %39, %40 : vector<8x1x120xf32>
    %42 = vector.extract_strided_slice %38 {offsets = [0, 2, 0], sizes = [8, 1, 120], strides = [1, 1, 1]} : vector<8x24x120xf32> to vector<8x1x120xf32>
    %43 = vector.extract_strided_slice %38 {offsets = [0, 3, 0], sizes = [8, 1, 120], strides = [1, 1, 1]} : vector<8x24x120xf32> to vector<8x1x120xf32>
    %44 = arith.maximumf %42, %43 : vector<8x1x120xf32>
    %45 = vector.extract_strided_slice %38 {offsets = [0, 4, 0], sizes = [8, 1, 120], strides = [1, 1, 1]} : vector<8x24x120xf32> to vector<8x1x120xf32>
    %46 = vector.extract_strided_slice %38 {offsets = [0, 5, 0], sizes = [8, 1, 120], strides = [1, 1, 1]} : vector<8x24x120xf32> to vector<8x1x120xf32>
    %47 = arith.maximumf %45, %46 : vector<8x1x120xf32>
    %48 = vector.extract_strided_slice %38 {offsets = [0, 6, 0], sizes = [8, 1, 120], strides = [1, 1, 1]} : vector<8x24x120xf32> to vector<8x1x120xf32>
    %49 = vector.extract_strided_slice %38 {offsets = [0, 7, 0], sizes = [8, 1, 120], strides = [1, 1, 1]} : vector<8x24x120xf32> to vector<8x1x120xf32>
    %50 = arith.maximumf %48, %49 : vector<8x1x120xf32>
    %51 = vector.extract_strided_slice %38 {offsets = [0, 8, 0], sizes = [8, 1, 120], strides = [1, 1, 1]} : vector<8x24x120xf32> to vector<8x1x120xf32>
    %52 = vector.extract_strided_slice %38 {offsets = [0, 9, 0], sizes = [8, 1, 120], strides = [1, 1, 1]} : vector<8x24x120xf32> to vector<8x1x120xf32>
    %53 = arith.maximumf %51, %52 : vector<8x1x120xf32>
    %54 = vector.extract_strided_slice %38 {offsets = [0, 10, 0], sizes = [8, 1, 120], strides = [1, 1, 1]} : vector<8x24x120xf32> to vector<8x1x120xf32>
    %55 = vector.extract_strided_slice %38 {offsets = [0, 11, 0], sizes = [8, 1, 120], strides = [1, 1, 1]} : vector<8x24x120xf32> to vector<8x1x120xf32>
    %56 = arith.maximumf %54, %55 : vector<8x1x120xf32>
    %57 = vector.extract_strided_slice %38 {offsets = [0, 12, 0], sizes = [8, 1, 120], strides = [1, 1, 1]} : vector<8x24x120xf32> to vector<8x1x120xf32>
    %58 = vector.extract_strided_slice %38 {offsets = [0, 13, 0], sizes = [8, 1, 120], strides = [1, 1, 1]} : vector<8x24x120xf32> to vector<8x1x120xf32>
    %59 = arith.maximumf %57, %58 : vector<8x1x120xf32>
    %60 = vector.extract_strided_slice %38 {offsets = [0, 14, 0], sizes = [8, 1, 120], strides = [1, 1, 1]} : vector<8x24x120xf32> to vector<8x1x120xf32>
    %61 = vector.extract_strided_slice %38 {offsets = [0, 15, 0], sizes = [8, 1, 120], strides = [1, 1, 1]} : vector<8x24x120xf32> to vector<8x1x120xf32>
    %62 = arith.maximumf %60, %61 : vector<8x1x120xf32>
    %63 = vector.extract_strided_slice %38 {offsets = [0, 16, 0], sizes = [8, 1, 120], strides = [1, 1, 1]} : vector<8x24x120xf32> to vector<8x1x120xf32>
    %64 = vector.extract_strided_slice %38 {offsets = [0, 17, 0], sizes = [8, 1, 120], strides = [1, 1, 1]} : vector<8x24x120xf32> to vector<8x1x120xf32>
    %65 = arith.maximumf %63, %64 : vector<8x1x120xf32>
    %66 = vector.extract_strided_slice %38 {offsets = [0, 18, 0], sizes = [8, 1, 120], strides = [1, 1, 1]} : vector<8x24x120xf32> to vector<8x1x120xf32>
    %67 = vector.extract_strided_slice %38 {offsets = [0, 19, 0], sizes = [8, 1, 120], strides = [1, 1, 1]} : vector<8x24x120xf32> to vector<8x1x120xf32>
    %68 = arith.maximumf %66, %67 : vector<8x1x120xf32>
    %69 = vector.extract_strided_slice %38 {offsets = [0, 20, 0], sizes = [8, 1, 120], strides = [1, 1, 1]} : vector<8x24x120xf32> to vector<8x1x120xf32>
    %70 = vector.extract_strided_slice %38 {offsets = [0, 21, 0], sizes = [8, 1, 120], strides = [1, 1, 1]} : vector<8x24x120xf32> to vector<8x1x120xf32>
    %71 = arith.maximumf %69, %70 : vector<8x1x120xf32>
    %72 = vector.extract_strided_slice %38 {offsets = [0, 22, 0], sizes = [8, 1, 120], strides = [1, 1, 1]} : vector<8x24x120xf32> to vector<8x1x120xf32>
    %73 = vector.extract_strided_slice %38 {offsets = [0, 23, 0], sizes = [8, 1, 120], strides = [1, 1, 1]} : vector<8x24x120xf32> to vector<8x1x120xf32>
    %74 = arith.maximumf %72, %73 : vector<8x1x120xf32>
    %75 = tpu.concatenate %41, %44, %47, %50, %53, %56, %59, %62, %65, %68, %71, %74 in 1 : vector<8x1x120xf32>, vector<8x1x120xf32>, vector<8x1x120xf32>, vector<8x1x120xf32>, vector<8x1x120xf32>, vector<8x1x120xf32>, vector<8x1x120xf32>, vector<8x1x120xf32>, vector<8x1x120xf32>, vector<8x1x120xf32>, vector<8x1x120xf32>, vector<8x1x120xf32> -> vector<8x12x120xf32>
    %c0_17 = arith.constant 0 : index
    %c0_18 = arith.constant 0 : index
    %76 = vector.load %arg3[%c0_17, %c0_18] : memref<1x120xf32, #tpu.memory_space<vmem>>, vector<1x120xf32>
    %77 = vector.shape_cast %76 : vector<1x120xf32> to vector<1x1x120xf32>
    %78 = vector.broadcast %77 : vector<1x1x120xf32> to vector<8x12x120xf32>
    %79 = arith.addf %75, %78 : vector<8x12x120xf32>
    %cst_19 = arith.constant 0.000000e+00 : f32
    %80 = vector.broadcast %cst_19 : f32 to vector<8x12x120xf32>
    %81 = arith.maximumf %79, %80 : vector<8x12x120xf32>
    %82 = vector.extract_strided_slice %81 {offsets = [0, 0, 0], sizes = [8, 8, 120], strides = [1, 1, 1]} : vector<8x12x120xf32> to vector<8x8x120xf32>
    %83 = vector.shape_cast %82 : vector<8x8x120xf32> to vector<64x120xf32>
    %84 = arith.truncf %83 : vector<64x120xf32> to vector<64x120xbf16>
    %c0_20 = arith.constant 0 : index
    %c0_21 = arith.constant 0 : index
    %c0_22 = arith.constant 0 : index
    %85 = vector.load %arg4[%c0_20, %c0_21, %c0_22] : memref<5x120x240xbf16, #tpu.memory_space<vmem>>, vector<1x120x240xbf16>
    %86 = vector.shape_cast %85 : vector<1x120x240xbf16> to vector<120x240xbf16>
    %cst_23 = arith.constant dense<0.000000e+00> : vector<64x240xf32>
    %87 = tpu.matmul %84, %86, %cst_23 {dimension_numbers = #tpu.dot_dimension_numbers<[1], [0], [0], [1], [0, 0, 1, 1], [], []>} : vector<64x120xbf16>, vector<120x240xbf16>, vector<64x240xf32> -> vector<64x240xf32>
    %88 = vector.extract_strided_slice %81 {offsets = [0, 1, 0], sizes = [8, 8, 120], strides = [1, 1, 1]} : vector<8x12x120xf32> to vector<8x8x120xf32>
    %89 = vector.shape_cast %88 : vector<8x8x120xf32> to vector<64x120xf32>
    %90 = arith.truncf %89 : vector<64x120xf32> to vector<64x120xbf16>
    %c1_24 = arith.constant 1 : index
    %c0_25 = arith.constant 0 : index
    %c0_26 = arith.constant 0 : index
    %91 = vector.load %arg4[%c1_24, %c0_25, %c0_26] : memref<5x120x240xbf16, #tpu.memory_space<vmem>>, vector<1x120x240xbf16>
    %92 = vector.shape_cast %91 : vector<1x120x240xbf16> to vector<120x240xbf16>
    %cst_27 = arith.constant dense<0.000000e+00> : vector<64x240xf32>
    %93 = tpu.matmul %90, %92, %cst_27 {dimension_numbers = #tpu.dot_dimension_numbers<[1], [0], [0], [1], [0, 0, 1, 1], [], []>} : vector<64x120xbf16>, vector<120x240xbf16>, vector<64x240xf32> -> vector<64x240xf32>
    %94 = arith.addf %87, %93 : vector<64x240xf32>
    %95 = vector.extract_strided_slice %81 {offsets = [0, 2, 0], sizes = [8, 8, 120], strides = [1, 1, 1]} : vector<8x12x120xf32> to vector<8x8x120xf32>
    %96 = vector.shape_cast %95 : vector<8x8x120xf32> to vector<64x120xf32>
    %97 = arith.truncf %96 : vector<64x120xf32> to vector<64x120xbf16>
    %c2_28 = arith.constant 2 : index
    %c0_29 = arith.constant 0 : index
    %c0_30 = arith.constant 0 : index
    %98 = vector.load %arg4[%c2_28, %c0_29, %c0_30] : memref<5x120x240xbf16, #tpu.memory_space<vmem>>, vector<1x120x240xbf16>
    %99 = vector.shape_cast %98 : vector<1x120x240xbf16> to vector<120x240xbf16>
    %cst_31 = arith.constant dense<0.000000e+00> : vector<64x240xf32>
    %100 = tpu.matmul %97, %99, %cst_31 {dimension_numbers = #tpu.dot_dimension_numbers<[1], [0], [0], [1], [0, 0, 1, 1], [], []>} : vector<64x120xbf16>, vector<120x240xbf16>, vector<64x240xf32> -> vector<64x240xf32>
    %101 = arith.addf %94, %100 : vector<64x240xf32>
    %102 = vector.extract_strided_slice %81 {offsets = [0, 3, 0], sizes = [8, 8, 120], strides = [1, 1, 1]} : vector<8x12x120xf32> to vector<8x8x120xf32>
    %103 = vector.shape_cast %102 : vector<8x8x120xf32> to vector<64x120xf32>
    %104 = arith.truncf %103 : vector<64x120xf32> to vector<64x120xbf16>
    %c3_32 = arith.constant 3 : index
    %c0_33 = arith.constant 0 : index
    %c0_34 = arith.constant 0 : index
    %105 = vector.load %arg4[%c3_32, %c0_33, %c0_34] : memref<5x120x240xbf16, #tpu.memory_space<vmem>>, vector<1x120x240xbf16>
    %106 = vector.shape_cast %105 : vector<1x120x240xbf16> to vector<120x240xbf16>
    %cst_35 = arith.constant dense<0.000000e+00> : vector<64x240xf32>
    %107 = tpu.matmul %104, %106, %cst_35 {dimension_numbers = #tpu.dot_dimension_numbers<[1], [0], [0], [1], [0, 0, 1, 1], [], []>} : vector<64x120xbf16>, vector<120x240xbf16>, vector<64x240xf32> -> vector<64x240xf32>
    %108 = arith.addf %101, %107 : vector<64x240xf32>
    %109 = vector.extract_strided_slice %81 {offsets = [0, 4, 0], sizes = [8, 8, 120], strides = [1, 1, 1]} : vector<8x12x120xf32> to vector<8x8x120xf32>
    %110 = vector.shape_cast %109 : vector<8x8x120xf32> to vector<64x120xf32>
    %111 = arith.truncf %110 : vector<64x120xf32> to vector<64x120xbf16>
    %c4_36 = arith.constant 4 : index
    %c0_37 = arith.constant 0 : index
    %c0_38 = arith.constant 0 : index
    %112 = vector.load %arg4[%c4_36, %c0_37, %c0_38] : memref<5x120x240xbf16, #tpu.memory_space<vmem>>, vector<1x120x240xbf16>
    %113 = vector.shape_cast %112 : vector<1x120x240xbf16> to vector<120x240xbf16>
    %cst_39 = arith.constant dense<0.000000e+00> : vector<64x240xf32>
    %114 = tpu.matmul %111, %113, %cst_39 {dimension_numbers = #tpu.dot_dimension_numbers<[1], [0], [0], [1], [0, 0, 1, 1], [], []>} : vector<64x120xbf16>, vector<120x240xbf16>, vector<64x240xf32> -> vector<64x240xf32>
    %115 = arith.addf %108, %114 : vector<64x240xf32>
    %116 = vector.extract_strided_slice %115 {offsets = [0, 0], sizes = [64, 80], strides = [1, 1]} : vector<64x240xf32> to vector<64x80xf32>
    %117 = vector.extract_strided_slice %115 {offsets = [0, 80], sizes = [64, 80], strides = [1, 1]} : vector<64x240xf32> to vector<64x80xf32>
    %118 = arith.maximumf %116, %117 : vector<64x80xf32>
    %119 = vector.extract_strided_slice %115 {offsets = [0, 160], sizes = [64, 80], strides = [1, 1]} : vector<64x240xf32> to vector<64x80xf32>
    %120 = arith.maximumf %118, %119 : vector<64x80xf32>
    %121 = vector.shape_cast %120 : vector<64x80xf32> to vector<8x8x80xf32>
    %122 = vector.extract_strided_slice %121 {offsets = [0, 0, 0], sizes = [8, 1, 80], strides = [1, 1, 1]} : vector<8x8x80xf32> to vector<8x1x80xf32>
    %123 = vector.extract_strided_slice %121 {offsets = [0, 1, 0], sizes = [8, 1, 80], strides = [1, 1, 1]} : vector<8x8x80xf32> to vector<8x1x80xf32>
    %124 = arith.maximumf %122, %123 : vector<8x1x80xf32>
    %125 = vector.extract_strided_slice %121 {offsets = [0, 2, 0], sizes = [8, 1, 80], strides = [1, 1, 1]} : vector<8x8x80xf32> to vector<8x1x80xf32>
    %126 = arith.maximumf %124, %125 : vector<8x1x80xf32>
    %127 = vector.extract_strided_slice %121 {offsets = [0, 2, 0], sizes = [8, 1, 80], strides = [1, 1, 1]} : vector<8x8x80xf32> to vector<8x1x80xf32>
    %128 = vector.extract_strided_slice %121 {offsets = [0, 3, 0], sizes = [8, 1, 80], strides = [1, 1, 1]} : vector<8x8x80xf32> to vector<8x1x80xf32>
    %129 = arith.maximumf %127, %128 : vector<8x1x80xf32>
    %130 = vector.extract_strided_slice %121 {offsets = [0, 4, 0], sizes = [8, 1, 80], strides = [1, 1, 1]} : vector<8x8x80xf32> to vector<8x1x80xf32>
    %131 = arith.maximumf %129, %130 : vector<8x1x80xf32>
    %132 = vector.extract_strided_slice %121 {offsets = [0, 4, 0], sizes = [8, 1, 80], strides = [1, 1, 1]} : vector<8x8x80xf32> to vector<8x1x80xf32>
    %133 = vector.extract_strided_slice %121 {offsets = [0, 5, 0], sizes = [8, 1, 80], strides = [1, 1, 1]} : vector<8x8x80xf32> to vector<8x1x80xf32>
    %134 = arith.maximumf %132, %133 : vector<8x1x80xf32>
    %135 = vector.extract_strided_slice %121 {offsets = [0, 6, 0], sizes = [8, 1, 80], strides = [1, 1, 1]} : vector<8x8x80xf32> to vector<8x1x80xf32>
    %136 = arith.maximumf %134, %135 : vector<8x1x80xf32>
    %137 = vector.extract_strided_slice %121 {offsets = [0, 6, 0], sizes = [8, 1, 80], strides = [1, 1, 1]} : vector<8x8x80xf32> to vector<8x1x80xf32>
    %138 = vector.extract_strided_slice %121 {offsets = [0, 7, 0], sizes = [8, 1, 80], strides = [1, 1, 1]} : vector<8x8x80xf32> to vector<8x1x80xf32>
    %139 = arith.maximumf %137, %138 : vector<8x1x80xf32>
    %140 = tpu.concatenate %126, %131, %136, %139 in 1 : vector<8x1x80xf32>, vector<8x1x80xf32>, vector<8x1x80xf32>, vector<8x1x80xf32> -> vector<8x4x80xf32>
    %c0_40 = arith.constant 0 : index
    %c0_41 = arith.constant 0 : index
    %141 = vector.load %arg5[%c0_40, %c0_41] : memref<1x80xf32, #tpu.memory_space<vmem>>, vector<1x80xf32>
    %142 = vector.shape_cast %141 : vector<1x80xf32> to vector<1x1x80xf32>
    %143 = vector.broadcast %142 : vector<1x1x80xf32> to vector<8x4x80xf32>
    %144 = arith.addf %140, %143 : vector<8x4x80xf32>
    %cst_42 = arith.constant 0.000000e+00 : f32
    %145 = vector.broadcast %cst_42 : f32 to vector<8x4x80xf32>
    %146 = arith.maximumf %144, %145 : vector<8x4x80xf32>
    %147 = vector.shape_cast %146 : vector<8x4x80xf32> to vector<8x320xf32>
    %148 = arith.truncf %147 : vector<8x320xf32> to vector<8x320xbf16>
    %c0_43 = arith.constant 0 : index
    %c0_44 = arith.constant 0 : index
    %149 = vector.load %arg6[%c0_43, %c0_44] : memref<320x50xbf16, #tpu.memory_space<vmem>>, vector<320x50xbf16>
    %cst_45 = arith.constant dense<0.000000e+00> : vector<8x50xf32>
    %150 = tpu.matmul %148, %149, %cst_45 {dimension_numbers = #tpu.dot_dimension_numbers<[1], [0], [0], [1], [0, 0, 1, 1], [], []>} : vector<8x320xbf16>, vector<320x50xbf16>, vector<8x50xf32> -> vector<8x50xf32>
    %c0_46 = arith.constant 0 : index
    %c0_47 = arith.constant 0 : index
    %151 = vector.load %arg7[%c0_46, %c0_47] : memref<1x50xf32, #tpu.memory_space<vmem>>, vector<1x50xf32>
    %152 = vector.broadcast %151 : vector<1x50xf32> to vector<8x50xf32>
    %153 = arith.addf %150, %152 : vector<8x50xf32>
    %cst_48 = arith.constant 0.000000e+00 : f32
    %154 = vector.broadcast %cst_48 : f32 to vector<8x50xf32>
    %155 = arith.maximumf %153, %154 : vector<8x50xf32>
    %156 = arith.truncf %155 : vector<8x50xf32> to vector<8x50xbf16>
    %c0_49 = arith.constant 0 : index
    %c0_50 = arith.constant 0 : index
    %157 = vector.load %arg8[%c0_49, %c0_50] : memref<50x10xbf16, #tpu.memory_space<vmem>>, vector<50x10xbf16>
    %cst_51 = arith.constant dense<0.000000e+00> : vector<8x10xf32>
    %158 = tpu.matmul %156, %157, %cst_51 {dimension_numbers = #tpu.dot_dimension_numbers<[1], [0], [0], [1], [0, 0, 1, 1], [], []>} : vector<8x50xbf16>, vector<50x10xbf16>, vector<8x10xf32> -> vector<8x10xf32>
    %c0_52 = arith.constant 0 : index
    %c0_53 = arith.constant 0 : index
    %159 = vector.load %arg9[%c0_52, %c0_53] : memref<1x10xf32, #tpu.memory_space<vmem>>, vector<1x10xf32>
    %160 = vector.broadcast %159 : vector<1x10xf32> to vector<8x10xf32>
    %161 = arith.addf %158, %160 : vector<8x10xf32>
    %cst_54 = arith.constant dense<0xFF800000> : vector<8xf32>
    %162 = vector.multi_reduction <maximumf>, %161, %cst_54 [1] : vector<8x10xf32> to vector<8xf32>
    %163 = vector.shape_cast %162 : vector<8xf32> to vector<8x1xf32>
    %164 = vector.broadcast %163 : vector<8x1xf32> to vector<8x10xf32>
    %165 = arith.subf %161, %164 : vector<8x10xf32>
    %166 = math.exp %165 : vector<8x10xf32>
    %cst_55 = arith.constant dense<0.000000e+00> : vector<8xf32>
    %167 = vector.multi_reduction <add>, %166, %cst_55 [1] : vector<8x10xf32> to vector<8xf32>
    %168 = vector.shape_cast %167 : vector<8xf32> to vector<8x1xf32>
    %169 = math.log %168 : vector<8x1xf32>
    %170 = arith.addf %163, %169 : vector<8x1xf32>
    %171 = vector.broadcast %170 : vector<8x1xf32> to vector<8x10xf32>
    %172 = arith.subf %161, %171 : vector<8x10xf32>
    %c0_56 = arith.constant 0 : index
    %c0_57 = arith.constant 0 : index
    %173 = vector.load %arg10[%c0_56, %c0_57] : memref<8x10xf32, #tpu.memory_space<vmem>>, vector<8x10xf32>
    tpu.vector_store %arg10[%c0_56, %c0_57], %172 {strides = array<i32>} : memref<8x10xf32, #tpu.memory_space<vmem>>, vector<8x10xf32>,
    return
  }
  func.func @transform_0(%arg0: i32) -> (i32, i32, i32) {
    %c0_i32 = arith.constant 0 : i32
    %c0_i32_0 = arith.constant 0 : i32
    %c0_i32_1 = arith.constant 0 : i32
    return %arg0, %c0_i32, %c0_i32_0 : i32, i32, i32
  }
  func.func @transform_1(%arg0: i32) -> (i32, i32, i32) {
    %c0_i32 = arith.constant 0 : i32
    %c0_i32_0 = arith.constant 0 : i32
    %c0_i32_1 = arith.constant 0 : i32
    %c0_i32_2 = arith.constant 0 : i32
    return %c0_i32, %c0_i32_0, %c0_i32_1 : i32, i32, i32
  }
  func.func @transform_2(%arg0: i32) -> (i32, i32) {
    %c0_i32 = arith.constant 0 : i32
    %c0_i32_0 = arith.constant 0 : i32
    %c0_i32_1 = arith.constant 0 : i32
    return %c0_i32, %c0_i32_0 : i32, i32
  }
  func.func @transform_3(%arg0: i32) -> (i32, i32, i32) {
    %c0_i32 = arith.constant 0 : i32
    %c0_i32_0 = arith.constant 0 : i32
    %c0_i32_1 = arith.constant 0 : i32
    %c0_i32_2 = arith.constant 0 : i32
    return %c0_i32, %c0_i32_0, %c0_i32_1 : i32, i32, i32
  }
  func.func @transform_4(%arg0: i32) -> (i32, i32) {
    %c0_i32 = arith.constant 0 : i32
    %c0_i32_0 = arith.constant 0 : i32
    %c0_i32_1 = arith.constant 0 : i32
    return %c0_i32, %c0_i32_0 : i32, i32
  }
  func.func @transform_5(%arg0: i32) -> (i32, i32) {
    %c0_i32 = arith.constant 0 : i32
    %c0_i32_0 = arith.constant 0 : i32
    %c0_i32_1 = arith.constant 0 : i32
    return %c0_i32, %c0_i32_0 : i32, i32
  }
  func.func @transform_6(%arg0: i32) -> (i32, i32) {
    %c0_i32 = arith.constant 0 : i32
    %c0_i32_0 = arith.constant 0 : i32
    %c0_i32_1 = arith.constant 0 : i32
    return %c0_i32, %c0_i32_0 : i32, i32
  }
  func.func @transform_7(%arg0: i32) -> (i32, i32) {
    %c0_i32 = arith.constant 0 : i32
    %c0_i32_0 = arith.constant 0 : i32
    %c0_i32_1 = arith.constant 0 : i32
    return %c0_i32, %c0_i32_0 : i32, i32
  }
  func.func @transform_8(%arg0: i32) -> (i32, i32) {
    %c0_i32 = arith.constant 0 : i32
    %c0_i32_0 = arith.constant 0 : i32
    %c0_i32_1 = arith.constant 0 : i32
    return %c0_i32, %c0_i32_0 : i32, i32
  }
  func.func @transform_9(%arg0: i32) -> (i32, i32) {
    %c0_i32 = arith.constant 0 : i32
    %c0_i32_0 = arith.constant 0 : i32
    return %arg0, %c0_i32 : i32, i32
  }
}

</mosaic_0001>

<llo_original>
// kernel: net_forward.1
$region0: #{net_forward.1}
  #allocation0 [shape = 'u32[]', space=smem, size = 0x4, offset = 0x4, fixed_abs, tag = 'smem constant byte address 0x4 - core index']
  #allocation1 [shape = 'u32[144,128]{1,0:T(1,128)}', space=vmem, size = 0x12000, scoped, tag = 'internal scratch']
  %s0 = inlined_call_operand.vmem [shape: f32[16,28,28], index: 0, kind: input, shape index: {}]
  %s1 = inlined_call_operand.vmem [shape: bf16[5,28,240], index: 1, kind: input, shape index: {}]
  %s2 = inlined_call_operand.vmem [shape: f32[1,120], index: 2, kind: input, shape index: {}]
  %s3 = inlined_call_operand.vmem [shape: bf16[5,120,240], index: 3, kind: input, shape index: {}]
  %s4 = inlined_call_operand.vmem [shape: f32[1,80], index: 4, kind: input, shape index: {}]
  %s5 = inlined_call_operand.vmem [shape: bf16[320,50], index: 5, kind: input, shape index: {}]
  %s6 = inlined_call_operand.vmem [shape: f32[1,50], index: 6, kind: input, shape index: {}]
  %s7 = inlined_call_operand.vmem [shape: bf16[50,10], index: 7, kind: input, shape index: {}]
  %s8 = inlined_call_operand.vmem [shape: f32[1,10], index: 8, kind: input, shape index: {}]
  %s9 = inlined_call_operand.vmem [shape: f32[16,10], index: 9, kind: output, shape index: {}]
  %s10 = sld [smem:[#allocation0]]
  $region69: #{net_forward.1} parent=0
    _
  %s12 = ssub.s32 1, %s10
  %s13 = scalar_select 0, %s12, %s10
  loop: start=0, step=1, limit=4
  $region2: #{net_forward.1} parent=0 // loop_pre_header
    _
  $region3: #{net_forward.1} parent=0 // loop_header
    %s15 = sphi 0, %s19
    %p16 = scmp.ge.s32.totalorder %s15, 4
    %s25 = sphi 0, %s27
    %s28 = sphi 0, %s25
    %s29 = sphi 0, %s28
    %s45 = sphi 0, %s29
    %s49 = sphi 0, %s49
    %s51 = sphi 0, %s49
    %s52 = sphi 0, %s51
    %s66 = sphi 0, %s52
    %s70 = sphi 0, %s70
    %s72 = sphi 0, %s70
    %s73 = sphi 0, %s72
    %s87 = sphi 0, %s73
    %s91 = sphi 0, %s91
    %s93 = sphi 0, %s91
    %s94 = sphi 0, %s93
    %s108 = sphi 0, %s94
    %s112 = sphi 0, %s112
    %s114 = sphi 0, %s112
    %s115 = sphi 0, %s114
    %s129 = sphi 0, %s115
    %s133 = sphi 0, %s133
    %s135 = sphi 0, %s133
    %s136 = sphi 0, %s135
    %s150 = sphi 0, %s136
    %s154 = sphi 0, %s154
    %s156 = sphi 0, %s154
    %s157 = sphi 0, %s156
    %s171 = sphi 0, %s157
    %s175 = sphi 0, %s175
    %s177 = sphi 0, %s175
    %s178 = sphi 0, %s177
    %s192 = sphi 0, %s178
    %s196 = sphi 0, %s196
    %s198 = sphi 0, %s196
    %s199 = sphi 0, %s198
    %s213 = sphi 0, %s199
    %s219 = sphi 0, %s221
    %s222 = sphi 0, %s219
    %s223 = sphi 0, %s222
    %s239 = sphi 0, %s223
  $region4: #{net_forward.1} parent=0 // loop_header_branch
    %18 = sbr.rel (%p16) target = $region8
  $region5: #{net_forward.1} parent=0 // loop_body
    %s20 = ssub.s32 %s15, 1
    %s21 = ssub.s32 %s15, 2
    %s22 = sadd.s32 %s15, 1
    %s23 = ssub.s32 %s15, %s22
    %p24 = scmp.eq.s32.totalorder %s23, 0
    %s26 = sadd.s32 %s25, 1
    %s27 = scalar_select %p24, %s25, %s26
    %p30 = pneg %p24
    %p31 = scmp.eq.s32.totalorder %s15, 1
    %p32 = por %p30, %p31
    %p33 = scmp.ne.s32.totalorder %s25, %s28
    %p34 = scmp.eq.s32.totalorder %s15, 0
    %p35 = por %p33, %p34
    %p36 = scmp.ne.s32.totalorder %s25, %s28
    %p37 = scmp.eq.s32.totalorder %s20, 1
    %p38 = por %p36, %p37
    %p39 = scmp.ne.s32.totalorder %s28, %s29
    %p40 = scmp.eq.s32.totalorder %s20, 0
    %p41 = por %p39, %p40
    %p42 = scmp.ne.s32.totalorder %s28, %s29
    %p43 = scmp.eq.s32.totalorder %s21, 1
    %p44 = por %p42, %p43
    %p46 = scmp.ne.s32.totalorder %s29, %s45
    %p47 = scmp.eq.s32.totalorder %s21, 0
    %p48 = por %p46, %p47
    %s50 = sadd.s32 %s49, 1
    %p53 = scmp.eq.s32.totalorder %s15, 1
    %p54 = scmp.ne.s32.totalorder %s49, %s51
    %p55 = scmp.eq.s32.totalorder %s15, 0
    %p56 = por %p54, %p55
    %p57 = scmp.ne.s32.totalorder %s49, %s51
    %p58 = scmp.eq.s32.totalorder %s20, 1
    %p59 = por %p57, %p58
    %p60 = scmp.ne.s32.totalorder %s51, %s52
    %p61 = scmp.eq.s32.totalorder %s20, 0
    %p62 = por %p60, %p61
    %p63 = scmp.ne.s32.totalorder %s51, %s52
    %p64 = scmp.eq.s32.totalorder %s21, 1
    %p65 = por %p63, %p64
    %p67 = scmp.ne.s32.totalorder %s52, %s66
    %p68 = scmp.eq.s32.totalorder %s21, 0
    %p69 = por %p67, %p68
    %s71 = sadd.s32 %s70, 1
    %p74 = scmp.eq.s32.totalorder %s15, 1
    %p75 = scmp.ne.s32.totalorder %s70, %s72
    %p76 = scmp.eq.s32.totalorder %s15, 0
    %p77 = por %p75, %p76
    %p78 = scmp.ne.s32.totalorder %s70, %s72
    %p79 = scmp.eq.s32.totalorder %s20, 1
    %p80 = por %p78, %p79
    %p81 = scmp.ne.s32.totalorder %s72, %s73
    %p82 = scmp.eq.s32.totalorder %s20, 0
    %p83 = por %p81, %p82
    %p84 = scmp.ne.s32.totalorder %s72, %s73
    %p85 = scmp.eq.s32.totalorder %s21, 1
    %p86 = por %p84, %p85
    %p88 = scmp.ne.s32.totalorder %s73, %s87
    %p89 = scmp.eq.s32.totalorder %s21, 0
    %p90 = por %p88, %p89
    %s92 = sadd.s32 %s91, 1
    %p95 = scmp.eq.s32.totalorder %s15, 1
    %p96 = scmp.ne.s32.totalorder %s91, %s93
    %p97 = scmp.eq.s32.totalorder %s15, 0
    %p98 = por %p96, %p97
    %p99 = scmp.ne.s32.totalorder %s91, %s93
    %p100 = scmp.eq.s32.totalorder %s20, 1
    %p101 = por %p99, %p100
    %p102 = scmp.ne.s32.totalorder %s93, %s94
    %p103 = scmp.eq.s32.totalorder %s20, 0
    %p104 = por %p102, %p103
    %p105 = scmp.ne.s32.totalorder %s93, %s94
    %p106 = scmp.eq.s32.totalorder %s21, 1
    %p107 = por %p105, %p106
    %p109 = scmp.ne.s32.totalorder %s94, %s108
    %p110 = scmp.eq.s32.totalorder %s21, 0
    %p111 = por %p109, %p110
    %s113 = sadd.s32 %s112, 1
    %p116 = scmp.eq.s32.totalorder %s15, 1
    %p117 = scmp.ne.s32.totalorder %s112, %s114
    %p118 = scmp.eq.s32.totalorder %s15, 0
    %p119 = por %p117, %p118
    %p120 = scmp.ne.s32.totalorder %s112, %s114
    %p121 = scmp.eq.s32.totalorder %s20, 1
    %p122 = por %p120, %p121
    %p123 = scmp.ne.s32.totalorder %s114, %s115
    %p124 = scmp.eq.s32.totalorder %s20, 0
    %p125 = por %p123, %p124
    %p126 = scmp.ne.s32.totalorder %s114, %s115
    %p127 = scmp.eq.s32.totalorder %s21, 1
    %p128 = por %p126, %p127
    %p130 = scmp.ne.s32.totalorder %s115, %s129
    %p131 = scmp.eq.s32.totalorder %s21, 0
    %p132 = por %p130, %p131
    %s134 = sadd.s32 %s133, 1
    %p137 = scmp.eq.s32.totalorder %s15, 1
    %p138 = scmp.ne.s32.totalorder %s133, %s135
    %p139 = scmp.eq.s32.totalorder %s15, 0
    %p140 = por %p138, %p139
    %p141 = scmp.ne.s32.totalorder %s133, %s135
    %p142 = scmp.eq.s32.totalorder %s20, 1
    %p143 = por %p141, %p142
    %p144 = scmp.ne.s32.totalorder %s135, %s136
    %p145 = scmp.eq.s32.totalorder %s20, 0
    %p146 = por %p144, %p145
    %p147 = scmp.ne.s32.totalorder %s135, %s136
    %p148 = scmp.eq.s32.totalorder %s21, 1
    %p149 = por %p147, %p148
    %p151 = scmp.ne.s32.totalorder %s136, %s150
    %p152 = scmp.eq.s32.totalorder %s21, 0
    %p153 = por %p151, %p152
    %s155 = sadd.s32 %s154, 1
    %p158 = scmp.eq.s32.totalorder %s15, 1
    %p159 = scmp.ne.s32.totalorder %s154, %s156
    %p160 = scmp.eq.s32.totalorder %s15, 0
    %p161 = por %p159, %p160
    %p162 = scmp.ne.s32.totalorder %s154, %s156
    %p163 = scmp.eq.s32.totalorder %s20, 1
    %p164 = por %p162, %p163
    %p165 = scmp.ne.s32.totalorder %s156, %s157
    %p166 = scmp.eq.s32.totalorder %s20, 0
    %p167 = por %p165, %p166
    %p168 = scmp.ne.s32.totalorder %s156, %s157
    %p169 = scmp.eq.s32.totalorder %s21, 1
    %p170 = por %p168, %p169
    %p172 = scmp.ne.s32.totalorder %s157, %s171
    %p173 = scmp.eq.s32.totalorder %s21, 0
    %p174 = por %p172, %p173
    %s176 = sadd.s32 %s175, 1
    %p179 = scmp.eq.s32.totalorder %s15, 1
    %p180 = scmp.ne.s32.totalorder %s175, %s177
    %p181 = scmp.eq.s32.totalorder %s15, 0
    %p182 = por %p180, %p181
    %p183 = scmp.ne.s32.totalorder %s175, %s177
    %p184 = scmp.eq.s32.totalorder %s20, 1
    %p185 = por %p183, %p184
    %p186 = scmp.ne.s32.totalorder %s177, %s178
    %p187 = scmp.eq.s32.totalorder %s20, 0
    %p188 = por %p186, %p187
    %p189 = scmp.ne.s32.totalorder %s177, %s178
    %p190 = scmp.eq.s32.totalorder %s21, 1
    %p191 = por %p189, %p190
    %p193 = scmp.ne.s32.totalorder %s178, %s192
    %p194 = scmp.eq.s32.totalorder %s21, 0
    %p195 = por %p193, %p194
    %s197 = sadd.s32 %s196, 1
    %p200 = scmp.eq.s32.totalorder %s15, 1
    %p201 = scmp.ne.s32.totalorder %s196, %s198
    %p202 = scmp.eq.s32.totalorder %s15, 0
    %p203 = por %p201, %p202
    %p204 = scmp.ne.s32.totalorder %s196, %s198
    %p205 = scmp.eq.s32.totalorder %s20, 1
    %p206 = por %p204, %p205
    %p207 = scmp.ne.s32.totalorder %s198, %s199
    %p208 = scmp.eq.s32.totalorder %s20, 0
    %p209 = por %p207, %p208
    %p210 = scmp.ne.s32.totalorder %s198, %s199
    %p211 = scmp.eq.s32.totalorder %s21, 1
    %p212 = por %p210, %p211
    %p214 = scmp.ne.s32.totalorder %s199, %s213
    %p215 = scmp.eq.s32.totalorder %s21, 0
    %p216 = por %p214, %p215
    %s217 = ssub.s32 %s15, %s22
    %p218 = scmp.eq.s32.totalorder %s217, 0
    %s220 = sadd.s32 %s219, 1
    %s221 = scalar_select %p218, %s219, %s220
    %p224 = pneg %p218
    %p225 = scmp.eq.s32.totalorder %s15, 1
    %p226 = por %p224, %p225
    %p227 = scmp.ne.s32.totalorder %s219, %s222
    %p228 = scmp.eq.s32.totalorder %s15, 0
    %p229 = por %p227, %p228
    %p230 = scmp.ne.s32.totalorder %s219, %s222
    %p231 = scmp.eq.s32.totalorder %s20, 1
    %p232 = por %p230, %p231
    %p233 = scmp.ne.s32.totalorder %s222, %s223
    %p234 = scmp.eq.s32.totalorder %s20, 0
    %p235 = por %p233, %p234
    %p236 = scmp.ne.s32.totalorder %s222, %s223
    %p237 = scmp.eq.s32.totalorder %s21, 1
    %p238 = por %p236, %p237
    %p240 = scmp.ne.s32.totalorder %s223, %s239
    %p241 = scmp.eq.s32.totalorder %s21, 0
    %p242 = por %p240, %p241
    %p243 = scmp.le.s32.totalorder 1, %s15
    %p244 = scmp.lt.s32.totalorder %s15, 3
    %p245 = pnand %p243, %p244
    %p246 = pneg %p245
    // Predicated region
    $region9: #{net_forward.1} parent=5 // pred_check
      _
    $region10: #{net_forward.1} parent=5 // pred_check_branch
      %248 = sbr.rel (%p245) target = $region12
    $region11: #{net_forward.1} parent=5 // pred_region
      %s249 = ssub.s32 %s15, 1
      // Predicated region
      $region13: #{net_forward.1} parent=11 // pred_check
        %p250 = pneg %p62
      $region14: #{net_forward.1} parent=11 // pred_check_branch
        %252 = sbr.rel (%p250) target = $region16
      $region15: #{net_forward.1} parent=11 // pred_region
        _
      $region16: #{net_forward.1} parent=11 // pred_fallthru
        _
      // Predicated region
      $region17: #{net_forward.1} parent=11 // pred_check
        %p253 = pneg %p83
      $region18: #{net_forward.1} parent=11 // pred_check_branch
        %255 = sbr.rel (%p253) target = $region20
      $region19: #{net_forward.1} parent=11 // pred_region
        _
      $region20: #{net_forward.1} parent=11 // pred_fallthru
        _
      // Predicated region
      $region21: #{net_forward.1} parent=11 // pred_check
        %p256 = pneg %p104
      $region22: #{net_forward.1} parent=11 // pred_check_branch
        %258 = sbr.rel (%p256) target = $region24
      $region23: #{net_forward.1} parent=11 // pred_region
        _
      $region24: #{net_forward.1} parent=11 // pred_fallthru
        _
      // Predicated region
      $region25: #{net_forward.1} parent=11 // pred_check
        %p259 = pneg %p125
      $region26: #{net_forward.1} parent=11 // pred_check_branch
        %261 = sbr.rel (%p259) target = $region28
      $region27: #{net_forward.1} parent=11 // pred_region
        _
      $region28: #{net_forward.1} parent=11 // pred_fallthru
        _
      // Predicated region
      $region29: #{net_forward.1} parent=11 // pred_check
        %p262 = pneg %p146
      $region30: #{net_forward.1} parent=11 // pred_check_branch
        %264 = sbr.rel (%p262) target = $region32
      $region31: #{net_forward.1} parent=11 // pred_region
        _
      $region32: #{net_forward.1} parent=11 // pred_fallthru
        _
      // Predicated region
      $region33: #{net_forward.1} parent=11 // pred_check
        %p265 = pneg %p167
      $region34: #{net_forward.1} parent=11 // pred_check_branch
        %267 = sbr.rel (%p265) target = $region36
      $region35: #{net_forward.1} parent=11 // pred_region
        _
      $region36: #{net_forward.1} parent=11 // pred_fallthru
        _
      // Predicated region
      $region37: #{net_forward.1} parent=11 // pred_check
        %p268 = pneg %p188
      $region38: #{net_forward.1} parent=11 // pred_check_branch
        %270 = sbr.rel (%p268) target = $region40
      $region39: #{net_forward.1} parent=11 // pred_region
        _
      $region40: #{net_forward.1} parent=11 // pred_fallthru
        _
      // Predicated region
      $region41: #{net_forward.1} parent=11 // pred_check
        %p271 = pneg %p209
      $region42: #{net_forward.1} parent=11 // pred_check_branch
        %273 = sbr.rel (%p271) target = $region44
      $region43: #{net_forward.1} parent=11 // pred_region
        _
      $region44: #{net_forward.1} parent=11 // pred_fallthru
        _
    $region12: #{net_forward.1} parent=5 // pred_fallthru
      _
    %p274 = scmp.lt.s32.totalorder %s15, 2
    // Predicated region
    $region45: #{net_forward.1} parent=5 // pred_check
      %p275 = pneg %p274
    $region46: #{net_forward.1} parent=5 // pred_check_branch
      %277 = sbr.rel (%p275) target = $region48
    $region47: #{net_forward.1} parent=5 // pred_region
      // Predicated region
      $region49: #{net_forward.1} parent=47 // pred_check
        %p278 = pneg %p35
      $region50: #{net_forward.1} parent=47 // pred_check_branch
        %280 = sbr.rel (%p278) target = $region52
      $region51: #{net_forward.1} parent=47 // pred_region
        %s281 = smul.u32 8, %s15
        %p282 = scmp.lt.s32.totalorder %s281, 15
        %s283 = scalar_select %p282, %s281, 15
        %s284 = smul.addr %s283, 4
        %s285 = smul.addr %s284, 8
        %s286 = scalar_lea.vmem %s0, %s285
        %s287 = smul.u32 8, %s15
      $region52: #{net_forward.1} parent=47 // pred_fallthru
        _
    $region48: #{net_forward.1} parent=5 // pred_fallthru
      _
    %p288 = scmp.le.s32.totalorder 1, %s15
    %p289 = scmp.lt.s32.totalorder %s15, 3
    %p290 = pnand %p288, %p289
    %p291 = pneg %p290
    // Predicated region
    $region53: #{net_forward.1} parent=5 // pred_check
      _
    $region54: #{net_forward.1} parent=5 // pred_check_branch
      %293 = sbr.rel (%p290) target = $region56
    $region55: #{net_forward.1} parent=5 // pred_region
      %s294 = ssub.s32 %s15, 1
      %s295 = smul.u32 8, %s20
      %p296 = scmp.lt.s32.totalorder %s295, 15
      %s297 = scalar_select %p296, %s295, 15
      %s298 = smul.addr %s297, 4
      %s299 = smul.addr %s298, 8
      %s300 = scalar_lea.vmem %s0, %s299
      %p301 = pneg %p41
      %p302 = pneg %p38
      %p303 = pneg %p62
      %p304 = pneg %p59
      %p305 = pneg %p83
      %p306 = pneg %p80
      %p307 = pneg %p104
      %p308 = pneg %p101
      %p309 = pneg %p125
      %p310 = pneg %p122
      %p311 = pneg %p146
      %p312 = pneg %p143
      %p313 = pneg %p167
      %p314 = pneg %p164
      %p315 = pneg %p188
      %p316 = pneg %p185
      %p317 = pneg %p209
      %p318 = pneg %p206
      %p319 = pneg %p235
      %p320 = pneg %p232
      %p321 = scmp.lt.s32.totalorder %s20, 1
      %s322 = scalar_select %p321, %s20, 1
      %s323 = smul.addr %s322, 8
      %s324 = scalar_lea.vmem %s9, %s323
      %s325 = smul.u32 8, %s20
      %p326 = scmp.lt.s32.totalorder %s325, 15
      %s327 = scalar_select %p326, %s325, 15
      %s328 = smul.addr %s327, 4
      %s329 = smul.addr %s328, 8
      %s330 = scalar_lea.vmem %s0, %s329
      %s331 = smul.u32 8, %s20
      %p332 = scmp.lt.s32.totalorder %s20, 1
      %s333 = scalar_select %p332, %s20, 1
      %s334 = smul.addr %s333, 8
      %s335 = scalar_lea.vmem %s9, %s334
      %v337 = vld [vmem:[%s330] sm:$0xff]
      %v338 = vld [vmem:[%s330 + $0x8] sm:$0xff]
      %v339 = vld [vmem:[%s330 + $0x10] sm:$0xff]
      %v340 = vld [vmem:[%s330 + $0x18] sm:$0xf]
      %v341 = vld [vmem:[%s330 + $0x20] sm:$0xff]
      %v342 = vld [vmem:[%s330 + $0x28] sm:$0xff]
      %v343 = vld [vmem:[%s330 + $0x30] sm:$0xff]
      %v344 = vld [vmem:[%s330 + $0x38] sm:$0xf]
      %v345 = vld [vmem:[%s330 + $0x40] sm:$0xff]
      %v346 = vld [vmem:[%s330 + $0x48] sm:$0xff]
      %v347 = vld [vmem:[%s330 + $0x50] sm:$0xff]
      %v348 = vld [vmem:[%s330 + $0x58] sm:$0xf]
      %v349 = vld [vmem:[%s330 + $0x60] sm:$0xff]
      %v350 = vld [vmem:[%s330 + $0x68] sm:$0xff]
      %v351 = vld [vmem:[%s330 + $0x70] sm:$0xff]
      %v352 = vld [vmem:[%s330 + $0x78] sm:$0xf]
      %v353 = vld [vmem:[%s330 + $0x80] sm:$0xff]
      %v354 = vld [vmem:[%s330 + $0x88] sm:$0xff]
      %v355 = vld [vmem:[%s330 + $0x90] sm:$0xff]
      %v356 = vld [vmem:[%s330 + $0x98] sm:$0xf]
      %v357 = vld [vmem:[%s330 + $0xa0] sm:$0xff]
      %v358 = vld [vmem:[%s330 + $0xa8] sm:$0xff]
      %v359 = vld [vmem:[%s330 + $0xb0] sm:$0xff]
      %v360 = vld [vmem:[%s330 + $0xb8] sm:$0xf]
      %v361 = vld [vmem:[%s330 + $0xc0] sm:$0xff]
      %v362 = vld [vmem:[%s330 + $0xc8] sm:$0xff]
      %v363 = vld [vmem:[%s330 + $0xd0] sm:$0xff]
      %v364 = vld [vmem:[%s330 + $0xd8] sm:$0xf]
      %v365 = vld [vmem:[%s330 + $0xe0] sm:$0xff]
      %v366 = vld [vmem:[%s330 + $0xe8] sm:$0xff]
      %v367 = vld [vmem:[%s330 + $0xf0] sm:$0xff]
      %v368 = vld [vmem:[%s330 + $0xf8] sm:$0xf]
      %v369 = vpack.c.bf16 %v338, %v337
      %v370 = vpack.c.bf16 %v341, %v339
      %v371 = vpack.c.bf16 %v343, %v342
      %v372 = vpack.c.bf16 %v346, %v345
      %v373 = vpack.c.bf16 %v349, %v347
      %v374 = vpack.c.bf16 %v351, %v350
      %v375 = vpack.c.bf16 %v354, %v353
      %v376 = vpack.c.bf16 %v357, %v355
      %v377 = vpack.c.bf16 %v359, %v358
      %v378 = vpack.c.bf16 %v362, %v361
      %v379 = vpack.c.bf16 %v365, %v363
      %v380 = vpack.c.bf16 %v367, %v366
      %v381 = vld [vmem:[%s1] sm:$0xff]
      %v382 = vld [vmem:[%s1 + $0x8] sm:$0xff]
      %v383 = vld [vmem:[%s1 + $0x10] sm:$0xff]
      %v384 = vld [vmem:[%s1 + $0x18] sm:$0x33]
      %vm417 = vcmask 1046528
      %v418 = vrot.slane %v337, 1
      %v419 = vrot.slane %v338, 1
      %v420 = vsel %vm417, %v418, %v419
      %v421 = vrot.slane %v339, 1
      %v422 = vsel %vm417, %v419, %v421
      %v423 = vrot.slane %v340, 1
      %v424 = vsel %vm417, %v421, %v423
      %v425 = vrot.slane %v341, 1
      %v426 = vrot.slane %v342, 1
      %v427 = vsel %vm417, %v425, %v426
      %v428 = vrot.slane %v343, 1
      %v429 = vsel %vm417, %v426, %v428
      %v430 = vrot.slane %v344, 1
      %v431 = vsel %vm417, %v428, %v430
      %v432 = vrot.slane %v345, 1
      %v433 = vrot.slane %v346, 1
      %v434 = vsel %vm417, %v432, %v433
      %v435 = vrot.slane %v347, 1
      %v436 = vsel %vm417, %v433, %v435
      %v437 = vrot.slane %v348, 1
      %v438 = vsel %vm417, %v435, %v437
      %v439 = vrot.slane %v349, 1
      %v440 = vrot.slane %v350, 1
      %v441 = vsel %vm417, %v439, %v440
      %v442 = vrot.slane %v351, 1
      %v443 = vsel %vm417, %v440, %v442
      %v444 = vrot.slane %v352, 1
      %v445 = vsel %vm417, %v442, %v444
      %v446 = vrot.slane %v353, 1
      %v447 = vrot.slane %v354, 1
      %v448 = vsel %vm417, %v446, %v447
      %v449 = vrot.slane %v355, 1
      %v450 = vsel %vm417, %v447, %v449
      %v451 = vrot.slane %v356, 1
      %v452 = vsel %vm417, %v449, %v451
      %v453 = vrot.slane %v357, 1
      %v454 = vrot.slane %v358, 1
      %v455 = vsel %vm417, %v453, %v454
      %v456 = vrot.slane %v359, 1
      %v457 = vsel %vm417, %v454, %v456
      %v458 = vrot.slane %v360, 1
      %v459 = vsel %vm417, %v456, %v458
      %v460 = vrot.slane %v361, 1
      %v461 = vrot.slane %v362, 1
      %v462 = vsel %vm417, %v460, %v461
      %v463 = vrot.slane %v363, 1
      %v464 = vsel %vm417, %v461, %v463
      %v465 = vrot.slane %v364, 1
      %v466 = vsel %vm417, %v463, %v465
      %v467 = vrot.slane %v365, 1
      %v468 = vrot.slane %v366, 1
      %v469 = vsel %vm417, %v467, %v468
      %v470 = vrot.slane %v367, 1
      %v471 = vsel %vm417, %v468, %v470
      %v472 = vrot.slane %v368, 1
      %v473 = vsel %vm417, %v470, %v472
      %v498 = vpack.c.bf16 %v422, %v420
      %v499 = vpack.c.bf16 %v427, %v424
      %v500 = vpack.c.bf16 %v431, %v429
      %v501 = vpack.c.bf16 %v436, %v434
      %v502 = vpack.c.bf16 %v441, %v438
      %v503 = vpack.c.bf16 %v445, %v443
      %v504 = vpack.c.bf16 %v450, %v448
      %v505 = vpack.c.bf16 %v455, %v452
      %v506 = vpack.c.bf16 %v459, %v457
      %v507 = vpack.c.bf16 %v464, %v462
      %v508 = vpack.c.bf16 %v469, %v466
      %v509 = vpack.c.bf16 %v473, %v471
      %s510 = scalar_lea.vmem %s1, 32
      %v511 = vld [vmem:[%s510] sm:$0xff]
      %v512 = vld [vmem:[%s510 + $0x8] sm:$0xff]
      %v513 = vld [vmem:[%s510 + $0x10] sm:$0xff]
      %v514 = vld [vmem:[%s510 + $0x18] sm:$0x33]
      %v519 = vunpack.c.l.b16 %v511
      %v520 = vunpack.c.h.b16 %v511
      %v521 = vunpack.c.l.b16 %v512
      %v522 = vunpack.c.h.b16 %v512
      %v523 = vunpack.c.l.b16 %v513
      %v524 = vunpack.c.h.b16 %v513
      %v525 = vunpack.c.l.b16 %v514
      %v526 = vunpack.c.h.b16 %v514
      %v527 = vpack.c.b16 %v521, %v519
      %v528 = vpack.c.b16 %v522, %v520
      %v529 = vpack.c.b16 %v525, %v523
      %v530 = vpack.c.b16 %v526, %v524
      %vm533 = vcmask 228352
      %v535 = vsel %vm533, %v498, 0
      %v538 = vsel %vm533, %v499, 0
      %v541 = vsel %vm533, %v500, 0
      %v544 = vsel %vm533, %v501, 0
      %v547 = vsel %vm533, %v502, 0
      %v550 = vsel %vm533, %v503, 0
      %v553 = vsel %vm533, %v504, 0
      %v556 = vsel %vm533, %v505, 0
      %v559 = vsel %vm533, %v506, 0
      %v562 = vsel %vm533, %v507, 0
      %v565 = vsel %vm533, %v508, 0
      %v568 = vsel %vm533, %v509, 0
      %vm570 = vcmask 1045504
      %v572 = vsel %vm570, %v529, 0
      %v575 = vsel %vm570, %v530, 0
      %577 = vmatprep.subr.bf16.mxu0 0
      %578 = vmatpush1.bf16.msra.mxu0 0
      %579 = vmatprep.subr.bf16.mxu0 0
      %580 = vmatpush1.bf16.msra.mxu0 0
      %581 = vmatprep.subr.bf16.mxu0 0
      %582 = vmatpush1.bf16.msra.mxu0 0
      %583 = vmatprep.subr.bf16.mxu0 0
      %584 = vmatpush1.bf16.msra.mxu0 0
      %585 = vmatprep.subr.bf16.mxu0 0
      %586 = vmatpush1.bf16.msra.mxu0 0
      %587 = vmatprep.subr.bf16.mxu0 0
      %588 = vmatpush1.bf16.msra.mxu0 0
      %589 = vmatprep.subr.bf16.mxu0 %v575
      %590 = vmatpush1.bf16.msra.mxu0 %v572
      %591 = vmatprep.subr.bf16.mxu0 %v528
      %592 = vmatpush1.bf16.msra.mxu0 %v527
      %593 = vmatprep.subr.bf16.mxu0 0
      %594 = vmatpush2.bf16.msra.mxu0 0
      %595 = vmatprep.subr.bf16.mxu0 0
      %596 = vmatpush2.bf16.msra.mxu0 0
      %597 = vmatprep.subr.bf16.mxu0 0
      %598 = vmatpush2.bf16.msra.mxu0 0
      %599 = vmatprep.subr.bf16.mxu0 0
      %600 = vmatpush2.bf16.msra.mxu0 0
      %601 = vmatprep.subr.bf16.mxu0 0
      %602 = vmatpush2.bf16.msra.mxu0 0
      %603 = vmatprep.subr.bf16.mxu0 0
      %604 = vmatpush2.bf16.msra.mxu0 0
      %605 = vmatprep.subr.bf16.mxu0 0
      %606 = vmatpush2.bf16.msra.mxu0 0
      %607 = vmatprep.subr.bf16.mxu0 0
      %608 = vmatpush2.bf16.msra.mxu0 0
      %609 = vmatprep.mubr.bf16.mxu0 0
      %610 = vmatmul.mubr.bf16.gmra.mxu0 %v535
      %v611 = vpop.f32.mrf.mxu0
      %v612 = vadd.f32 0.0, %v611
      %v613 = vpop.f32.mrf.mxu0
      %v614 = vadd.f32 0.0, %v613
      %v615 = vpop.f32.mrf.mxu0
      %v616 = vadd.f32 0.0, %v615
      %v617 = vpop.f32.mrf.mxu0
      %v618 = vadd.f32 0.0, %v617
      %619 = vmatprep.mubr.bf16.mxu0 0
      %620 = vmatmul.mubr.bf16.gmra.mxu0 %v538
      %v621 = vpop.f32.mrf.mxu0
      %v622 = vadd.f32 0.0, %v621
      %v623 = vpop.f32.mrf.mxu0
      %v624 = vadd.f32 0.0, %v623
      %v625 = vpop.f32.mrf.mxu0
      %v626 = vadd.f32 0.0, %v625
      %v627 = vpop.f32.mrf.mxu0
      %v628 = vadd.f32 0.0, %v627
      %629 = vmatprep.mubr.bf16.mxu0 0
      %630 = vmatmul.mubr.bf16.gmra.mxu0 %v541
      %v631 = vpop.f32.mrf.mxu0
      %v632 = vadd.f32 0.0, %v631
      %v633 = vpop.f32.mrf.mxu0
      %v634 = vadd.f32 0.0, %v633
      %v635 = vpop.f32.mrf.mxu0
      %v636 = vadd.f32 0.0, %v635
      %v637 = vpop.f32.mrf.mxu0
      %v638 = vadd.f32 0.0, %v637
      %639 = vmatprep.mubr.bf16.mxu0 0
      %640 = vmatmul.mubr.bf16.gmra.mxu0 %v544
      %v641 = vpop.f32.mrf.mxu0
      %v642 = vadd.f32 0.0, %v641
      %v643 = vpop.f32.mrf.mxu0
      %v644 = vadd.f32 0.0, %v643
      %v645 = vpop.f32.mrf.mxu0
      %v646 = vadd.f32 0.0, %v645
      %v647 = vpop.f32.mrf.mxu0
      %v648 = vadd.f32 0.0, %v647
      %649 = vmatprep.mubr.bf16.mxu0 0
      %650 = vmatmul.mubr.bf16.gmra.mxu0 %v547
      %v651 = vpop.f32.mrf.mxu0
      %v652 = vadd.f32 0.0, %v651
      %v653 = vpop.f32.mrf.mxu0
      %v654 = vadd.f32 0.0, %v653
      %v655 = vpop.f32.mrf.mxu0
      %v656 = vadd.f32 0.0, %v655
      %v657 = vpop.f32.mrf.mxu0
      %v658 = vadd.f32 0.0, %v657
      %659 = vmatprep.mubr.bf16.mxu0 0
      %660 = vmatmul.mubr.bf16.gmra.mxu0 %v550
      %v661 = vpop.f32.mrf.mxu0
      %v662 = vadd.f32 0.0, %v661
      %v663 = vpop.f32.mrf.mxu0
      %v664 = vadd.f32 0.0, %v663
      %v665 = vpop.f32.mrf.mxu0
      %v666 = vadd.f32 0.0, %v665
      %v667 = vpop.f32.mrf.mxu0
      %v668 = vadd.f32 0.0, %v667
      %669 = vmatprep.mubr.bf16.mxu0 0
      %670 = vmatmul.mubr.bf16.gmra.mxu0 %v553
      %v671 = vpop.f32.mrf.mxu0
      %v672 = vadd.f32 0.0, %v671
      %v673 = vpop.f32.mrf.mxu0
      %v674 = vadd.f32 0.0, %v673
      %v675 = vpop.f32.mrf.mxu0
      %v676 = vadd.f32 0.0, %v675
      %v677 = vpop.f32.mrf.mxu0
      %v678 = vadd.f32 0.0, %v677
      %679 = vmatprep.mubr.bf16.mxu0 0
      %680 = vmatmul.mubr.bf16.gmra.mxu0 %v556
      %v681 = vpop.f32.mrf.mxu0
      %v682 = vadd.f32 0.0, %v681
      %v683 = vpop.f32.mrf.mxu0
      %v684 = vadd.f32 0.0, %v683
      %v685 = vpop.f32.mrf.mxu0
      %v686 = vadd.f32 0.0, %v685
      %v687 = vpop.f32.mrf.mxu0
      %v688 = vadd.f32 0.0, %v687
      %689 = vmatprep.mubr.bf16.mxu0 0
      %690 = vmatmul.mubr.bf16.gmra.mxu0 %v559
      %v691 = vpop.f32.mrf.mxu0
      %v692 = vadd.f32 0.0, %v691
      %v693 = vpop.f32.mrf.mxu0
      %v694 = vadd.f32 0.0, %v693
      %v695 = vpop.f32.mrf.mxu0
      %v696 = vadd.f32 0.0, %v695
      %v697 = vpop.f32.mrf.mxu0
      %v698 = vadd.f32 0.0, %v697
      %699 = vmatprep.mubr.bf16.mxu0 0
      %700 = vmatmul.mubr.bf16.gmra.mxu0 %v562
      %v701 = vpop.f32.mrf.mxu0
      %v702 = vadd.f32 0.0, %v701
      %v703 = vpop.f32.mrf.mxu0
      %v704 = vadd.f32 0.0, %v703
      %v705 = vpop.f32.mrf.mxu0
      %v706 = vadd.f32 0.0, %v705
      %v707 = vpop.f32.mrf.mxu0
      %v708 = vadd.f32 0.0, %v707
      %709 = vmatprep.mubr.bf16.mxu0 0
      %710 = vmatmul.mubr.bf16.gmra.mxu0 %v565
      %v711 = vpop.f32.mrf.mxu0
      %v712 = vadd.f32 0.0, %v711
      %v713 = vpop.f32.mrf.mxu0
      %v714 = vadd.f32 0.0, %v713
      %v715 = vpop.f32.mrf.mxu0
      %v716 = vadd.f32 0.0, %v715
      %v717 = vpop.f32.mrf.mxu0
      %v718 = vadd.f32 0.0, %v717
      %719 = vmatprep.mubr.bf16.mxu0 0
      %720 = vmatmul.mubr.bf16.gmra.mxu0 %v568
      %v721 = vpop.f32.mrf.mxu0
      %v722 = vadd.f32 0.0, %v721
      %v723 = vpop.f32.mrf.mxu0
      %v724 = vadd.f32 0.0, %v723
      %v725 = vpop.f32.mrf.mxu0
      %v726 = vadd.f32 0.0, %v725
      %v727 = vpop.f32.mrf.mxu0
      %v728 = vadd.f32 0.0, %v727
      %729 = vdwg.mxu0
      %v734 = vunpack.c.l.b16 %v381
      %v735 = vunpack.c.h.b16 %v381
      %v736 = vunpack.c.l.b16 %v382
      %v737 = vunpack.c.h.b16 %v382
      %v738 = vunpack.c.l.b16 %v383
      %v739 = vunpack.c.h.b16 %v383
      %v740 = vunpack.c.l.b16 %v384
      %v741 = vunpack.c.h.b16 %v384
      %v742 = vpack.c.b16 %v736, %v734
      %v743 = vpack.c.b16 %v737, %v735
      %v744 = vpack.c.b16 %v740, %v738
      %v745 = vpack.c.b16 %v741, %v739
      %v749 = vsel %vm533, %v369, 0
      %v752 = vsel %vm533, %v370, 0
      %v755 = vsel %vm533, %v371, 0
      %v758 = vsel %vm533, %v372, 0
      %v761 = vsel %vm533, %v373, 0
      %v764 = vsel %vm533, %v374, 0
      %v767 = vsel %vm533, %v375, 0
      %v770 = vsel %vm533, %v376, 0
      %v773 = vsel %vm533, %v377, 0
      %v776 = vsel %vm533, %v378, 0
      %v779 = vsel %vm533, %v379, 0
      %v782 = vsel %vm533, %v380, 0
      %v785 = vsel %vm570, %v744, 0
      %v788 = vsel %vm570, %v745, 0
      %790 = vmatprep.subr.bf16.mxu0 0
      %791 = vmatpush1.bf16.msra.mxu0 0
      %792 = vmatprep.subr.bf16.mxu0 0
      %793 = vmatpush1.bf16.msra.mxu0 0
      %794 = vmatprep.subr.bf16.mxu0 0
      %795 = vmatpush1.bf16.msra.mxu0 0
      %796 = vmatprep.subr.bf16.mxu0 0
      %797 = vmatpush1.bf16.msra.mxu0 0
      %798 = vmatprep.subr.bf16.mxu0 0
      %799 = vmatpush1.bf16.msra.mxu0 0
      %800 = vmatprep.subr.bf16.mxu0 0
      %801 = vmatpush1.bf16.msra.mxu0 0
      %802 = vmatprep.subr.bf16.mxu0 %v788
      %803 = vmatpush1.bf16.msra.mxu0 %v785
      %804 = vmatprep.subr.bf16.mxu0 %v743
      %805 = vmatpush1.bf16.msra.mxu0 %v742
      %806 = vmatprep.subr.bf16.mxu0 0
      %807 = vmatpush2.bf16.msra.mxu0 0
      %808 = vmatprep.subr.bf16.mxu0 0
      %809 = vmatpush2.bf16.msra.mxu0 0
      %810 = vmatprep.subr.bf16.mxu0 0
      %811 = vmatpush2.bf16.msra.mxu0 0
      %812 = vmatprep.subr.bf16.mxu0 0
      %813 = vmatpush2.bf16.msra.mxu0 0
      %814 = vmatprep.subr.bf16.mxu0 0
      %815 = vmatpush2.bf16.msra.mxu0 0
      %816 = vmatprep.subr.bf16.mxu0 0
      %817 = vmatpush2.bf16.msra.mxu0 0
      %818 = vmatprep.subr.bf16.mxu0 0
      %819 = vmatpush2.bf16.msra.mxu0 0
      %820 = vmatprep.subr.bf16.mxu0 0
      %821 = vmatpush2.bf16.msra.mxu0 0
      %822 = vmatprep.mubr.bf16.mxu0 0
      %823 = vmatmul.mubr.bf16.gmra.mxu0 %v749
      %v824 = vpop.f32.mrf.mxu0
      %v825 = vadd.f32 %v612, %v824
      %v826 = vpop.f32.mrf.mxu0
      %v827 = vadd.f32 %v614, %v826
      %v828 = vpop.f32.mrf.mxu0
      %v829 = vadd.f32 %v616, %v828
      %v830 = vpop.f32.mrf.mxu0
      %v831 = vadd.f32 %v618, %v830
      %832 = vmatprep.mubr.bf16.mxu0 0
      %833 = vmatmul.mubr.bf16.gmra.mxu0 %v752
      %v834 = vpop.f32.mrf.mxu0
      %v835 = vadd.f32 %v622, %v834
      %v836 = vpop.f32.mrf.mxu0
      %v837 = vadd.f32 %v624, %v836
      %v838 = vpop.f32.mrf.mxu0
      %v839 = vadd.f32 %v626, %v838
      %v840 = vpop.f32.mrf.mxu0
      %v841 = vadd.f32 %v628, %v840
      %842 = vmatprep.mubr.bf16.mxu0 0
      %843 = vmatmul.mubr.bf16.gmra.mxu0 %v755
      %v844 = vpop.f32.mrf.mxu0
      %v845 = vadd.f32 %v632, %v844
      %v846 = vpop.f32.mrf.mxu0
      %v847 = vadd.f32 %v634, %v846
      %v848 = vpop.f32.mrf.mxu0
      %v849 = vadd.f32 %v636, %v848
      %v850 = vpop.f32.mrf.mxu0
      %v851 = vadd.f32 %v638, %v850
      %852 = vmatprep.mubr.bf16.mxu0 0
      %853 = vmatmul.mubr.bf16.gmra.mxu0 %v758
      %v854 = vpop.f32.mrf.mxu0
      %v855 = vadd.f32 %v642, %v854
      %v856 = vpop.f32.mrf.mxu0
      %v857 = vadd.f32 %v644, %v856
      %v858 = vpop.f32.mrf.mxu0
      %v859 = vadd.f32 %v646, %v858
      %v860 = vpop.f32.mrf.mxu0
      %v861 = vadd.f32 %v648, %v860
      %862 = vmatprep.mubr.bf16.mxu0 0
      %863 = vmatmul.mubr.bf16.gmra.mxu0 %v761
      %v864 = vpop.f32.mrf.mxu0
      %v865 = vadd.f32 %v652, %v864
      %v866 = vpop.f32.mrf.mxu0
      %v867 = vadd.f32 %v654, %v866
      %v868 = vpop.f32.mrf.mxu0
      %v869 = vadd.f32 %v656, %v868
      %v870 = vpop.f32.mrf.mxu0
      %v871 = vadd.f32 %v658, %v870
      %872 = vmatprep.mubr.bf16.mxu0 0
      %873 = vmatmul.mubr.bf16.gmra.mxu0 %v764
      %v874 = vpop.f32.mrf.mxu0
      %v875 = vadd.f32 %v662, %v874
      %v876 = vpop.f32.mrf.mxu0
      %v877 = vadd.f32 %v664, %v876
      %v878 = vpop.f32.mrf.mxu0
      %v879 = vadd.f32 %v666, %v878
      %v880 = vpop.f32.mrf.mxu0
      %v881 = vadd.f32 %v668, %v880
      %882 = vmatprep.mubr.bf16.mxu0 0
      %883 = vmatmul.mubr.bf16.gmra.mxu0 %v767
      %v884 = vpop.f32.mrf.mxu0
      %v885 = vadd.f32 %v672, %v884
      %v886 = vpop.f32.mrf.mxu0
      %v887 = vadd.f32 %v674, %v886
      %v888 = vpop.f32.mrf.mxu0
      %v889 = vadd.f32 %v676, %v888
      %v890 = vpop.f32.mrf.mxu0
      %v891 = vadd.f32 %v678, %v890
      %892 = vmatprep.mubr.bf16.mxu0 0
      %893 = vmatmul.mubr.bf16.gmra.mxu0 %v770
      %v894 = vpop.f32.mrf.mxu0
      %v895 = vadd.f32 %v682, %v894
      %v896 = vpop.f32.mrf.mxu0
      %v897 = vadd.f32 %v684, %v896
      %v898 = vpop.f32.mrf.mxu0
      %v899 = vadd.f32 %v686, %v898
      %v900 = vpop.f32.mrf.mxu0
      %v901 = vadd.f32 %v688, %v900
      %902 = vmatprep.mubr.bf16.mxu0 0
      %903 = vmatmul.mubr.bf16.gmra.mxu0 %v773
      %v904 = vpop.f32.mrf.mxu0
      %v905 = vadd.f32 %v692, %v904
      %v906 = vpop.f32.mrf.mxu0
      %v907 = vadd.f32 %v694, %v906
      %v908 = vpop.f32.mrf.mxu0
      %v909 = vadd.f32 %v696, %v908
      %v910 = vpop.f32.mrf.mxu0
      %v911 = vadd.f32 %v698, %v910
      %912 = vmatprep.mubr.bf16.mxu0 0
      %913 = vmatmul.mubr.bf16.gmra.mxu0 %v776
      %v914 = vpop.f32.mrf.mxu0
      %v915 = vadd.f32 %v702, %v914
      %v916 = vpop.f32.mrf.mxu0
      %v917 = vadd.f32 %v704, %v916
      %v918 = vpop.f32.mrf.mxu0
      %v919 = vadd.f32 %v706, %v918
      %v920 = vpop.f32.mrf.mxu0
      %v921 = vadd.f32 %v708, %v920
      %922 = vmatprep.mubr.bf16.mxu0 0
      %923 = vmatmul.mubr.bf16.gmra.mxu0 %v779
      %v924 = vpop.f32.mrf.mxu0
      %v925 = vadd.f32 %v712, %v924
      %v926 = vpop.f32.mrf.mxu0
      %v927 = vadd.f32 %v714, %v926
      %v928 = vpop.f32.mrf.mxu0
      %v929 = vadd.f32 %v716, %v928
      %v930 = vpop.f32.mrf.mxu0
      %v931 = vadd.f32 %v718, %v930
      %932 = vmatprep.mubr.bf16.mxu0 0
      %933 = vmatmul.mubr.bf16.gmra.mxu0 %v782
      %v934 = vpop.f32.mrf.mxu0
      %v935 = vadd.f32 %v722, %v934
      %v936 = vpop.f32.mrf.mxu0
      %v937 = vadd.f32 %v724, %v936
      %v938 = vpop.f32.mrf.mxu0
      %v939 = vadd.f32 %v726, %v938
      %v940 = vpop.f32.mrf.mxu0
      %v941 = vadd.f32 %v728, %v940
      %942 = vdwg.mxu0
      %v943 = vrot.slane %v337, 2
      %v944 = vrot.slane %v338, 2
      %v945 = vsel %vm570, %v943, %v944
      %v946 = vrot.slane %v339, 2
      %v947 = vsel %vm570, %v944, %v946
      %v948 = vrot.slane %v340, 2
      %v949 = vsel %vm570, %v946, %v948
      %v950 = vrot.slane %v341, 2
      %v951 = vrot.slane %v342, 2
      %v952 = vsel %vm570, %v950, %v951
      %v953 = vrot.slane %v343, 2
      %v954 = vsel %vm570, %v951, %v953
      %v955 = vrot.slane %v344, 2
      %v956 = vsel %vm570, %v953, %v955
      %v957 = vrot.slane %v345, 2
      %v958 = vrot.slane %v346, 2
      %v959 = vsel %vm570, %v957, %v958
      %v960 = vrot.slane %v347, 2
      %v961 = vsel %vm570, %v958, %v960
      %v962 = vrot.slane %v348, 2
      %v963 = vsel %vm570, %v960, %v962
      %v964 = vrot.slane %v349, 2
      %v965 = vrot.slane %v350, 2
      %v966 = vsel %vm570, %v964, %v965
      %v967 = vrot.slane %v351, 2
      %v968 = vsel %vm570, %v965, %v967
      %v969 = vrot.slane %v352, 2
      %v970 = vsel %vm570, %v967, %v969
      %v971 = vrot.slane %v353, 2
      %v972 = vrot.slane %v354, 2
      %v973 = vsel %vm570, %v971, %v972
      %v974 = vrot.slane %v355, 2
      %v975 = vsel %vm570, %v972, %v974
      %v976 = vrot.slane %v356, 2
      %v977 = vsel %vm570, %v974, %v976
      %v978 = vrot.slane %v357, 2
      %v979 = vrot.slane %v358, 2
      %v980 = vsel %vm570, %v978, %v979
      %v981 = vrot.slane %v359, 2
      %v982 = vsel %vm570, %v979, %v981
      %v983 = vrot.slane %v360, 2
      %v984 = vsel %vm570, %v981, %v983
      %v985 = vrot.slane %v361, 2
      %v986 = vrot.slane %v362, 2
      %v987 = vsel %vm570, %v985, %v986
      %v988 = vrot.slane %v363, 2
      %v989 = vsel %vm570, %v986, %v988
      %v990 = vrot.slane %v364, 2
      %v991 = vsel %vm570, %v988, %v990
      %v992 = vrot.slane %v365, 2
      %v993 = vrot.slane %v366, 2
      %v994 = vsel %vm570, %v992, %v993
      %v995 = vrot.slane %v367, 2
      %v996 = vsel %vm570, %v993, %v995
      %v997 = vrot.slane %v368, 2
      %v998 = vsel %vm570, %v995, %v997
      %v1023 = vpack.c.bf16 %v947, %v945
      %v1024 = vpack.c.bf16 %v952, %v949
      %v1025 = vpack.c.bf16 %v956, %v954
      %v1026 = vpack.c.bf16 %v961, %v959
      %v1027 = vpack.c.bf16 %v966, %v963
      %v1028 = vpack.c.bf16 %v970, %v968
      %v1029 = vpack.c.bf16 %v975, %v973
      %v1030 = vpack.c.bf16 %v980, %v977
      %v1031 = vpack.c.bf16 %v984, %v982
      %v1032 = vpack.c.bf16 %v989, %v987
      %v1033 = vpack.c.bf16 %v994, %v991
      %v1034 = vpack.c.bf16 %v998, %v996
      %s1035 = scalar_lea.vmem %s1, 64
      %v1036 = vld [vmem:[%s1035] sm:$0xff]
      %v1037 = vld [vmem:[%s1035 + $0x8] sm:$0xff]
      %v1038 = vld [vmem:[%s1035 + $0x10] sm:$0xff]
      %v1039 = vld [vmem:[%s1035 + $0x18] sm:$0x33]
      %v1044 = vunpack.c.l.b16 %v1036
      %v1045 = vunpack.c.h.b16 %v1036
      %v1046 = vunpack.c.l.b16 %v1037
      %v1047 = vunpack.c.h.b16 %v1037
      %v1048 = vunpack.c.l.b16 %v1038
      %v1049 = vunpack.c.h.b16 %v1038
      %v1050 = vunpack.c.l.b16 %v1039
      %v1051 = vunpack.c.h.b16 %v1039
      %v1052 = vpack.c.b16 %v1046, %v1044
      %v1053 = vpack.c.b16 %v1047, %v1045
      %v1054 = vpack.c.b16 %v1050, %v1048
      %v1055 = vpack.c.b16 %v1051, %v1049
      %v1059 = vsel %vm533, %v1023, 0
      %v1062 = vsel %vm533, %v1024, 0
      %v1065 = vsel %vm533, %v1025, 0
      %v1068 = vsel %vm533, %v1026, 0
      %v1071 = vsel %vm533, %v1027, 0
      %v1074 = vsel %vm533, %v1028, 0
      %v1077 = vsel %vm533, %v1029, 0
      %v1080 = vsel %vm533, %v1030, 0
      %v1083 = vsel %vm533, %v1031, 0
      %v1086 = vsel %vm533, %v1032, 0
      %v1089 = vsel %vm533, %v1033, 0
      %v1092 = vsel %vm533, %v1034, 0
      %v1095 = vsel %vm570, %v1054, 0
      %v1098 = vsel %vm570, %v1055, 0
      %1100 = vmatprep.subr.bf16.mxu0 0
      %1101 = vmatpush1.bf16.msra.mxu0 0
      %1102 = vmatprep.subr.bf16.mxu0 0
      %1103 = vmatpush1.bf16.msra.mxu0 0
      %1104 = vmatprep.subr.bf16.mxu0 0
      %1105 = vmatpush1.bf16.msra.mxu0 0
      %1106 = vmatprep.subr.bf16.mxu0 0
      %1107 = vmatpush1.bf16.msra.mxu0 0
      %1108 = vmatprep.subr.bf16.mxu0 0
      %1109 = vmatpush1.bf16.msra.mxu0 0
      %1110 = vmatprep.subr.bf16.mxu0 0
      %1111 = vmatpush1.bf16.msra.mxu0 0
      %1112 = vmatprep.subr.bf16.mxu0 %v1098
      %1113 = vmatpush1.bf16.msra.mxu0 %v1095
      %1114 = vmatprep.subr.bf16.mxu0 %v1053
      %1115 = vmatpush1.bf16.msra.mxu0 %v1052
      %1116 = vmatprep.subr.bf16.mxu0 0
      %1117 = vmatpush2.bf16.msra.mxu0 0
      %1118 = vmatprep.subr.bf16.mxu0 0
      %1119 = vmatpush2.bf16.msra.mxu0 0
      %1120 = vmatprep.subr.bf16.mxu0 0
      %1121 = vmatpush2.bf16.msra.mxu0 0
      %1122 = vmatprep.subr.bf16.mxu0 0
      %1123 = vmatpush2.bf16.msra.mxu0 0
      %1124 = vmatprep.subr.bf16.mxu0 0
      %1125 = vmatpush2.bf16.msra.mxu0 0
      %1126 = vmatprep.subr.bf16.mxu0 0
      %1127 = vmatpush2.bf16.msra.mxu0 0
      %1128 = vmatprep.subr.bf16.mxu0 0
      %1129 = vmatpush2.bf16.msra.mxu0 0
      %1130 = vmatprep.subr.bf16.mxu0 0
      %1131 = vmatpush2.bf16.msra.mxu0 0
      %1132 = vmatprep.mubr.bf16.mxu0 0
      %1133 = vmatmul.mubr.bf16.gmra.mxu0 %v1059
      %v1134 = vpop.f32.mrf.mxu0
      %v1135 = vadd.f32 0.0, %v1134
      %v1136 = vpop.f32.mrf.mxu0
      %v1137 = vadd.f32 0.0, %v1136
      %v1138 = vpop.f32.mrf.mxu0
      %v1139 = vadd.f32 0.0, %v1138
      %v1140 = vpop.f32.mrf.mxu0
      %v1141 = vadd.f32 0.0, %v1140
      %1142 = vmatprep.mubr.bf16.mxu0 0
      %1143 = vmatmul.mubr.bf16.gmra.mxu0 %v1062
      %v1144 = vpop.f32.mrf.mxu0
      %v1145 = vadd.f32 0.0, %v1144
      %v1146 = vpop.f32.mrf.mxu0
      %v1147 = vadd.f32 0.0, %v1146
      %v1148 = vpop.f32.mrf.mxu0
      %v1149 = vadd.f32 0.0, %v1148
      %v1150 = vpop.f32.mrf.mxu0
      %v1151 = vadd.f32 0.0, %v1150
      %1152 = vmatprep.mubr.bf16.mxu0 0
      %1153 = vmatmul.mubr.bf16.gmra.mxu0 %v1065
      %v1154 = vpop.f32.mrf.mxu0
      %v1155 = vadd.f32 0.0, %v1154
      %v1156 = vpop.f32.mrf.mxu0
      %v1157 = vadd.f32 0.0, %v1156
      %v1158 = vpop.f32.mrf.mxu0
      %v1159 = vadd.f32 0.0, %v1158
      %v1160 = vpop.f32.mrf.mxu0
      %v1161 = vadd.f32 0.0, %v1160
      %1162 = vmatprep.mubr.bf16.mxu0 0
      %1163 = vmatmul.mubr.bf16.gmra.mxu0 %v1068
      %v1164 = vpop.f32.mrf.mxu0
      %v1165 = vadd.f32 0.0, %v1164
      %v1166 = vpop.f32.mrf.mxu0
      %v1167 = vadd.f32 0.0, %v1166
      %v1168 = vpop.f32.mrf.mxu0
      %v1169 = vadd.f32 0.0, %v1168
      %v1170 = vpop.f32.mrf.mxu0
      %v1171 = vadd.f32 0.0, %v1170
      %1172 = vmatprep.mubr.bf16.mxu0 0
      %1173 = vmatmul.mubr.bf16.gmra.mxu0 %v1071
      %v1174 = vpop.f32.mrf.mxu0
      %v1175 = vadd.f32 0.0, %v1174
      %v1176 = vpop.f32.mrf.mxu0
      %v1177 = vadd.f32 0.0, %v1176
      %v1178 = vpop.f32.mrf.mxu0
      %v1179 = vadd.f32 0.0, %v1178
      %v1180 = vpop.f32.mrf.mxu0
      %v1181 = vadd.f32 0.0, %v1180
      %1182 = vmatprep.mubr.bf16.mxu0 0
      %1183 = vmatmul.mubr.bf16.gmra.mxu0 %v1074
      %v1184 = vpop.f32.mrf.mxu0
      %v1185 = vadd.f32 0.0, %v1184
      %v1186 = vpop.f32.mrf.mxu0
      %v1187 = vadd.f32 0.0, %v1186
      %v1188 = vpop.f32.mrf.mxu0
      %v1189 = vadd.f32 0.0, %v1188
      %v1190 = vpop.f32.mrf.mxu0
      %v1191 = vadd.f32 0.0, %v1190
      %1192 = vmatprep.mubr.bf16.mxu0 0
      %1193 = vmatmul.mubr.bf16.gmra.mxu0 %v1077
      %v1194 = vpop.f32.mrf.mxu0
      %v1195 = vadd.f32 0.0, %v1194
      %v1196 = vpop.f32.mrf.mxu0
      %v1197 = vadd.f32 0.0, %v1196
      %v1198 = vpop.f32.mrf.mxu0
      %v1199 = vadd.f32 0.0, %v1198
      %v1200 = vpop.f32.mrf.mxu0
      %v1201 = vadd.f32 0.0, %v1200
      %1202 = vmatprep.mubr.bf16.mxu0 0
      %1203 = vmatmul.mubr.bf16.gmra.mxu0 %v1080
      %v1204 = vpop.f32.mrf.mxu0
      %v1205 = vadd.f32 0.0, %v1204
      %v1206 = vpop.f32.mrf.mxu0
      %v1207 = vadd.f32 0.0, %v1206
      %v1208 = vpop.f32.mrf.mxu0
      %v1209 = vadd.f32 0.0, %v1208
      %v1210 = vpop.f32.mrf.mxu0
      %v1211 = vadd.f32 0.0, %v1210
      %1212 = vmatprep.mubr.bf16.mxu0 0
      %1213 = vmatmul.mubr.bf16.gmra.mxu0 %v1083
      %v1214 = vpop.f32.mrf.mxu0
      %v1215 = vadd.f32 0.0, %v1214
      %v1216 = vpop.f32.mrf.mxu0
      %v1217 = vadd.f32 0.0, %v1216
      %v1218 = vpop.f32.mrf.mxu0
      %v1219 = vadd.f32 0.0, %v1218
      %v1220 = vpop.f32.mrf.mxu0
      %v1221 = vadd.f32 0.0, %v1220
      %1222 = vmatprep.mubr.bf16.mxu0 0
      %1223 = vmatmul.mubr.bf16.gmra.mxu0 %v1086
      %v1224 = vpop.f32.mrf.mxu0
      %v1225 = vadd.f32 0.0, %v1224
      %v1226 = vpop.f32.mrf.mxu0
      %v1227 = vadd.f32 0.0, %v1226
      %v1228 = vpop.f32.mrf.mxu0
      %v1229 = vadd.f32 0.0, %v1228
      %v1230 = vpop.f32.mrf.mxu0
      %v1231 = vadd.f32 0.0, %v1230
      %1232 = vmatprep.mubr.bf16.mxu0 0
      %1233 = vmatmul.mubr.bf16.gmra.mxu0 %v1089
      %v1234 = vpop.f32.mrf.mxu0
      %v1235 = vadd.f32 0.0, %v1234
      %v1236 = vpop.f32.mrf.mxu0
      %v1237 = vadd.f32 0.0, %v1236
      %v1238 = vpop.f32.mrf.mxu0
      %v1239 = vadd.f32 0.0, %v1238
      %v1240 = vpop.f32.mrf.mxu0
      %v1241 = vadd.f32 0.0, %v1240
      %1242 = vmatprep.mubr.bf16.mxu0 0
      %1243 = vmatmul.mubr.bf16.gmra.mxu0 %v1092
      %v1244 = vpop.f32.mrf.mxu0
      %v1245 = vadd.f32 0.0, %v1244
      %v1246 = vpop.f32.mrf.mxu0
      %v1247 = vadd.f32 0.0, %v1246
      %v1248 = vpop.f32.mrf.mxu0
      %v1249 = vadd.f32 0.0, %v1248
      %v1250 = vpop.f32.mrf.mxu0
      %v1251 = vadd.f32 0.0, %v1250
      %1252 = vdwg.mxu0
      %v1253 = vadd.f32 %v825, %v1135
      %v1254 = vadd.f32 %v827, %v1137
      %v1255 = vadd.f32 %v829, %v1139
      %v1256 = vadd.f32 %v831, %v1141
      %v1257 = vadd.f32 %v835, %v1145
      %v1258 = vadd.f32 %v837, %v1147
      %v1259 = vadd.f32 %v839, %v1149
      %v1260 = vadd.f32 %v841, %v1151
      %v1261 = vadd.f32 %v845, %v1155
      %v1262 = vadd.f32 %v847, %v1157
      %v1263 = vadd.f32 %v849, %v1159
      %v1264 = vadd.f32 %v851, %v1161
      %v1265 = vadd.f32 %v855, %v1165
      %v1266 = vadd.f32 %v857, %v1167
      %v1267 = vadd.f32 %v859, %v1169
      %v1268 = vadd.f32 %v861, %v1171
      %v1269 = vadd.f32 %v865, %v1175
      %v1270 = vadd.f32 %v867, %v1177
      %v1271 = vadd.f32 %v869, %v1179
      %v1272 = vadd.f32 %v871, %v1181
      %v1273 = vadd.f32 %v875, %v1185
      %v1274 = vadd.f32 %v877, %v1187
      %v1275 = vadd.f32 %v879, %v1189
      %v1276 = vadd.f32 %v881, %v1191
      %v1277 = vadd.f32 %v885, %v1195
      %v1278 = vadd.f32 %v887, %v1197
      %v1279 = vadd.f32 %v889, %v1199
      %v1280 = vadd.f32 %v891, %v1201
      %v1281 = vadd.f32 %v895, %v1205
      %v1282 = vadd.f32 %v897, %v1207
      %v1283 = vadd.f32 %v899, %v1209
      %v1284 = vadd.f32 %v901, %v1211
      %v1285 = vadd.f32 %v905, %v1215
      %v1286 = vadd.f32 %v907, %v1217
      %v1287 = vadd.f32 %v909, %v1219
      %v1288 = vadd.f32 %v911, %v1221
      %v1289 = vadd.f32 %v915, %v1225
      %v1290 = vadd.f32 %v917, %v1227
      %v1291 = vadd.f32 %v919, %v1229
      %v1292 = vadd.f32 %v921, %v1231
      %v1293 = vadd.f32 %v925, %v1235
      %v1294 = vadd.f32 %v927, %v1237
      %v1295 = vadd.f32 %v929, %v1239
      %v1296 = vadd.f32 %v931, %v1241
      %v1297 = vadd.f32 %v935, %v1245
      %v1298 = vadd.f32 %v937, %v1247
      %v1299 = vadd.f32 %v939, %v1249
      %v1300 = vadd.f32 %v941, %v1251
      %vm1301 = vcmask 1044480
      %v1302 = vrot.slane %v337, 3
      %v1303 = vrot.slane %v338, 3
      %v1304 = vsel %vm1301, %v1302, %v1303
      %v1305 = vrot.slane %v339, 3
      %v1306 = vsel %vm1301, %v1303, %v1305
      %v1307 = vrot.slane %v340, 3
      %v1308 = vsel %vm1301, %v1305, %v1307
      %v1309 = vrot.slane %v341, 3
      %v1310 = vrot.slane %v342, 3
      %v1311 = vsel %vm1301, %v1309, %v1310
      %v1312 = vrot.slane %v343, 3
      %v1313 = vsel %vm1301, %v1310, %v1312
      %v1314 = vrot.slane %v344, 3
      %v1315 = vsel %vm1301, %v1312, %v1314
      %v1316 = vrot.slane %v345, 3
      %v1317 = vrot.slane %v346, 3
      %v1318 = vsel %vm1301, %v1316, %v1317
      %v1319 = vrot.slane %v347, 3
      %v1320 = vsel %vm1301, %v1317, %v1319
      %v1321 = vrot.slane %v348, 3
      %v1322 = vsel %vm1301, %v1319, %v1321
      %v1323 = vrot.slane %v349, 3
      %v1324 = vrot.slane %v350, 3
      %v1325 = vsel %vm1301, %v1323, %v1324
      %v1326 = vrot.slane %v351, 3
      %v1327 = vsel %vm1301, %v1324, %v1326
      %v1328 = vrot.slane %v352, 3
      %v1329 = vsel %vm1301, %v1326, %v1328
      %v1330 = vrot.slane %v353, 3
      %v1331 = vrot.slane %v354, 3
      %v1332 = vsel %vm1301, %v1330, %v1331
      %v1333 = vrot.slane %v355, 3
      %v1334 = vsel %vm1301, %v1331, %v1333
      %v1335 = vrot.slane %v356, 3
      %v1336 = vsel %vm1301, %v1333, %v1335
      %v1337 = vrot.slane %v357, 3
      %v1338 = vrot.slane %v358, 3
      %v1339 = vsel %vm1301, %v1337, %v1338
      %v1340 = vrot.slane %v359, 3
      %v1341 = vsel %vm1301, %v1338, %v1340
      %v1342 = vrot.slane %v360, 3
      %v1343 = vsel %vm1301, %v1340, %v1342
      %v1344 = vrot.slane %v361, 3
      %v1345 = vrot.slane %v362, 3
      %v1346 = vsel %vm1301, %v1344, %v1345
      %v1347 = vrot.slane %v363, 3
      %v1348 = vsel %vm1301, %v1345, %v1347
      %v1349 = vrot.slane %v364, 3
      %v1350 = vsel %vm1301, %v1347, %v1349
      %v1351 = vrot.slane %v365, 3
      %v1352 = vrot.slane %v366, 3
      %v1353 = vsel %vm1301, %v1351, %v1352
      %v1354 = vrot.slane %v367, 3
      %v1355 = vsel %vm1301, %v1352, %v1354
      %v1356 = vrot.slane %v368, 3
      %v1357 = vsel %vm1301, %v1354, %v1356
      %v1382 = vpack.c.bf16 %v1306, %v1304
      %v1383 = vpack.c.bf16 %v1311, %v1308
      %v1384 = vpack.c.bf16 %v1315, %v1313
      %v1385 = vpack.c.bf16 %v1320, %v1318
      %v1386 = vpack.c.bf16 %v1325, %v1322
      %v1387 = vpack.c.bf16 %v1329, %v1327
      %v1388 = vpack.c.bf16 %v1334, %v1332
      %v1389 = vpack.c.bf16 %v1339, %v1336
      %v1390 = vpack.c.bf16 %v1343, %v1341
      %v1391 = vpack.c.bf16 %v1348, %v1346
      %v1392 = vpack.c.bf16 %v1353, %v1350
      %v1393 = vpack.c.bf16 %v1357, %v1355
      %s1394 = scalar_lea.vmem %s1, 96
      %v1395 = vld [vmem:[%s1394] sm:$0xff]
      %v1396 = vld [vmem:[%s1394 + $0x8] sm:$0xff]
      %v1397 = vld [vmem:[%s1394 + $0x10] sm:$0xff]
      %v1398 = vld [vmem:[%s1394 + $0x18] sm:$0x33]
      %v1403 = vunpack.c.l.b16 %v1395
      %v1404 = vunpack.c.h.b16 %v1395
      %v1405 = vunpack.c.l.b16 %v1396
      %v1406 = vunpack.c.h.b16 %v1396
      %v1407 = vunpack.c.l.b16 %v1397
      %v1408 = vunpack.c.h.b16 %v1397
      %v1409 = vunpack.c.l.b16 %v1398
      %v1410 = vunpack.c.h.b16 %v1398
      %v1411 = vpack.c.b16 %v1405, %v1403
      %v1412 = vpack.c.b16 %v1406, %v1404
      %v1413 = vpack.c.b16 %v1409, %v1407
      %v1414 = vpack.c.b16 %v1410, %v1408
      %v1418 = vsel %vm533, %v1382, 0
      %v1421 = vsel %vm533, %v1383, 0
      %v1424 = vsel %vm533, %v1384, 0
      %v1427 = vsel %vm533, %v1385, 0
      %v1430 = vsel %vm533, %v1386, 0
      %v1433 = vsel %vm533, %v1387, 0
      %v1436 = vsel %vm533, %v1388, 0
      %v1439 = vsel %vm533, %v1389, 0
      %v1442 = vsel %vm533, %v1390, 0
      %v1445 = vsel %vm533, %v1391, 0
      %v1448 = vsel %vm533, %v1392, 0
      %v1451 = vsel %vm533, %v1393, 0
      %v1454 = vsel %vm570, %v1413, 0
      %v1457 = vsel %vm570, %v1414, 0
      %1459 = vmatprep.subr.bf16.mxu0 0
      %1460 = vmatpush1.bf16.msra.mxu0 0
      %1461 = vmatprep.subr.bf16.mxu0 0
      %1462 = vmatpush1.bf16.msra.mxu0 0
      %1463 = vmatprep.subr.bf16.mxu0 0
      %1464 = vmatpush1.bf16.msra.mxu0 0
      %1465 = vmatprep.subr.bf16.mxu0 0
      %1466 = vmatpush1.bf16.msra.mxu0 0
      %1467 = vmatprep.subr.bf16.mxu0 0
      %1468 = vmatpush1.bf16.msra.mxu0 0
      %1469 = vmatprep.subr.bf16.mxu0 0
      %1470 = vmatpush1.bf16.msra.mxu0 0
      %1471 = vmatprep.subr.bf16.mxu0 %v1457
      %1472 = vmatpush1.bf16.msra.mxu0 %v1454
      %1473 = vmatprep.subr.bf16.mxu0 %v1412
      %1474 = vmatpush1.bf16.msra.mxu0 %v1411
      %1475 = vmatprep.subr.bf16.mxu0 0
      %1476 = vmatpush2.bf16.msra.mxu0 0
      %1477 = vmatprep.subr.bf16.mxu0 0
      %1478 = vmatpush2.bf16.msra.mxu0 0
      %1479 = vmatprep.subr.bf16.mxu0 0
      %1480 = vmatpush2.bf16.msra.mxu0 0
      %1481 = vmatprep.subr.bf16.mxu0 0
      %1482 = vmatpush2.bf16.msra.mxu0 0
      %1483 = vmatprep.subr.bf16.mxu0 0
      %1484 = vmatpush2.bf16.msra.mxu0 0
      %1485 = vmatprep.subr.bf16.mxu0 0
      %1486 = vmatpush2.bf16.msra.mxu0 0
      %1487 = vmatprep.subr.bf16.mxu0 0
      %1488 = vmatpush2.bf16.msra.mxu0 0
      %1489 = vmatprep.subr.bf16.mxu0 0
      %1490 = vmatpush2.bf16.msra.mxu0 0
      %1491 = vmatprep.mubr.bf16.mxu0 0
      %1492 = vmatmul.mubr.bf16.gmra.mxu0 %v1418
      %v1493 = vpop.f32.mrf.mxu0
      %v1494 = vadd.f32 0.0, %v1493
      %v1495 = vpop.f32.mrf.mxu0
      %v1496 = vadd.f32 0.0, %v1495
      %v1497 = vpop.f32.mrf.mxu0
      %v1498 = vadd.f32 0.0, %v1497
      %v1499 = vpop.f32.mrf.mxu0
      %v1500 = vadd.f32 0.0, %v1499
      %1501 = vmatprep.mubr.bf16.mxu0 0
      %1502 = vmatmul.mubr.bf16.gmra.mxu0 %v1421
      %v1503 = vpop.f32.mrf.mxu0
      %v1504 = vadd.f32 0.0, %v1503
      %v1505 = vpop.f32.mrf.mxu0
      %v1506 = vadd.f32 0.0, %v1505
      %v1507 = vpop.f32.mrf.mxu0
      %v1508 = vadd.f32 0.0, %v1507
      %v1509 = vpop.f32.mrf.mxu0
      %v1510 = vadd.f32 0.0, %v1509
      %1511 = vmatprep.mubr.bf16.mxu0 0
      %1512 = vmatmul.mubr.bf16.gmra.mxu0 %v1424
      %v1513 = vpop.f32.mrf.mxu0
      %v1514 = vadd.f32 0.0, %v1513
      %v1515 = vpop.f32.mrf.mxu0
      %v1516 = vadd.f32 0.0, %v1515
      %v1517 = vpop.f32.mrf.mxu0
      %v1518 = vadd.f32 0.0, %v1517
      %v1519 = vpop.f32.mrf.mxu0
      %v1520 = vadd.f32 0.0, %v1519
      %1521 = vmatprep.mubr.bf16.mxu0 0
      %1522 = vmatmul.mubr.bf16.gmra.mxu0 %v1427
      %v1523 = vpop.f32.mrf.mxu0
      %v1524 = vadd.f32 0.0, %v1523
      %v1525 = vpop.f32.mrf.mxu0
      %v1526 = vadd.f32 0.0, %v1525
      %v1527 = vpop.f32.mrf.mxu0
      %v1528 = vadd.f32 0.0, %v1527
      %v1529 = vpop.f32.mrf.mxu0
      %v1530 = vadd.f32 0.0, %v1529
      %1531 = vmatprep.mubr.bf16.mxu0 0
      %1532 = vmatmul.mubr.bf16.gmra.mxu0 %v1430
      %v1533 = vpop.f32.mrf.mxu0
      %v1534 = vadd.f32 0.0, %v1533
      %v1535 = vpop.f32.mrf.mxu0
      %v1536 = vadd.f32 0.0, %v1535
      %v1537 = vpop.f32.mrf.mxu0
      %v1538 = vadd.f32 0.0, %v1537
      %v1539 = vpop.f32.mrf.mxu0
      %v1540 = vadd.f32 0.0, %v1539
      %1541 = vmatprep.mubr.bf16.mxu0 0
      %1542 = vmatmul.mubr.bf16.gmra.mxu0 %v1433
      %v1543 = vpop.f32.mrf.mxu0
      %v1544 = vadd.f32 0.0, %v1543
      %v1545 = vpop.f32.mrf.mxu0
      %v1546 = vadd.f32 0.0, %v1545
      %v1547 = vpop.f32.mrf.mxu0
      %v1548 = vadd.f32 0.0, %v1547
      %v1549 = vpop.f32.mrf.mxu0
      %v1550 = vadd.f32 0.0, %v1549
      %1551 = vmatprep.mubr.bf16.mxu0 0
      %1552 = vmatmul.mubr.bf16.gmra.mxu0 %v1436
      %v1553 = vpop.f32.mrf.mxu0
      %v1554 = vadd.f32 0.0, %v1553
      %v1555 = vpop.f32.mrf.mxu0
      %v1556 = vadd.f32 0.0, %v1555
      %v1557 = vpop.f32.mrf.mxu0
      %v1558 = vadd.f32 0.0, %v1557
      %v1559 = vpop.f32.mrf.mxu0
      %v1560 = vadd.f32 0.0, %v1559
      %1561 = vmatprep.mubr.bf16.mxu0 0
      %1562 = vmatmul.mubr.bf16.gmra.mxu0 %v1439
      %v1563 = vpop.f32.mrf.mxu0
      %v1564 = vadd.f32 0.0, %v1563
      %v1565 = vpop.f32.mrf.mxu0
      %v1566 = vadd.f32 0.0, %v1565
      %v1567 = vpop.f32.mrf.mxu0
      %v1568 = vadd.f32 0.0, %v1567
      %v1569 = vpop.f32.mrf.mxu0
      %v1570 = vadd.f32 0.0, %v1569
      %1571 = vmatprep.mubr.bf16.mxu0 0
      %1572 = vmatmul.mubr.bf16.gmra.mxu0 %v1442
      %v1573 = vpop.f32.mrf.mxu0
      %v1574 = vadd.f32 0.0, %v1573
      %v1575 = vpop.f32.mrf.mxu0
      %v1576 = vadd.f32 0.0, %v1575
      %v1577 = vpop.f32.mrf.mxu0
      %v1578 = vadd.f32 0.0, %v1577
      %v1579 = vpop.f32.mrf.mxu0
      %v1580 = vadd.f32 0.0, %v1579
      %1581 = vmatprep.mubr.bf16.mxu0 0
      %1582 = vmatmul.mubr.bf16.gmra.mxu0 %v1445
      %v1583 = vpop.f32.mrf.mxu0
      %v1584 = vadd.f32 0.0, %v1583
      %v1585 = vpop.f32.mrf.mxu0
      %v1586 = vadd.f32 0.0, %v1585
      %v1587 = vpop.f32.mrf.mxu0
      %v1588 = vadd.f32 0.0, %v1587
      %v1589 = vpop.f32.mrf.mxu0
      %v1590 = vadd.f32 0.0, %v1589
      %1591 = vmatprep.mubr.bf16.mxu0 0
      %1592 = vmatmul.mubr.bf16.gmra.mxu0 %v1448
      %v1593 = vpop.f32.mrf.mxu0
      %v1594 = vadd.f32 0.0, %v1593
      %v1595 = vpop.f32.mrf.mxu0
      %v1596 = vadd.f32 0.0, %v1595
      %v1597 = vpop.f32.mrf.mxu0
      %v1598 = vadd.f32 0.0, %v1597
      %v1599 = vpop.f32.mrf.mxu0
      %v1600 = vadd.f32 0.0, %v1599
      %1601 = vmatprep.mubr.bf16.mxu0 0
      %1602 = vmatmul.mubr.bf16.gmra.mxu0 %v1451
      %v1603 = vpop.f32.mrf.mxu0
      %v1604 = vadd.f32 0.0, %v1603
      %v1605 = vpop.f32.mrf.mxu0
      %v1606 = vadd.f32 0.0, %v1605
      %v1607 = vpop.f32.mrf.mxu0
      %v1608 = vadd.f32 0.0, %v1607
      %v1609 = vpop.f32.mrf.mxu0
      %v1610 = vadd.f32 0.0, %v1609
      %1611 = vdwg.mxu0
      %v1612 = vadd.f32 %v1253, %v1494
      %v1613 = vadd.f32 %v1254, %v1496
      %v1614 = vadd.f32 %v1255, %v1498
      %v1615 = vadd.f32 %v1256, %v1500
      %v1616 = vadd.f32 %v1257, %v1504
      %v1617 = vadd.f32 %v1258, %v1506
      %v1618 = vadd.f32 %v1259, %v1508
      %v1619 = vadd.f32 %v1260, %v1510
      %v1620 = vadd.f32 %v1261, %v1514
      %v1621 = vadd.f32 %v1262, %v1516
      %v1622 = vadd.f32 %v1263, %v1518
      %v1623 = vadd.f32 %v1264, %v1520
      %v1624 = vadd.f32 %v1265, %v1524
      %v1625 = vadd.f32 %v1266, %v1526
      %v1626 = vadd.f32 %v1267, %v1528
      %v1627 = vadd.f32 %v1268, %v1530
      %v1628 = vadd.f32 %v1269, %v1534
      %v1629 = vadd.f32 %v1270, %v1536
      %v1630 = vadd.f32 %v1271, %v1538
      %v1631 = vadd.f32 %v1272, %v1540
      %v1632 = vadd.f32 %v1273, %v1544
      %v1633 = vadd.f32 %v1274, %v1546
      %v1634 = vadd.f32 %v1275, %v1548
      %v1635 = vadd.f32 %v1276, %v1550
      %v1636 = vadd.f32 %v1277, %v1554
      %v1637 = vadd.f32 %v1278, %v1556
      %v1638 = vadd.f32 %v1279, %v1558
      %v1639 = vadd.f32 %v1280, %v1560
      %v1640 = vadd.f32 %v1281, %v1564
      %v1641 = vadd.f32 %v1282, %v1566
      %v1642 = vadd.f32 %v1283, %v1568
      %v1643 = vadd.f32 %v1284, %v1570
      %v1644 = vadd.f32 %v1285, %v1574
      %v1645 = vadd.f32 %v1286, %v1576
      %v1646 = vadd.f32 %v1287, %v1578
      %v1647 = vadd.f32 %v1288, %v1580
      %v1648 = vadd.f32 %v1289, %v1584
      %v1649 = vadd.f32 %v1290, %v1586
      %v1650 = vadd.f32 %v1291, %v1588
      %v1651 = vadd.f32 %v1292, %v1590
      %v1652 = vadd.f32 %v1293, %v1594
      %v1653 = vadd.f32 %v1294, %v1596
      %v1654 = vadd.f32 %v1295, %v1598
      %v1655 = vadd.f32 %v1296, %v1600
      %v1656 = vadd.f32 %v1297, %v1604
      %v1657 = vadd.f32 %v1298, %v1606
      %v1658 = vadd.f32 %v1299, %v1608
      %v1659 = vadd.f32 %v1300, %v1610
      %vm1660 = vcmask 1043456
      %v1661 = vrot.slane %v337, 4
      %v1662 = vrot.slane %v338, 4
      %v1663 = vsel %vm1660, %v1661, %v1662
      %v1664 = vrot.slane %v339, 4
      %v1665 = vsel %vm1660, %v1662, %v1664
      %v1666 = vrot.slane %v340, 4
      %v1667 = vsel %vm1660, %v1664, %v1666
      %v1668 = vrot.slane %v341, 4
      %v1669 = vrot.slane %v342, 4
      %v1670 = vsel %vm1660, %v1668, %v1669
      %v1671 = vrot.slane %v343, 4
      %v1672 = vsel %vm1660, %v1669, %v1671
      %v1673 = vrot.slane %v344, 4
      %v1674 = vsel %vm1660, %v1671, %v1673
      %v1675 = vrot.slane %v345, 4
      %v1676 = vrot.slane %v346, 4
      %v1677 = vsel %vm1660, %v1675, %v1676
      %v1678 = vrot.slane %v347, 4
      %v1679 = vsel %vm1660, %v1676, %v1678
      %v1680 = vrot.slane %v348, 4
      %v1681 = vsel %vm1660, %v1678, %v1680
      %v1682 = vrot.slane %v349, 4
      %v1683 = vrot.slane %v350, 4
      %v1684 = vsel %vm1660, %v1682, %v1683
      %v1685 = vrot.slane %v351, 4
      %v1686 = vsel %vm1660, %v1683, %v1685
      %v1687 = vrot.slane %v352, 4
      %v1688 = vsel %vm1660, %v1685, %v1687
      %v1689 = vrot.slane %v353, 4
      %v1690 = vrot.slane %v354, 4
      %v1691 = vsel %vm1660, %v1689, %v1690
      %v1692 = vrot.slane %v355, 4
      %v1693 = vsel %vm1660, %v1690, %v1692
      %v1694 = vrot.slane %v356, 4
      %v1695 = vsel %vm1660, %v1692, %v1694
      %v1696 = vrot.slane %v357, 4
      %v1697 = vrot.slane %v358, 4
      %v1698 = vsel %vm1660, %v1696, %v1697
      %v1699 = vrot.slane %v359, 4
      %v1700 = vsel %vm1660, %v1697, %v1699
      %v1701 = vrot.slane %v360, 4
      %v1702 = vsel %vm1660, %v1699, %v1701
      %v1703 = vrot.slane %v361, 4
      %v1704 = vrot.slane %v362, 4
      %v1705 = vsel %vm1660, %v1703, %v1704
      %v1706 = vrot.slane %v363, 4
      %v1707 = vsel %vm1660, %v1704, %v1706
      %v1708 = vrot.slane %v364, 4
      %v1709 = vsel %vm1660, %v1706, %v1708
      %v1710 = vrot.slane %v365, 4
      %v1711 = vrot.slane %v366, 4
      %v1712 = vsel %vm1660, %v1710, %v1711
      %v1713 = vrot.slane %v367, 4
      %v1714 = vsel %vm1660, %v1711, %v1713
      %v1715 = vrot.slane %v368, 4
      %v1716 = vsel %vm1660, %v1713, %v1715
      %v1741 = vpack.c.bf16 %v1665, %v1663
      %v1742 = vpack.c.bf16 %v1670, %v1667
      %v1743 = vpack.c.bf16 %v1674, %v1672
      %v1744 = vpack.c.bf16 %v1679, %v1677
      %v1745 = vpack.c.bf16 %v1684, %v1681
      %v1746 = vpack.c.bf16 %v1688, %v1686
      %v1747 = vpack.c.bf16 %v1693, %v1691
      %v1748 = vpack.c.bf16 %v1698, %v1695
      %v1749 = vpack.c.bf16 %v1702, %v1700
      %v1750 = vpack.c.bf16 %v1707, %v1705
      %v1751 = vpack.c.bf16 %v1712, %v1709
      %v1752 = vpack.c.bf16 %v1716, %v1714
      %s1753 = scalar_lea.vmem %s1, 128
      %v1754 = vld [vmem:[%s1753] sm:$0xff]
      %v1755 = vld [vmem:[%s1753 + $0x8] sm:$0xff]
      %v1756 = vld [vmem:[%s1753 + $0x10] sm:$0xff]
      %v1757 = vld [vmem:[%s1753 + $0x18] sm:$0x33]
      %v1762 = vunpack.c.l.b16 %v1754
      %v1763 = vunpack.c.h.b16 %v1754
      %v1764 = vunpack.c.l.b16 %v1755
      %v1765 = vunpack.c.h.b16 %v1755
      %v1766 = vunpack.c.l.b16 %v1756
      %v1767 = vunpack.c.h.b16 %v1756
      %v1768 = vunpack.c.l.b16 %v1757
      %v1769 = vunpack.c.h.b16 %v1757
      %v1770 = vpack.c.b16 %v1764, %v1762
      %v1771 = vpack.c.b16 %v1765, %v1763
      %v1772 = vpack.c.b16 %v1768, %v1766
      %v1773 = vpack.c.b16 %v1769, %v1767
      %v1777 = vsel %vm533, %v1741, 0
      %v1780 = vsel %vm533, %v1742, 0
      %v1783 = vsel %vm533, %v1743, 0
      %v1786 = vsel %vm533, %v1744, 0
      %v1789 = vsel %vm533, %v1745, 0
      %v1792 = vsel %vm533, %v1746, 0
      %v1795 = vsel %vm533, %v1747, 0
      %v1798 = vsel %vm533, %v1748, 0
      %v1801 = vsel %vm533, %v1749, 0
      %v1804 = vsel %vm533, %v1750, 0
      %v1807 = vsel %vm533, %v1751, 0
      %v1810 = vsel %vm533, %v1752, 0
      %v1813 = vsel %vm570, %v1772, 0
      %v1816 = vsel %vm570, %v1773, 0
      %1818 = vmatprep.subr.bf16.mxu0 0
      %1819 = vmatpush1.bf16.msra.mxu0 0
      %1820 = vmatprep.subr.bf16.mxu0 0
      %1821 = vmatpush1.bf16.msra.mxu0 0
      %1822 = vmatprep.subr.bf16.mxu0 0
      %1823 = vmatpush1.bf16.msra.mxu0 0
      %1824 = vmatprep.subr.bf16.mxu0 0
      %1825 = vmatpush1.bf16.msra.mxu0 0
      %1826 = vmatprep.subr.bf16.mxu0 0
      %1827 = vmatpush1.bf16.msra.mxu0 0
      %1828 = vmatprep.subr.bf16.mxu0 0
      %1829 = vmatpush1.bf16.msra.mxu0 0
      %1830 = vmatprep.subr.bf16.mxu0 %v1816
      %1831 = vmatpush1.bf16.msra.mxu0 %v1813
      %1832 = vmatprep.subr.bf16.mxu0 %v1771
      %1833 = vmatpush1.bf16.msra.mxu0 %v1770
      %1834 = vmatprep.subr.bf16.mxu0 0
      %1835 = vmatpush2.bf16.msra.mxu0 0
      %1836 = vmatprep.subr.bf16.mxu0 0
      %1837 = vmatpush2.bf16.msra.mxu0 0
      %1838 = vmatprep.subr.bf16.mxu0 0
      %1839 = vmatpush2.bf16.msra.mxu0 0
      %1840 = vmatprep.subr.bf16.mxu0 0
      %1841 = vmatpush2.bf16.msra.mxu0 0
      %1842 = vmatprep.subr.bf16.mxu0 0
      %1843 = vmatpush2.bf16.msra.mxu0 0
      %1844 = vmatprep.subr.bf16.mxu0 0
      %1845 = vmatpush2.bf16.msra.mxu0 0
      %1846 = vmatprep.subr.bf16.mxu0 0
      %1847 = vmatpush2.bf16.msra.mxu0 0
      %1848 = vmatprep.subr.bf16.mxu0 0
      %1849 = vmatpush2.bf16.msra.mxu0 0
      %1850 = vmatprep.mubr.bf16.mxu0 0
      %1851 = vmatmul.mubr.bf16.gmra.mxu0 %v1777
      %v1852 = vpop.f32.mrf.mxu0
      %v1853 = vadd.f32 0.0, %v1852
      %v1854 = vpop.f32.mrf.mxu0
      %v1855 = vadd.f32 0.0, %v1854
      %v1856 = vpop.f32.mrf.mxu0
      %v1857 = vadd.f32 0.0, %v1856
      %v1858 = vpop.f32.mrf.mxu0
      %v1859 = vadd.f32 0.0, %v1858
      %1860 = vmatprep.mubr.bf16.mxu0 0
      %1861 = vmatmul.mubr.bf16.gmra.mxu0 %v1780
      %v1862 = vpop.f32.mrf.mxu0
      %v1863 = vadd.f32 0.0, %v1862
      %v1864 = vpop.f32.mrf.mxu0
      %v1865 = vadd.f32 0.0, %v1864
      %v1866 = vpop.f32.mrf.mxu0
      %v1867 = vadd.f32 0.0, %v1866
      %v1868 = vpop.f32.mrf.mxu0
      %v1869 = vadd.f32 0.0, %v1868
      %1870 = vmatprep.mubr.bf16.mxu0 0
      %1871 = vmatmul.mubr.bf16.gmra.mxu0 %v1783
      %v1872 = vpop.f32.mrf.mxu0
      %v1873 = vadd.f32 0.0, %v1872
      %v1874 = vpop.f32.mrf.mxu0
      %v1875 = vadd.f32 0.0, %v1874
      %v1876 = vpop.f32.mrf.mxu0
      %v1877 = vadd.f32 0.0, %v1876
      %v1878 = vpop.f32.mrf.mxu0
      %v1879 = vadd.f32 0.0, %v1878
      %1880 = vmatprep.mubr.bf16.mxu0 0
      %1881 = vmatmul.mubr.bf16.gmra.mxu0 %v1786
      %v1882 = vpop.f32.mrf.mxu0
      %v1883 = vadd.f32 0.0, %v1882
      %v1884 = vpop.f32.mrf.mxu0
      %v1885 = vadd.f32 0.0, %v1884
      %v1886 = vpop.f32.mrf.mxu0
      %v1887 = vadd.f32 0.0, %v1886
      %v1888 = vpop.f32.mrf.mxu0
      %v1889 = vadd.f32 0.0, %v1888
      %1890 = vmatprep.mubr.bf16.mxu0 0
      %1891 = vmatmul.mubr.bf16.gmra.mxu0 %v1789
      %v1892 = vpop.f32.mrf.mxu0
      %v1893 = vadd.f32 0.0, %v1892
      %v1894 = vpop.f32.mrf.mxu0
      %v1895 = vadd.f32 0.0, %v1894
      %v1896 = vpop.f32.mrf.mxu0
      %v1897 = vadd.f32 0.0, %v1896
      %v1898 = vpop.f32.mrf.mxu0
      %v1899 = vadd.f32 0.0, %v1898
      %1900 = vmatprep.mubr.bf16.mxu0 0
      %1901 = vmatmul.mubr.bf16.gmra.mxu0 %v1792
      %v1902 = vpop.f32.mrf.mxu0
      %v1903 = vadd.f32 0.0, %v1902
      %v1904 = vpop.f32.mrf.mxu0
      %v1905 = vadd.f32 0.0, %v1904
      %v1906 = vpop.f32.mrf.mxu0
      %v1907 = vadd.f32 0.0, %v1906
      %v1908 = vpop.f32.mrf.mxu0
      %v1909 = vadd.f32 0.0, %v1908
      %1910 = vmatprep.mubr.bf16.mxu0 0
      %1911 = vmatmul.mubr.bf16.gmra.mxu0 %v1795
      %v1912 = vpop.f32.mrf.mxu0
      %v1913 = vadd.f32 0.0, %v1912
      %v1914 = vpop.f32.mrf.mxu0
      %v1915 = vadd.f32 0.0, %v1914
      %v1916 = vpop.f32.mrf.mxu0
      %v1917 = vadd.f32 0.0, %v1916
      %v1918 = vpop.f32.mrf.mxu0
      %v1919 = vadd.f32 0.0, %v1918
      %1920 = vmatprep.mubr.bf16.mxu0 0
      %1921 = vmatmul.mubr.bf16.gmra.mxu0 %v1798
      %v1922 = vpop.f32.mrf.mxu0
      %v1923 = vadd.f32 0.0, %v1922
      %v1924 = vpop.f32.mrf.mxu0
      %v1925 = vadd.f32 0.0, %v1924
      %v1926 = vpop.f32.mrf.mxu0
      %v1927 = vadd.f32 0.0, %v1926
      %v1928 = vpop.f32.mrf.mxu0
      %v1929 = vadd.f32 0.0, %v1928
      %1930 = vmatprep.mubr.bf16.mxu0 0
      %1931 = vmatmul.mubr.bf16.gmra.mxu0 %v1801
      %v1932 = vpop.f32.mrf.mxu0
      %v1933 = vadd.f32 0.0, %v1932
      %v1934 = vpop.f32.mrf.mxu0
      %v1935 = vadd.f32 0.0, %v1934
      %v1936 = vpop.f32.mrf.mxu0
      %v1937 = vadd.f32 0.0, %v1936
      %v1938 = vpop.f32.mrf.mxu0
      %v1939 = vadd.f32 0.0, %v1938
      %1940 = vmatprep.mubr.bf16.mxu0 0
      %1941 = vmatmul.mubr.bf16.gmra.mxu0 %v1804
      %v1942 = vpop.f32.mrf.mxu0
      %v1943 = vadd.f32 0.0, %v1942
      %v1944 = vpop.f32.mrf.mxu0
      %v1945 = vadd.f32 0.0, %v1944
      %v1946 = vpop.f32.mrf.mxu0
      %v1947 = vadd.f32 0.0, %v1946
      %v1948 = vpop.f32.mrf.mxu0
      %v1949 = vadd.f32 0.0, %v1948
      %1950 = vmatprep.mubr.bf16.mxu0 0
      %1951 = vmatmul.mubr.bf16.gmra.mxu0 %v1807
      %v1952 = vpop.f32.mrf.mxu0
      %v1953 = vadd.f32 0.0, %v1952
      %v1954 = vpop.f32.mrf.mxu0
      %v1955 = vadd.f32 0.0, %v1954
      %v1956 = vpop.f32.mrf.mxu0
      %v1957 = vadd.f32 0.0, %v1956
      %v1958 = vpop.f32.mrf.mxu0
      %v1959 = vadd.f32 0.0, %v1958
      %1960 = vmatprep.mubr.bf16.mxu0 0
      %1961 = vmatmul.mubr.bf16.gmra.mxu0 %v1810
      %v1962 = vpop.f32.mrf.mxu0
      %v1963 = vadd.f32 0.0, %v1962
      %v1964 = vpop.f32.mrf.mxu0
      %v1965 = vadd.f32 0.0, %v1964
      %v1966 = vpop.f32.mrf.mxu0
      %v1967 = vadd.f32 0.0, %v1966
      %v1968 = vpop.f32.mrf.mxu0
      %v1969 = vadd.f32 0.0, %v1968
      %1970 = vdwg.mxu0
      %v1971 = vadd.f32 %v1612, %v1853
      %v1972 = vadd.f32 %v1613, %v1855
      %v1973 = vadd.f32 %v1614, %v1857
      %v1974 = vadd.f32 %v1615, %v1859
      %v1975 = vadd.f32 %v1616, %v1863
      %v1976 = vadd.f32 %v1617, %v1865
      %v1977 = vadd.f32 %v1618, %v1867
      %v1978 = vadd.f32 %v1619, %v1869
      %v1979 = vadd.f32 %v1620, %v1873
      %v1980 = vadd.f32 %v1621, %v1875
      %v1981 = vadd.f32 %v1622, %v1877
      %v1982 = vadd.f32 %v1623, %v1879
      %v1983 = vadd.f32 %v1624, %v1883
      %v1984 = vadd.f32 %v1625, %v1885
      %v1985 = vadd.f32 %v1626, %v1887
      %v1986 = vadd.f32 %v1627, %v1889
      %v1987 = vadd.f32 %v1628, %v1893
      %v1988 = vadd.f32 %v1629, %v1895
      %v1989 = vadd.f32 %v1630, %v1897
      %v1990 = vadd.f32 %v1631, %v1899
      %v1991 = vadd.f32 %v1632, %v1903
      %v1992 = vadd.f32 %v1633, %v1905
      %v1993 = vadd.f32 %v1634, %v1907
      %v1994 = vadd.f32 %v1635, %v1909
      %v1995 = vadd.f32 %v1636, %v1913
      %v1996 = vadd.f32 %v1637, %v1915
      %v1997 = vadd.f32 %v1638, %v1917
      %v1998 = vadd.f32 %v1639, %v1919
      %v1999 = vadd.f32 %v1640, %v1923
      %v2000 = vadd.f32 %v1641, %v1925
      %v2001 = vadd.f32 %v1642, %v1927
      %v2002 = vadd.f32 %v1643, %v1929
      %v2003 = vadd.f32 %v1644, %v1933
      %v2004 = vadd.f32 %v1645, %v1935
      %v2005 = vadd.f32 %v1646, %v1937
      %v2006 = vadd.f32 %v1647, %v1939
      %v2007 = vadd.f32 %v1648, %v1943
      %v2008 = vadd.f32 %v1649, %v1945
      %v2009 = vadd.f32 %v1650, %v1947
      %v2010 = vadd.f32 %v1651, %v1949
      %v2011 = vadd.f32 %v1652, %v1953
      %v2012 = vadd.f32 %v1653, %v1955
      %v2013 = vadd.f32 %v1654, %v1957
      %v2014 = vadd.f32 %v1655, %v1959
      %v2015 = vadd.f32 %v1656, %v1963
      %v2016 = vadd.f32 %v1657, %v1965
      %v2017 = vadd.f32 %v1658, %v1967
      %v2018 = vadd.f32 %v1659, %v1969
      %2067 = vrot.lane.b32.xlu0 %v1971, 8
      %v2068 = vpop.permute.xlu0 %2067
      %2069 = vrot.lane.b32.xlu0 %v1972, 8
      %v2070 = vpop.permute.xlu0 %2069
      %2071 = vrot.lane.b32.xlu0 %v1973, 8
      %v2072 = vpop.permute.xlu0 %2071
      %2073 = vrot.lane.b32.xlu0 %v1974, 8
      %v2074 = vpop.permute.xlu0 %2073
      %2075 = vrot.lane.b32.xlu0 %v1975, 8
      %v2076 = vpop.permute.xlu0 %2075
      %2077 = vrot.lane.b32.xlu0 %v1976, 8
      %v2078 = vpop.permute.xlu0 %2077
      %2079 = vrot.lane.b32.xlu0 %v1977, 8
      %v2080 = vpop.permute.xlu0 %2079
      %2081 = vrot.lane.b32.xlu0 %v1978, 8
      %v2082 = vpop.permute.xlu0 %2081
      %2083 = vrot.lane.b32.xlu0 %v1979, 8
      %v2084 = vpop.permute.xlu0 %2083
      %2085 = vrot.lane.b32.xlu0 %v1980, 8
      %v2086 = vpop.permute.xlu0 %2085
      %2087 = vrot.lane.b32.xlu0 %v1981, 8
      %v2088 = vpop.permute.xlu0 %2087
      %2089 = vrot.lane.b32.xlu0 %v1982, 8
      %v2090 = vpop.permute.xlu0 %2089
      %2091 = vrot.lane.b32.xlu0 %v1983, 8
      %v2092 = vpop.permute.xlu0 %2091
      %2093 = vrot.lane.b32.xlu0 %v1984, 8
      %v2094 = vpop.permute.xlu0 %2093
      %2095 = vrot.lane.b32.xlu0 %v1985, 8
      %v2096 = vpop.permute.xlu0 %2095
      %2097 = vrot.lane.b32.xlu0 %v1986, 8
      %v2098 = vpop.permute.xlu0 %2097
      %2099 = vrot.lane.b32.xlu0 %v1987, 8
      %v2100 = vpop.permute.xlu0 %2099
      %2101 = vrot.lane.b32.xlu0 %v1988, 8
      %v2102 = vpop.permute.xlu0 %2101
      %2103 = vrot.lane.b32.xlu0 %v1989, 8
      %v2104 = vpop.permute.xlu0 %2103
      %2105 = vrot.lane.b32.xlu0 %v1990, 8
      %v2106 = vpop.permute.xlu0 %2105
      %2107 = vrot.lane.b32.xlu0 %v1991, 8
      %v2108 = vpop.permute.xlu0 %2107
      %2109 = vrot.lane.b32.xlu0 %v1992, 8
      %v2110 = vpop.permute.xlu0 %2109
      %2111 = vrot.lane.b32.xlu0 %v1993, 8
      %v2112 = vpop.permute.xlu0 %2111
      %2113 = vrot.lane.b32.xlu0 %v1994, 8
      %v2114 = vpop.permute.xlu0 %2113
      %2115 = vrot.lane.b32.xlu0 %v1995, 8
      %v2116 = vpop.permute.xlu0 %2115
      %2117 = vrot.lane.b32.xlu0 %v1996, 8
      %v2118 = vpop.permute.xlu0 %2117
      %2119 = vrot.lane.b32.xlu0 %v1997, 8
      %v2120 = vpop.permute.xlu0 %2119
      %2121 = vrot.lane.b32.xlu0 %v1998, 8
      %v2122 = vpop.permute.xlu0 %2121
      %2123 = vrot.lane.b32.xlu0 %v1999, 8
      %v2124 = vpop.permute.xlu0 %2123
      %2125 = vrot.lane.b32.xlu0 %v2000, 8
      %v2126 = vpop.permute.xlu0 %2125
      %2127 = vrot.lane.b32.xlu0 %v2001, 8
      %v2128 = vpop.permute.xlu0 %2127
      %2129 = vrot.lane.b32.xlu0 %v2002, 8
      %v2130 = vpop.permute.xlu0 %2129
      %2131 = vrot.lane.b32.xlu0 %v2003, 8
      %v2132 = vpop.permute.xlu0 %2131
      %2133 = vrot.lane.b32.xlu0 %v2004, 8
      %v2134 = vpop.permute.xlu0 %2133
      %2135 = vrot.lane.b32.xlu0 %v2005, 8
      %v2136 = vpop.permute.xlu0 %2135
      %2137 = vrot.lane.b32.xlu0 %v2006, 8
      %v2138 = vpop.permute.xlu0 %2137
      %2139 = vrot.lane.b32.xlu0 %v2007, 8
      %v2140 = vpop.permute.xlu0 %2139
      %2141 = vrot.lane.b32.xlu0 %v2008, 8
      %v2142 = vpop.permute.xlu0 %2141
      %2143 = vrot.lane.b32.xlu0 %v2009, 8
      %v2144 = vpop.permute.xlu0 %2143
      %2145 = vrot.lane.b32.xlu0 %v2010, 8
      %v2146 = vpop.permute.xlu0 %2145
      %2147 = vrot.lane.b32.xlu0 %v2011, 8
      %v2148 = vpop.permute.xlu0 %2147
      %2149 = vrot.lane.b32.xlu0 %v2012, 8
      %v2150 = vpop.permute.xlu0 %2149
      %2151 = vrot.lane.b32.xlu0 %v2013, 8
      %v2152 = vpop.permute.xlu0 %2151
      %2153 = vrot.lane.b32.xlu0 %v2014, 8
      %v2154 = vpop.permute.xlu0 %2153
      %2155 = vrot.lane.b32.xlu0 %v2015, 8
      %v2156 = vpop.permute.xlu0 %2155
      %2157 = vrot.lane.b32.xlu0 %v2016, 8
      %v2158 = vpop.permute.xlu0 %2157
      %2159 = vrot.lane.b32.xlu0 %v2017, 8
      %v2160 = vpop.permute.xlu0 %2159
      %2161 = vrot.lane.b32.xlu0 %v2018, 8
      %v2162 = vpop.permute.xlu0 %2161
      %vm2163 = vcmask 64512
      %v2164 = vsel %vm2163, %v2068, %v2070
      %v2165 = vsel %vm2163, %v2072, %v2074
      %v2166 = vsel %vm2163, %v2076, %v2078
      %v2167 = vsel %vm2163, %v2080, %v2082
      %v2168 = vsel %vm2163, %v2084, %v2086
      %v2169 = vsel %vm2163, %v2088, %v2090
      %v2170 = vsel %vm2163, %v2092, %v2094
      %v2171 = vsel %vm2163, %v2096, %v2098
      %v2172 = vsel %vm2163, %v2100, %v2102
      %v2173 = vsel %vm2163, %v2104, %v2106
      %v2174 = vsel %vm2163, %v2108, %v2110
      %v2175 = vsel %vm2163, %v2112, %v2114
      %v2176 = vsel %vm2163, %v2116, %v2118
      %v2177 = vsel %vm2163, %v2120, %v2122
      %v2178 = vsel %vm2163, %v2124, %v2126
      %v2179 = vsel %vm2163, %v2128, %v2130
      %v2180 = vsel %vm2163, %v2132, %v2134
      %v2181 = vsel %vm2163, %v2136, %v2138
      %v2182 = vsel %vm2163, %v2140, %v2142
      %v2183 = vsel %vm2163, %v2144, %v2146
      %v2184 = vsel %vm2163, %v2148, %v2150
      %v2185 = vsel %vm2163, %v2152, %v2154
      %v2186 = vsel %vm2163, %v2156, %v2158
      %v2187 = vsel %vm2163, %v2160, %v2162
      %v2212 = vmax.f32 %v1971, %v2164
      %v2213 = vmax.f32 %v1973, %v2165
      %v2214 = vmax.f32 %v1975, %v2166
      %v2215 = vmax.f32 %v1977, %v2167
      %v2216 = vmax.f32 %v1979, %v2168
      %v2217 = vmax.f32 %v1981, %v2169
      %v2218 = vmax.f32 %v1983, %v2170
      %v2219 = vmax.f32 %v1985, %v2171
      %v2220 = vmax.f32 %v1987, %v2172
      %v2221 = vmax.f32 %v1989, %v2173
      %v2222 = vmax.f32 %v1991, %v2174
      %v2223 = vmax.f32 %v1993, %v2175
      %v2224 = vmax.f32 %v1995, %v2176
      %v2225 = vmax.f32 %v1997, %v2177
      %v2226 = vmax.f32 %v1999, %v2178
      %v2227 = vmax.f32 %v2001, %v2179
      %v2228 = vmax.f32 %v2003, %v2180
      %v2229 = vmax.f32 %v2005, %v2181
      %v2230 = vmax.f32 %v2007, %v2182
      %v2231 = vmax.f32 %v2009, %v2183
      %v2232 = vmax.f32 %v2011, %v2184
      %v2233 = vmax.f32 %v2013, %v2185
      %v2234 = vmax.f32 %v2015, %v2186
      %v2235 = vmax.f32 %v2017, %v2187
      %v2244 = vrot.slane %v2212, 1
      %v2245 = vrot.slane %v2215, 1
      %v2246 = vrot.slane %v2218, 1
      %v2247 = vrot.slane %v2221, 1
      %v2248 = vrot.slane %v2224, 1
      %v2249 = vrot.slane %v2227, 1
      %v2250 = vrot.slane %v2230, 1
      %v2251 = vrot.slane %v2233, 1
      %v2260 = vmax.f32 %v2212, %v2244
      %v2261 = vmax.f32 %v2215, %v2245
      %v2262 = vmax.f32 %v2218, %v2246
      %v2263 = vmax.f32 %v2221, %v2247
      %v2264 = vmax.f32 %v2224, %v2248
      %v2265 = vmax.f32 %v2227, %v2249
      %v2266 = vmax.f32 %v2230, %v2250
      %v2267 = vmax.f32 %v2233, %v2251
      %v2276 = vrot.slane %v2213, 1
      %v2277 = vrot.slane %v2216, 1
      %v2278 = vrot.slane %v2219, 1
      %v2279 = vrot.slane %v2222, 1
      %v2280 = vrot.slane %v2225, 1
      %v2281 = vrot.slane %v2228, 1
      %v2282 = vrot.slane %v2231, 1
      %v2283 = vrot.slane %v2234, 1
      %v2292 = vmax.f32 %v2213, %v2276
      %v2293 = vmax.f32 %v2216, %v2277
      %v2294 = vmax.f32 %v2219, %v2278
      %v2295 = vmax.f32 %v2222, %v2279
      %v2296 = vmax.f32 %v2225, %v2280
      %v2297 = vmax.f32 %v2228, %v2281
      %v2298 = vmax.f32 %v2231, %v2282
      %v2299 = vmax.f32 %v2234, %v2283
      %v2308 = vrot.slane %v2214, 1
      %v2309 = vrot.slane %v2217, 1
      %v2310 = vrot.slane %v2220, 1
      %v2311 = vrot.slane %v2223, 1
      %v2312 = vrot.slane %v2226, 1
      %v2313 = vrot.slane %v2229, 1
      %v2314 = vrot.slane %v2232, 1
      %v2315 = vrot.slane %v2235, 1
      %v2324 = vmax.f32 %v2214, %v2308
      %v2325 = vmax.f32 %v2217, %v2309
      %v2326 = vmax.f32 %v2220, %v2310
      %v2327 = vmax.f32 %v2223, %v2311
      %v2328 = vmax.f32 %v2226, %v2312
      %v2329 = vmax.f32 %v2229, %v2313
      %v2330 = vmax.f32 %v2232, %v2314
      %v2331 = vmax.f32 %v2235, %v2315
      %v2340 = vrot.slane %v2260, 1
      %v2341 = vrot.slane %v2261, 1
      %v2342 = vrot.slane %v2262, 1
      %v2343 = vrot.slane %v2263, 1
      %v2344 = vrot.slane %v2264, 1
      %v2345 = vrot.slane %v2265, 1
      %v2346 = vrot.slane %v2266, 1
      %v2347 = vrot.slane %v2267, 1
      %v2356 = vrot.slane %v2260, 2
      %v2357 = vrot.slane %v2261, 2
      %v2358 = vrot.slane %v2262, 2
      %v2359 = vrot.slane %v2263, 2
      %v2360 = vrot.slane %v2264, 2
      %v2361 = vrot.slane %v2265, 2
      %v2362 = vrot.slane %v2266, 2
      %v2363 = vrot.slane %v2267, 2
      %v2372 = vrot.slane %v2260, 3
      %v2373 = vrot.slane %v2261, 3
      %v2374 = vrot.slane %v2262, 3
      %v2375 = vrot.slane %v2263, 3
      %v2376 = vrot.slane %v2264, 3
      %v2377 = vrot.slane %v2265, 3
      %v2378 = vrot.slane %v2266, 3
      %v2379 = vrot.slane %v2267, 3
      %v2396 = vrot.slane %v2292, 4
      %v2397 = vrot.slane %v2293, 4
      %v2398 = vrot.slane %v2294, 4
      %v2399 = vrot.slane %v2295, 4
      %v2400 = vrot.slane %v2296, 4
      %v2401 = vrot.slane %v2297, 4
      %v2402 = vrot.slane %v2298, 4
      %v2403 = vrot.slane %v2299, 4
      %v2412 = vrot.slane %v2292, 5
      %v2413 = vrot.slane %v2293, 5
      %v2414 = vrot.slane %v2294, 5
      %v2415 = vrot.slane %v2295, 5
      %v2416 = vrot.slane %v2296, 5
      %v2417 = vrot.slane %v2297, 5
      %v2418 = vrot.slane %v2298, 5
      %v2419 = vrot.slane %v2299, 5
      %v2428 = vrot.slane %v2292, 6
      %v2429 = vrot.slane %v2293, 6
      %v2430 = vrot.slane %v2294, 6
      %v2431 = vrot.slane %v2295, 6
      %v2432 = vrot.slane %v2296, 6
      %v2433 = vrot.slane %v2297, 6
      %v2434 = vrot.slane %v2298, 6
      %v2435 = vrot.slane %v2299, 6
      %v2444 = vrot.slane %v2292, 7
      %v2445 = vrot.slane %v2293, 7
      %v2446 = vrot.slane %v2294, 7
      %v2447 = vrot.slane %v2295, 7
      %v2448 = vrot.slane %v2296, 7
      %v2449 = vrot.slane %v2297, 7
      %v2450 = vrot.slane %v2298, 7
      %v2451 = vrot.slane %v2299, 7
      %v2468 = vrot.slane %v2324, 1
      %v2469 = vrot.slane %v2325, 1
      %v2470 = vrot.slane %v2326, 1
      %v2471 = vrot.slane %v2327, 1
      %v2472 = vrot.slane %v2328, 1
      %v2473 = vrot.slane %v2329, 1
      %v2474 = vrot.slane %v2330, 1
      %v2475 = vrot.slane %v2331, 1
      %v2484 = vrot.slane %v2324, 2
      %v2485 = vrot.slane %v2325, 2
      %v2486 = vrot.slane %v2326, 2
      %v2487 = vrot.slane %v2327, 2
      %v2488 = vrot.slane %v2328, 2
      %v2489 = vrot.slane %v2329, 2
      %v2490 = vrot.slane %v2330, 2
      %v2491 = vrot.slane %v2331, 2
      %v2500 = vrot.slane %v2324, 3
      %v2501 = vrot.slane %v2325, 3
      %v2502 = vrot.slane %v2326, 3
      %v2503 = vrot.slane %v2327, 3
      %v2504 = vrot.slane %v2328, 3
      %v2505 = vrot.slane %v2329, 3
      %v2506 = vrot.slane %v2330, 3
      %v2507 = vrot.slane %v2331, 3
      %vm2516 = vcmask 1040384
      %v2517 = vsel %vm2516, %v2260, %v2340
      %v2518 = vsel %vm2516, %v2261, %v2341
      %v2519 = vsel %vm2516, %v2262, %v2342
      %v2520 = vsel %vm2516, %v2263, %v2343
      %v2521 = vsel %vm2516, %v2264, %v2344
      %v2522 = vsel %vm2516, %v2265, %v2345
      %v2523 = vsel %vm2516, %v2266, %v2346
      %v2524 = vsel %vm2516, %v2267, %v2347
      %vm2525 = vcmask 1041408
      %v2526 = vsel %vm2525, %v2517, %v2356
      %v2527 = vsel %vm2525, %v2518, %v2357
      %v2528 = vsel %vm2525, %v2519, %v2358
      %v2529 = vsel %vm2525, %v2520, %v2359
      %v2530 = vsel %vm2525, %v2521, %v2360
      %v2531 = vsel %vm2525, %v2522, %v2361
      %v2532 = vsel %vm2525, %v2523, %v2362
      %v2533 = vsel %vm2525, %v2524, %v2363
      %vm2534 = vcmask 1042432
      %v2535 = vsel %vm2534, %v2526, %v2372
      %v2536 = vsel %vm2534, %v2527, %v2373
      %v2537 = vsel %vm2534, %v2528, %v2374
      %v2538 = vsel %vm2534, %v2529, %v2375
      %v2539 = vsel %vm2534, %v2530, %v2376
      %v2540 = vsel %vm2534, %v2531, %v2377
      %v2541 = vsel %vm2534, %v2532, %v2378
      %v2542 = vsel %vm2534, %v2533, %v2379
      %v2543 = vsel %vm1660, %v2535, %v2396
      %v2544 = vsel %vm1660, %v2536, %v2397
      %v2545 = vsel %vm1660, %v2537, %v2398
      %v2546 = vsel %vm1660, %v2538, %v2399
      %v2547 = vsel %vm1660, %v2539, %v2400
      %v2548 = vsel %vm1660, %v2540, %v2401
      %v2549 = vsel %vm1660, %v2541, %v2402
      %v2550 = vsel %vm1660, %v2542, %v2403
      %v2551 = vsel %vm1301, %v2543, %v2412
      %v2552 = vsel %vm1301, %v2544, %v2413
      %v2553 = vsel %vm1301, %v2545, %v2414
      %v2554 = vsel %vm1301, %v2546, %v2415
      %v2555 = vsel %vm1301, %v2547, %v2416
      %v2556 = vsel %vm1301, %v2548, %v2417
      %v2557 = vsel %vm1301, %v2549, %v2418
      %v2558 = vsel %vm1301, %v2550, %v2419
      %v2559 = vsel %vm570, %v2551, %v2428
      %v2560 = vsel %vm570, %v2552, %v2429
      %v2561 = vsel %vm570, %v2553, %v2430
      %v2562 = vsel %vm570, %v2554, %v2431
      %v2563 = vsel %vm570, %v2555, %v2432
      %v2564 = vsel %vm570, %v2556, %v2433
      %v2565 = vsel %vm570, %v2557, %v2434
      %v2566 = vsel %vm570, %v2558, %v2435
      %v2567 = vsel %vm417, %v2559, %v2444
      %v2568 = vsel %vm417, %v2560, %v2445
      %v2569 = vsel %vm417, %v2561, %v2446
      %v2570 = vsel %vm417, %v2562, %v2447
      %v2571 = vsel %vm417, %v2563, %v2448
      %v2572 = vsel %vm417, %v2564, %v2449
      %v2573 = vsel %vm417, %v2565, %v2450
      %v2574 = vsel %vm417, %v2566, %v2451
      %v2575 = vsel %vm2516, %v2324, %v2468
      %v2576 = vsel %vm2516, %v2325, %v2469
      %v2577 = vsel %vm2516, %v2326, %v2470
      %v2578 = vsel %vm2516, %v2327, %v2471
      %v2579 = vsel %vm2516, %v2328, %v2472
      %v2580 = vsel %vm2516, %v2329, %v2473
      %v2581 = vsel %vm2516, %v2330, %v2474
      %v2582 = vsel %vm2516, %v2331, %v2475
      %v2583 = vsel %vm2525, %v2575, %v2484
      %v2584 = vsel %vm2525, %v2576, %v2485
      %v2585 = vsel %vm2525, %v2577, %v2486
      %v2586 = vsel %vm2525, %v2578, %v2487
      %v2587 = vsel %vm2525, %v2579, %v2488
      %v2588 = vsel %vm2525, %v2580, %v2489
      %v2589 = vsel %vm2525, %v2581, %v2490
      %v2590 = vsel %vm2525, %v2582, %v2491
      %v2591 = vsel %vm2534, %v2583, %v2500
      %v2592 = vsel %vm2534, %v2584, %v2501
      %v2593 = vsel %vm2534, %v2585, %v2502
      %v2594 = vsel %vm2534, %v2586, %v2503
      %v2595 = vsel %vm2534, %v2587, %v2504
      %v2596 = vsel %vm2534, %v2588, %v2505
      %v2597 = vsel %vm2534, %v2589, %v2506
      %v2598 = vsel %vm2534, %v2590, %v2507
      %v2599 = vld [vmem:[%s2] sm:$0x1]
      %v2601 = vlaneseq
      %v2602 = vshrl.u32 %v2601, 7
      %v2603 = vsub.s32 0, %v2602
      %v2604 = vrot.slane %v2599, %v2603
      %v2606 = vadd.f32 %v2567, %v2604
      %v2607 = vadd.f32 %v2591, %v2604
      %v2608 = vadd.f32 %v2568, %v2604
      %v2609 = vadd.f32 %v2592, %v2604
      %v2610 = vadd.f32 %v2569, %v2604
      %v2611 = vadd.f32 %v2593, %v2604
      %v2612 = vadd.f32 %v2570, %v2604
      %v2613 = vadd.f32 %v2594, %v2604
      %v2614 = vadd.f32 %v2571, %v2604
      %v2615 = vadd.f32 %v2595, %v2604
      %v2616 = vadd.f32 %v2572, %v2604
      %v2617 = vadd.f32 %v2596, %v2604
      %v2618 = vadd.f32 %v2573, %v2604
      %v2619 = vadd.f32 %v2597, %v2604
      %v2620 = vadd.f32 %v2574, %v2604
      %v2621 = vadd.f32 %v2598, %v2604
      %v2622 = vmax.f32 %v2606, 0.0
      %v2623 = vmax.f32 %v2607, 0.0
      %v2624 = vmax.f32 %v2608, 0.0
      %v2625 = vmax.f32 %v2609, 0.0
      %v2626 = vmax.f32 %v2610, 0.0
      %v2627 = vmax.f32 %v2611, 0.0
      %v2628 = vmax.f32 %v2612, 0.0
      %v2629 = vmax.f32 %v2613, 0.0
      %v2630 = vmax.f32 %v2614, 0.0
      %v2631 = vmax.f32 %v2615, 0.0
      %v2632 = vmax.f32 %v2616, 0.0
      %v2633 = vmax.f32 %v2617, 0.0
      %v2634 = vmax.f32 %v2618, 0.0
      %v2635 = vmax.f32 %v2619, 0.0
      %v2636 = vmax.f32 %v2620, 0.0
      %v2637 = vmax.f32 %v2621, 0.0
      %v2638 = vpack.c.bf16 %v2624, %v2622
      %v2639 = vpack.c.bf16 %v2628, %v2626
      %v2640 = vpack.c.bf16 %v2632, %v2630
      %v2641 = vpack.c.bf16 %v2636, %v2634
      %v2642 = vld [vmem:[%s3] sm:$0xff]
      %v2643 = vld [vmem:[%s3 + $0x8] sm:$0xff]
      %v2644 = vld [vmem:[%s3 + $0x10] sm:$0xff]
      %v2645 = vld [vmem:[%s3 + $0x18] sm:$0xff]
      %v2646 = vld [vmem:[%s3 + $0x20] sm:$0xff]
      %v2647 = vld [vmem:[%s3 + $0x28] sm:$0xff]
      %v2648 = vld [vmem:[%s3 + $0x30] sm:$0xff]
      %v2649 = vld [vmem:[%s3 + $0x38] sm:$0xff]
      %v2650 = vld [vmem:[%s3 + $0x40] sm:$0xff]
      %v2651 = vld [vmem:[%s3 + $0x48] sm:$0xff]
      %v2652 = vld [vmem:[%s3 + $0x50] sm:$0xff]
      %v2653 = vld [vmem:[%s3 + $0x58] sm:$0xff]
      %v2654 = vld [vmem:[%s3 + $0x60] sm:$0xff]
      %v2655 = vld [vmem:[%s3 + $0x68] sm:$0xff]
      %v2656 = vld [vmem:[%s3 + $0x70] sm:$0xff]
      %v2673 = vrot.slane %v2622, 1
      %v2674 = vrot.slane %v2623, 1
      %v2675 = vsel %vm417, %v2673, %v2674
      %v2676 = vrot.slane %v2624, 1
      %v2677 = vrot.slane %v2625, 1
      %v2678 = vsel %vm417, %v2676, %v2677
      %v2679 = vrot.slane %v2626, 1
      %v2680 = vrot.slane %v2627, 1
      %v2681 = vsel %vm417, %v2679, %v2680
      %v2682 = vrot.slane %v2628, 1
      %v2683 = vrot.slane %v2629, 1
      %v2684 = vsel %vm417, %v2682, %v2683
      %v2685 = vrot.slane %v2630, 1
      %v2686 = vrot.slane %v2631, 1
      %v2687 = vsel %vm417, %v2685, %v2686
      %v2688 = vrot.slane %v2632, 1
      %v2689 = vrot.slane %v2633, 1
      %v2690 = vsel %vm417, %v2688, %v2689
      %v2691 = vrot.slane %v2634, 1
      %v2692 = vrot.slane %v2635, 1
      %v2693 = vsel %vm417, %v2691, %v2692
      %v2694 = vrot.slane %v2636, 1
      %v2695 = vrot.slane %v2637, 1
      %v2696 = vsel %vm417, %v2694, %v2695
      %v2705 = vpack.c.bf16 %v2678, %v2675
      %v2706 = vpack.c.bf16 %v2684, %v2681
      %v2707 = vpack.c.bf16 %v2690, %v2687
      %v2708 = vpack.c.bf16 %v2696, %v2693
      %s2709 = scalar_lea.vmem %s3, 120
      %v2710 = vld [vmem:[%s2709] sm:$0xff]
      %v2711 = vld [vmem:[%s2709 + $0x8] sm:$0xff]
      %v2712 = vld [vmem:[%s2709 + $0x10] sm:$0xff]
      %v2713 = vld [vmem:[%s2709 + $0x18] sm:$0xff]
      %v2714 = vld [vmem:[%s2709 + $0x20] sm:$0xff]
      %v2715 = vld [vmem:[%s2709 + $0x28] sm:$0xff]
      %v2716 = vld [vmem:[%s2709 + $0x30] sm:$0xff]
      %v2717 = vld [vmem:[%s2709 + $0x38] sm:$0xff]
      %v2718 = vld [vmem:[%s2709 + $0x40] sm:$0xff]
      %v2719 = vld [vmem:[%s2709 + $0x48] sm:$0xff]
      %v2720 = vld [vmem:[%s2709 + $0x50] sm:$0xff]
      %v2721 = vld [vmem:[%s2709 + $0x58] sm:$0xff]
      %v2722 = vld [vmem:[%s2709 + $0x60] sm:$0xff]
      %v2723 = vld [vmem:[%s2709 + $0x68] sm:$0xff]
      %v2724 = vld [vmem:[%s2709 + $0x70] sm:$0xff]
      %v2740 = vunpack.c.l.b16 %v2710
      %v2741 = vunpack.c.h.b16 %v2710
      %v2742 = vunpack.c.l.b16 %v2711
      %v2743 = vunpack.c.h.b16 %v2711
      %v2744 = vunpack.c.l.b16 %v2712
      %v2745 = vunpack.c.h.b16 %v2712
      %v2746 = vunpack.c.l.b16 %v2713
      %v2747 = vunpack.c.h.b16 %v2713
      %v2748 = vunpack.c.l.b16 %v2714
      %v2749 = vunpack.c.h.b16 %v2714
      %v2750 = vunpack.c.l.b16 %v2715
      %v2751 = vunpack.c.h.b16 %v2715
      %v2752 = vunpack.c.l.b16 %v2716
      %v2753 = vunpack.c.h.b16 %v2716
      %v2754 = vunpack.c.l.b16 %v2717
      %v2755 = vunpack.c.h.b16 %v2717
      %v2756 = vunpack.c.l.b16 %v2718
      %v2757 = vunpack.c.h.b16 %v2718
      %v2758 = vunpack.c.l.b16 %v2719
      %v2759 = vunpack.c.h.b16 %v2719
      %v2760 = vunpack.c.l.b16 %v2720
      %v2761 = vunpack.c.h.b16 %v2720
      %v2762 = vunpack.c.l.b16 %v2721
      %v2763 = vunpack.c.h.b16 %v2721
      %v2764 = vunpack.c.l.b16 %v2722
      %v2765 = vunpack.c.h.b16 %v2722
      %v2766 = vunpack.c.l.b16 %v2723
      %v2767 = vunpack.c.h.b16 %v2723
      %v2768 = vunpack.c.l.b16 %v2724
      %v2769 = vunpack.c.h.b16 %v2724
      %v2770 = vpack.c.b16 %v2742, %v2740
      %v2771 = vpack.c.b16 %v2743, %v2741
      %v2772 = vpack.c.b16 %v2746, %v2744
      %v2773 = vpack.c.b16 %v2747, %v2745
      %v2774 = vpack.c.b16 %v2750, %v2748
      %v2775 = vpack.c.b16 %v2751, %v2749
      %v2776 = vpack.c.b16 %v2754, %v2752
      %v2777 = vpack.c.b16 %v2755, %v2753
      %v2778 = vpack.c.b16 %v2758, %v2756
      %v2779 = vpack.c.b16 %v2759, %v2757
      %v2780 = vpack.c.b16 %v2762, %v2760
      %v2781 = vpack.c.b16 %v2763, %v2761
      %v2782 = vpack.c.b16 %v2766, %v2764
      %v2783 = vpack.c.b16 %v2767, %v2765
      %v2784 = vpack.c.b16 %v2768, %v2768
      %v2785 = vpack.c.b16 %v2769, %v2769
      %vm2800 = vcmask 982016
      %v2802 = vsel %vm2800, %v2705, 0
      %v2805 = vsel %vm2800, %v2706, 0
      %v2808 = vsel %vm2800, %v2707, 0
      %v2811 = vsel %vm2800, %v2708, 0
      %v2814 = vsel %vm1660, %v2784, 0
      %v2817 = vsel %vm1660, %v2785, 0
      %2819 = vmatprep.subr.bf16.mxu0 %v2817
      %2820 = vmatpush1.bf16.msra.mxu0 %v2814
      %2821 = vmatprep.subr.bf16.mxu0 %v2783
      %2822 = vmatpush1.bf16.msra.mxu0 %v2782
      %2823 = vmatprep.subr.bf16.mxu0 %v2781
      %2824 = vmatpush1.bf16.msra.mxu0 %v2780
      %2825 = vmatprep.subr.bf16.mxu0 %v2779
      %2826 = vmatpush1.bf16.msra.mxu0 %v2778
      %2827 = vmatprep.subr.bf16.mxu0 %v2777
      %2828 = vmatpush1.bf16.msra.mxu0 %v2776
      %2829 = vmatprep.subr.bf16.mxu0 %v2775
      %2830 = vmatpush1.bf16.msra.mxu0 %v2774
      %2831 = vmatprep.subr.bf16.mxu0 %v2773
      %2832 = vmatpush1.bf16.msra.mxu0 %v2772
      %2833 = vmatprep.subr.bf16.mxu0 %v2771
      %2834 = vmatpush1.bf16.msra.mxu0 %v2770
      %2835 = vmatprep.subr.bf16.mxu0 0
      %2836 = vmatpush2.bf16.msra.mxu0 0
      %2837 = vmatprep.subr.bf16.mxu0 0
      %2838 = vmatpush2.bf16.msra.mxu0 0
      %2839 = vmatprep.subr.bf16.mxu0 0
      %2840 = vmatpush2.bf16.msra.mxu0 0
      %2841 = vmatprep.subr.bf16.mxu0 0
      %2842 = vmatpush2.bf16.msra.mxu0 0
      %2843 = vmatprep.subr.bf16.mxu0 0
      %2844 = vmatpush2.bf16.msra.mxu0 0
      %2845 = vmatprep.subr.bf16.mxu0 0
      %2846 = vmatpush2.bf16.msra.mxu0 0
      %2847 = vmatprep.subr.bf16.mxu0 0
      %2848 = vmatpush2.bf16.msra.mxu0 0
      %2849 = vmatprep.subr.bf16.mxu0 0
      %2850 = vmatpush2.bf16.msra.mxu0 0
      %2851 = vmatprep.mubr.bf16.mxu0 0
      %2852 = vmatmul.mubr.bf16.gmra.mxu0 %v2802
      %v2853 = vpop.f32.mrf.mxu0
      %v2854 = vadd.f32 0.0, %v2853
      %v2855 = vpop.f32.mrf.mxu0
      %v2856 = vadd.f32 0.0, %v2855
      %v2857 = vpop.f32.mrf.mxu0
      %v2858 = vadd.f32 0.0, %v2857
      %v2859 = vpop.f32.mrf.mxu0
      %v2860 = vadd.f32 0.0, %v2859
      %2861 = vmatprep.mubr.bf16.mxu0 0
      %2862 = vmatmul.mubr.bf16.gmra.mxu0 %v2805
      %v2863 = vpop.f32.mrf.mxu0
      %v2864 = vadd.f32 0.0, %v2863
      %v2865 = vpop.f32.mrf.mxu0
      %v2866 = vadd.f32 0.0, %v2865
      %v2867 = vpop.f32.mrf.mxu0
      %v2868 = vadd.f32 0.0, %v2867
      %v2869 = vpop.f32.mrf.mxu0
      %v2870 = vadd.f32 0.0, %v2869
      %2871 = vmatprep.mubr.bf16.mxu0 0
      %2872 = vmatmul.mubr.bf16.gmra.mxu0 %v2808
      %v2873 = vpop.f32.mrf.mxu0
      %v2874 = vadd.f32 0.0, %v2873
      %v2875 = vpop.f32.mrf.mxu0
      %v2876 = vadd.f32 0.0, %v2875
      %v2877 = vpop.f32.mrf.mxu0
      %v2878 = vadd.f32 0.0, %v2877
      %v2879 = vpop.f32.mrf.mxu0
      %v2880 = vadd.f32 0.0, %v2879
      %2881 = vmatprep.mubr.bf16.mxu0 0
      %2882 = vmatmul.mubr.bf16.gmra.mxu0 %v2811
      %v2883 = vpop.f32.mrf.mxu0
      %v2884 = vadd.f32 0.0, %v2883
      %v2885 = vpop.f32.mrf.mxu0
      %v2886 = vadd.f32 0.0, %v2885
      %v2887 = vpop.f32.mrf.mxu0
      %v2888 = vadd.f32 0.0, %v2887
      %v2889 = vpop.f32.mrf.mxu0
      %v2890 = vadd.f32 0.0, %v2889
      %2891 = vdwg.mxu0
      %v2907 = vunpack.c.l.b16 %v2642
      %v2908 = vunpack.c.h.b16 %v2642
      %v2909 = vunpack.c.l.b16 %v2643
      %v2910 = vunpack.c.h.b16 %v2643
      %v2911 = vunpack.c.l.b16 %v2644
      %v2912 = vunpack.c.h.b16 %v2644
      %v2913 = vunpack.c.l.b16 %v2645
      %v2914 = vunpack.c.h.b16 %v2645
      %v2915 = vunpack.c.l.b16 %v2646
      %v2916 = vunpack.c.h.b16 %v2646
      %v2917 = vunpack.c.l.b16 %v2647
      %v2918 = vunpack.c.h.b16 %v2647
      %v2919 = vunpack.c.l.b16 %v2648
      %v2920 = vunpack.c.h.b16 %v2648
      %v2921 = vunpack.c.l.b16 %v2649
      %v2922 = vunpack.c.h.b16 %v2649
      %v2923 = vunpack.c.l.b16 %v2650
      %v2924 = vunpack.c.h.b16 %v2650
      %v2925 = vunpack.c.l.b16 %v2651
      %v2926 = vunpack.c.h.b16 %v2651
      %v2927 = vunpack.c.l.b16 %v2652
      %v2928 = vunpack.c.h.b16 %v2652
      %v2929 = vunpack.c.l.b16 %v2653
      %v2930 = vunpack.c.h.b16 %v2653
      %v2931 = vunpack.c.l.b16 %v2654
      %v2932 = vunpack.c.h.b16 %v2654
      %v2933 = vunpack.c.l.b16 %v2655
      %v2934 = vunpack.c.h.b16 %v2655
      %v2935 = vunpack.c.l.b16 %v2656
      %v2936 = vunpack.c.h.b16 %v2656
      %v2937 = vpack.c.b16 %v2909, %v2907
      %v2938 = vpack.c.b16 %v2910, %v2908
      %v2939 = vpack.c.b16 %v2913, %v2911
      %v2940 = vpack.c.b16 %v2914, %v2912
      %v2941 = vpack.c.b16 %v2917, %v2915
      %v2942 = vpack.c.b16 %v2918, %v2916
      %v2943 = vpack.c.b16 %v2921, %v2919
      %v2944 = vpack.c.b16 %v2922, %v2920
      %v2945 = vpack.c.b16 %v2925, %v2923
      %v2946 = vpack.c.b16 %v2926, %v2924
      %v2947 = vpack.c.b16 %v2929, %v2927
      %v2948 = vpack.c.b16 %v2930, %v2928
      %v2949 = vpack.c.b16 %v2933, %v2931
      %v2950 = vpack.c.b16 %v2934, %v2932
      %v2951 = vpack.c.b16 %v2935, %v2935
      %v2952 = vpack.c.b16 %v2936, %v2936
      %v2968 = vsel %vm2800, %v2638, 0
      %v2971 = vsel %vm2800, %v2639, 0
      %v2974 = vsel %vm2800, %v2640, 0
      %v2977 = vsel %vm2800, %v2641, 0
      %v2980 = vsel %vm1660, %v2951, 0
      %v2983 = vsel %vm1660, %v2952, 0
      %2985 = vmatprep.subr.bf16.mxu0 %v2983
      %2986 = vmatpush1.bf16.msra.mxu0 %v2980
      %2987 = vmatprep.subr.bf16.mxu0 %v2950
      %2988 = vmatpush1.bf16.msra.mxu0 %v2949
      %2989 = vmatprep.subr.bf16.mxu0 %v2948
      %2990 = vmatpush1.bf16.msra.mxu0 %v2947
      %2991 = vmatprep.subr.bf16.mxu0 %v2946
      %2992 = vmatpush1.bf16.msra.mxu0 %v2945
      %2993 = vmatprep.subr.bf16.mxu0 %v2944
      %2994 = vmatpush1.bf16.msra.mxu0 %v2943
      %2995 = vmatprep.subr.bf16.mxu0 %v2942
      %2996 = vmatpush1.bf16.msra.mxu0 %v2941
      %2997 = vmatprep.subr.bf16.mxu0 %v2940
      %2998 = vmatpush1.bf16.msra.mxu0 %v2939
      %2999 = vmatprep.subr.bf16.mxu0 %v2938
      %3000 = vmatpush1.bf16.msra.mxu0 %v2937
      %3001 = vmatprep.subr.bf16.mxu0 0
      %3002 = vmatpush2.bf16.msra.mxu0 0
      %3003 = vmatprep.subr.bf16.mxu0 0
      %3004 = vmatpush2.bf16.msra.mxu0 0
      %3005 = vmatprep.subr.bf16.mxu0 0
      %3006 = vmatpush2.bf16.msra.mxu0 0
      %3007 = vmatprep.subr.bf16.mxu0 0
      %3008 = vmatpush2.bf16.msra.mxu0 0
      %3009 = vmatprep.subr.bf16.mxu0 0
      %3010 = vmatpush2.bf16.msra.mxu0 0
      %3011 = vmatprep.subr.bf16.mxu0 0
      %3012 = vmatpush2.bf16.msra.mxu0 0
      %3013 = vmatprep.subr.bf16.mxu0 0
      %3014 = vmatpush2.bf16.msra.mxu0 0
      %3015 = vmatprep.subr.bf16.mxu0 0
      %3016 = vmatpush2.bf16.msra.mxu0 0
      %3017 = vmatprep.mubr.bf16.mxu0 0
      %3018 = vmatmul.mubr.bf16.gmra.mxu0 %v2968
      %v3019 = vpop.f32.mrf.mxu0
      %v3020 = vadd.f32 %v2854, %v3019
      %v3021 = vpop.f32.mrf.mxu0
      %v3022 = vadd.f32 %v2856, %v3021
      %v3023 = vpop.f32.mrf.mxu0
      %v3024 = vadd.f32 %v2858, %v3023
      %v3025 = vpop.f32.mrf.mxu0
      %v3026 = vadd.f32 %v2860, %v3025
      %3027 = vmatprep.mubr.bf16.mxu0 0
      %3028 = vmatmul.mubr.bf16.gmra.mxu0 %v2971
      %v3029 = vpop.f32.mrf.mxu0
      %v3030 = vadd.f32 %v2864, %v3029
      %v3031 = vpop.f32.mrf.mxu0
      %v3032 = vadd.f32 %v2866, %v3031
      %v3033 = vpop.f32.mrf.mxu0
      %v3034 = vadd.f32 %v2868, %v3033
      %v3035 = vpop.f32.mrf.mxu0
      %v3036 = vadd.f32 %v2870, %v3035
      %3037 = vmatprep.mubr.bf16.mxu0 0
      %3038 = vmatmul.mubr.bf16.gmra.mxu0 %v2974
      %v3039 = vpop.f32.mrf.mxu0
      %v3040 = vadd.f32 %v2874, %v3039
      %v3041 = vpop.f32.mrf.mxu0
      %v3042 = vadd.f32 %v2876, %v3041
      %v3043 = vpop.f32.mrf.mxu0
      %v3044 = vadd.f32 %v2878, %v3043
      %v3045 = vpop.f32.mrf.mxu0
      %v3046 = vadd.f32 %v2880, %v3045
      %3047 = vmatprep.mubr.bf16.mxu0 0
      %3048 = vmatmul.mubr.bf16.gmra.mxu0 %v2977
      %v3049 = vpop.f32.mrf.mxu0
      %v3050 = vadd.f32 %v2884, %v3049
      %v3051 = vpop.f32.mrf.mxu0
      %v3052 = vadd.f32 %v2886, %v3051
      %v3053 = vpop.f32.mrf.mxu0
      %v3054 = vadd.f32 %v2888, %v3053
      %v3055 = vpop.f32.mrf.mxu0
      %v3056 = vadd.f32 %v2890, %v3055
      %3057 = vdwg.mxu0
      %v3058 = vrot.slane %v2622, 2
      %v3059 = vrot.slane %v2623, 2
      %v3060 = vsel %vm570, %v3058, %v3059
      %v3061 = vrot.slane %v2624, 2
      %v3062 = vrot.slane %v2625, 2
      %v3063 = vsel %vm570, %v3061, %v3062
      %v3064 = vrot.slane %v2626, 2
      %v3065 = vrot.slane %v2627, 2
      %v3066 = vsel %vm570, %v3064, %v3065
      %v3067 = vrot.slane %v2628, 2
      %v3068 = vrot.slane %v2629, 2
      %v3069 = vsel %vm570, %v3067, %v3068
      %v3070 = vrot.slane %v2630, 2
      %v3071 = vrot.slane %v2631, 2
      %v3072 = vsel %vm570, %v3070, %v3071
      %v3073 = vrot.slane %v2632, 2
      %v3074 = vrot.slane %v2633, 2
      %v3075 = vsel %vm570, %v3073, %v3074
      %v3076 = vrot.slane %v2634, 2
      %v3077 = vrot.slane %v2635, 2
      %v3078 = vsel %vm570, %v3076, %v3077
      %v3079 = vrot.slane %v2636, 2
      %v3080 = vrot.slane %v2637, 2
      %v3081 = vsel %vm570, %v3079, %v3080
      %v3090 = vpack.c.bf16 %v3063, %v3060
      %v3091 = vpack.c.bf16 %v3069, %v3066
      %v3092 = vpack.c.bf16 %v3075, %v3072
      %v3093 = vpack.c.bf16 %v3081, %v3078
      %s3094 = scalar_lea.vmem %s3, 240
      %v3095 = vld [vmem:[%s3094] sm:$0xff]
      %v3096 = vld [vmem:[%s3094 + $0x8] sm:$0xff]
      %v3097 = vld [vmem:[%s3094 + $0x10] sm:$0xff]
      %v3098 = vld [vmem:[%s3094 + $0x18] sm:$0xff]
      %v3099 = vld [vmem:[%s3094 + $0x20] sm:$0xff]
      %v3100 = vld [vmem:[%s3094 + $0x28] sm:$0xff]
      %v3101 = vld [vmem:[%s3094 + $0x30] sm:$0xff]
      %v3102 = vld [vmem:[%s3094 + $0x38] sm:$0xff]
      %v3103 = vld [vmem:[%s3094 + $0x40] sm:$0xff]
      %v3104 = vld [vmem:[%s3094 + $0x48] sm:$0xff]
      %v3105 = vld [vmem:[%s3094 + $0x50] sm:$0xff]
      %v3106 = vld [vmem:[%s3094 + $0x58] sm:$0xff]
      %v3107 = vld [vmem:[%s3094 + $0x60] sm:$0xff]
      %v3108 = vld [vmem:[%s3094 + $0x68] sm:$0xff]
      %v3109 = vld [vmem:[%s3094 + $0x70] sm:$0xff]
      %v3125 = vunpack.c.l.b16 %v3095
      %v3126 = vunpack.c.h.b16 %v3095
      %v3127 = vunpack.c.l.b16 %v3096
      %v3128 = vunpack.c.h.b16 %v3096
      %v3129 = vunpack.c.l.b16 %v3097
      %v3130 = vunpack.c.h.b16 %v3097
      %v3131 = vunpack.c.l.b16 %v3098
      %v3132 = vunpack.c.h.b16 %v3098
      %v3133 = vunpack.c.l.b16 %v3099
      %v3134 = vunpack.c.h.b16 %v3099
      %v3135 = vunpack.c.l.b16 %v3100
      %v3136 = vunpack.c.h.b16 %v3100
      %v3137 = vunpack.c.l.b16 %v3101
      %v3138 = vunpack.c.h.b16 %v3101
      %v3139 = vunpack.c.l.b16 %v3102
      %v3140 = vunpack.c.h.b16 %v3102
      %v3141 = vunpack.c.l.b16 %v3103
      %v3142 = vunpack.c.h.b16 %v3103
      %v3143 = vunpack.c.l.b16 %v3104
      %v3144 = vunpack.c.h.b16 %v3104
      %v3145 = vunpack.c.l.b16 %v3105
      %v3146 = vunpack.c.h.b16 %v3105
      %v3147 = vunpack.c.l.b16 %v3106
      %v3148 = vunpack.c.h.b16 %v3106
      %v3149 = vunpack.c.l.b16 %v3107
      %v3150 = vunpack.c.h.b16 %v3107
      %v3151 = vunpack.c.l.b16 %v3108
      %v3152 = vunpack.c.h.b16 %v3108
      %v3153 = vunpack.c.l.b16 %v3109
      %v3154 = vunpack.c.h.b16 %v3109
      %v3155 = vpack.c.b16 %v3127, %v3125
      %v3156 = vpack.c.b16 %v3128, %v3126
      %v3157 = vpack.c.b16 %v3131, %v3129
      %v3158 = vpack.c.b16 %v3132, %v3130
      %v3159 = vpack.c.b16 %v3135, %v3133
      %v3160 = vpack.c.b16 %v3136, %v3134
      %v3161 = vpack.c.b16 %v3139, %v3137
      %v3162 = vpack.c.b16 %v3140, %v3138
      %v3163 = vpack.c.b16 %v3143, %v3141
      %v3164 = vpack.c.b16 %v3144, %v3142
      %v3165 = vpack.c.b16 %v3147, %v3145
      %v3166 = vpack.c.b16 %v3148, %v3146
      %v3167 = vpack.c.b16 %v3151, %v3149
      %v3168 = vpack.c.b16 %v3152, %v3150
      %v3169 = vpack.c.b16 %v3153, %v3153
      %v3170 = vpack.c.b16 %v3154, %v3154
      %v3186 = vsel %vm2800, %v3090, 0
      %v3189 = vsel %vm2800, %v3091, 0
      %v3192 = vsel %vm2800, %v3092, 0
      %v3195 = vsel %vm2800, %v3093, 0
      %v3198 = vsel %vm1660, %v3169, 0
      %v3201 = vsel %vm1660, %v3170, 0
      %3203 = vmatprep.subr.bf16.mxu0 %v3201
      %3204 = vmatpush1.bf16.msra.mxu0 %v3198
      %3205 = vmatprep.subr.bf16.mxu0 %v3168
      %3206 = vmatpush1.bf16.msra.mxu0 %v3167
      %3207 = vmatprep.subr.bf16.mxu0 %v3166
      %3208 = vmatpush1.bf16.msra.mxu0 %v3165
      %3209 = vmatprep.subr.bf16.mxu0 %v3164
      %3210 = vmatpush1.bf16.msra.mxu0 %v3163
      %3211 = vmatprep.subr.bf16.mxu0 %v3162
      %3212 = vmatpush1.bf16.msra.mxu0 %v3161
      %3213 = vmatprep.subr.bf16.mxu0 %v3160
      %3214 = vmatpush1.bf16.msra.mxu0 %v3159
      %3215 = vmatprep.subr.bf16.mxu0 %v3158
      %3216 = vmatpush1.bf16.msra.mxu0 %v3157
      %3217 = vmatprep.subr.bf16.mxu0 %v3156
      %3218 = vmatpush1.bf16.msra.mxu0 %v3155
      %3219 = vmatprep.subr.bf16.mxu0 0
      %3220 = vmatpush2.bf16.msra.mxu0 0
      %3221 = vmatprep.subr.bf16.mxu0 0
      %3222 = vmatpush2.bf16.msra.mxu0 0
      %3223 = vmatprep.subr.bf16.mxu0 0
      %3224 = vmatpush2.bf16.msra.mxu0 0
      %3225 = vmatprep.subr.bf16.mxu0 0
      %3226 = vmatpush2.bf16.msra.mxu0 0
      %3227 = vmatprep.subr.bf16.mxu0 0
      %3228 = vmatpush2.bf16.msra.mxu0 0
      %3229 = vmatprep.subr.bf16.mxu0 0
      %3230 = vmatpush2.bf16.msra.mxu0 0
      %3231 = vmatprep.subr.bf16.mxu0 0
      %3232 = vmatpush2.bf16.msra.mxu0 0
      %3233 = vmatprep.subr.bf16.mxu0 0
      %3234 = vmatpush2.bf16.msra.mxu0 0
      %3235 = vmatprep.mubr.bf16.mxu0 0
      %3236 = vmatmul.mubr.bf16.gmra.mxu0 %v3186
      %v3237 = vpop.f32.mrf.mxu0
      %v3238 = vadd.f32 0.0, %v3237
      %v3239 = vpop.f32.mrf.mxu0
      %v3240 = vadd.f32 0.0, %v3239
      %v3241 = vpop.f32.mrf.mxu0
      %v3242 = vadd.f32 0.0, %v3241
      %v3243 = vpop.f32.mrf.mxu0
      %v3244 = vadd.f32 0.0, %v3243
      %3245 = vmatprep.mubr.bf16.mxu0 0
      %3246 = vmatmul.mubr.bf16.gmra.mxu0 %v3189
      %v3247 = vpop.f32.mrf.mxu0
      %v3248 = vadd.f32 0.0, %v3247
      %v3249 = vpop.f32.mrf.mxu0
      %v3250 = vadd.f32 0.0, %v3249
      %v3251 = vpop.f32.mrf.mxu0
      %v3252 = vadd.f32 0.0, %v3251
      %v3253 = vpop.f32.mrf.mxu0
      %v3254 = vadd.f32 0.0, %v3253
      %3255 = vmatprep.mubr.bf16.mxu0 0
      %3256 = vmatmul.mubr.bf16.gmra.mxu0 %v3192
      %v3257 = vpop.f32.mrf.mxu0
      %v3258 = vadd.f32 0.0, %v3257
      %v3259 = vpop.f32.mrf.mxu0
      %v3260 = vadd.f32 0.0, %v3259
      %v3261 = vpop.f32.mrf.mxu0
      %v3262 = vadd.f32 0.0, %v3261
      %v3263 = vpop.f32.mrf.mxu0
      %v3264 = vadd.f32 0.0, %v3263
      %3265 = vmatprep.mubr.bf16.mxu0 0
      %3266 = vmatmul.mubr.bf16.gmra.mxu0 %v3195
      %v3267 = vpop.f32.mrf.mxu0
      %v3268 = vadd.f32 0.0, %v3267
      %v3269 = vpop.f32.mrf.mxu0
      %v3270 = vadd.f32 0.0, %v3269
      %v3271 = vpop.f32.mrf.mxu0
      %v3272 = vadd.f32 0.0, %v3271
      %v3273 = vpop.f32.mrf.mxu0
      %v3274 = vadd.f32 0.0, %v3273
      %3275 = vdwg.mxu0
      %v3276 = vadd.f32 %v3020, %v3238
      %v3277 = vadd.f32 %v3022, %v3240
      %v3278 = vadd.f32 %v3024, %v3242
      %v3279 = vadd.f32 %v3026, %v3244
      %v3280 = vadd.f32 %v3030, %v3248
      %v3281 = vadd.f32 %v3032, %v3250
      %v3282 = vadd.f32 %v3034, %v3252
      %v3283 = vadd.f32 %v3036, %v3254
      %v3284 = vadd.f32 %v3040, %v3258
      %v3285 = vadd.f32 %v3042, %v3260
      %v3286 = vadd.f32 %v3044, %v3262
      %v3287 = vadd.f32 %v3046, %v3264
      %v3288 = vadd.f32 %v3050, %v3268
      %v3289 = vadd.f32 %v3052, %v3270
      %v3290 = vadd.f32 %v3054, %v3272
      %v3291 = vadd.f32 %v3056, %v3274
      %v3292 = vrot.slane %v2622, 3
      %v3293 = vrot.slane %v2623, 3
      %v3294 = vsel %vm1301, %v3292, %v3293
      %v3295 = vrot.slane %v2624, 3
      %v3296 = vrot.slane %v2625, 3
      %v3297 = vsel %vm1301, %v3295, %v3296
      %v3298 = vrot.slane %v2626, 3
      %v3299 = vrot.slane %v2627, 3
      %v3300 = vsel %vm1301, %v3298, %v3299
      %v3301 = vrot.slane %v2628, 3
      %v3302 = vrot.slane %v2629, 3
      %v3303 = vsel %vm1301, %v3301, %v3302
      %v3304 = vrot.slane %v2630, 3
      %v3305 = vrot.slane %v2631, 3
      %v3306 = vsel %vm1301, %v3304, %v3305
      %v3307 = vrot.slane %v2632, 3
      %v3308 = vrot.slane %v2633, 3
      %v3309 = vsel %vm1301, %v3307, %v3308
      %v3310 = vrot.slane %v2634, 3
      %v3311 = vrot.slane %v2635, 3
      %v3312 = vsel %vm1301, %v3310, %v3311
      %v3313 = vrot.slane %v2636, 3
      %v3314 = vrot.slane %v2637, 3
      %v3315 = vsel %vm1301, %v3313, %v3314
      %v3324 = vpack.c.bf16 %v3297, %v3294
      %v3325 = vpack.c.bf16 %v3303, %v3300
      %v3326 = vpack.c.bf16 %v3309, %v3306
      %v3327 = vpack.c.bf16 %v3315, %v3312
      %s3328 = scalar_lea.vmem %s3, 360
      %v3329 = vld [vmem:[%s3328] sm:$0xff]
      %v3330 = vld [vmem:[%s3328 + $0x8] sm:$0xff]
      %v3331 = vld [vmem:[%s3328 + $0x10] sm:$0xff]
      %v3332 = vld [vmem:[%s3328 + $0x18] sm:$0xff]
      %v3333 = vld [vmem:[%s3328 + $0x20] sm:$0xff]
      %v3334 = vld [vmem:[%s3328 + $0x28] sm:$0xff]
      %v3335 = vld [vmem:[%s3328 + $0x30] sm:$0xff]
      %v3336 = vld [vmem:[%s3328 + $0x38] sm:$0xff]
      %v3337 = vld [vmem:[%s3328 + $0x40] sm:$0xff]
      %v3338 = vld [vmem:[%s3328 + $0x48] sm:$0xff]
      %v3339 = vld [vmem:[%s3328 + $0x50] sm:$0xff]
      %v3340 = vld [vmem:[%s3328 + $0x58] sm:$0xff]
      %v3341 = vld [vmem:[%s3328 + $0x60] sm:$0xff]
      %v3342 = vld [vmem:[%s3328 + $0x68] sm:$0xff]
      %v3343 = vld [vmem:[%s3328 + $0x70] sm:$0xff]
      %v3359 = vunpack.c.l.b16 %v3329
      %v3360 = vunpack.c.h.b16 %v3329
      %v3361 = vunpack.c.l.b16 %v3330
      %v3362 = vunpack.c.h.b16 %v3330
      %v3363 = vunpack.c.l.b16 %v3331
      %v3364 = vunpack.c.h.b16 %v3331
      %v3365 = vunpack.c.l.b16 %v3332
      %v3366 = vunpack.c.h.b16 %v3332
      %v3367 = vunpack.c.l.b16 %v3333
      %v3368 = vunpack.c.h.b16 %v3333
      %v3369 = vunpack.c.l.b16 %v3334
      %v3370 = vunpack.c.h.b16 %v3334
      %v3371 = vunpack.c.l.b16 %v3335
      %v3372 = vunpack.c.h.b16 %v3335
      %v3373 = vunpack.c.l.b16 %v3336
      %v3374 = vunpack.c.h.b16 %v3336
      %v3375 = vunpack.c.l.b16 %v3337
      %v3376 = vunpack.c.h.b16 %v3337
      %v3377 = vunpack.c.l.b16 %v3338
      %v3378 = vunpack.c.h.b16 %v3338
      %v3379 = vunpack.c.l.b16 %v3339
      %v3380 = vunpack.c.h.b16 %v3339
      %v3381 = vunpack.c.l.b16 %v3340
      %v3382 = vunpack.c.h.b16 %v3340
      %v3383 = vunpack.c.l.b16 %v3341
      %v3384 = vunpack.c.h.b16 %v3341
      %v3385 = vunpack.c.l.b16 %v3342
      %v3386 = vunpack.c.h.b16 %v3342
      %v3387 = vunpack.c.l.b16 %v3343
      %v3388 = vunpack.c.h.b16 %v3343
      %v3389 = vpack.c.b16 %v3361, %v3359
      %v3390 = vpack.c.b16 %v3362, %v3360
      %v3391 = vpack.c.b16 %v3365, %v3363
      %v3392 = vpack.c.b16 %v3366, %v3364
      %v3393 = vpack.c.b16 %v3369, %v3367
      %v3394 = vpack.c.b16 %v3370, %v3368
      %v3395 = vpack.c.b16 %v3373, %v3371
      %v3396 = vpack.c.b16 %v3374, %v3372
      %v3397 = vpack.c.b16 %v3377, %v3375
      %v3398 = vpack.c.b16 %v3378, %v3376
      %v3399 = vpack.c.b16 %v3381, %v3379
      %v3400 = vpack.c.b16 %v3382, %v3380
      %v3401 = vpack.c.b16 %v3385, %v3383
      %v3402 = vpack.c.b16 %v3386, %v3384
      %v3403 = vpack.c.b16 %v3387, %v3387
      %v3404 = vpack.c.b16 %v3388, %v3388
      %v3420 = vsel %vm2800, %v3324, 0
      %v3423 = vsel %vm2800, %v3325, 0
      %v3426 = vsel %vm2800, %v3326, 0
      %v3429 = vsel %vm2800, %v3327, 0
      %v3432 = vsel %vm1660, %v3403, 0
      %v3435 = vsel %vm1660, %v3404, 0
      %3437 = vmatprep.subr.bf16.mxu0 %v3435
      %3438 = vmatpush1.bf16.msra.mxu0 %v3432
      %3439 = vmatprep.subr.bf16.mxu0 %v3402
      %3440 = vmatpush1.bf16.msra.mxu0 %v3401
      %3441 = vmatprep.subr.bf16.mxu0 %v3400
      %3442 = vmatpush1.bf16.msra.mxu0 %v3399
      %3443 = vmatprep.subr.bf16.mxu0 %v3398
      %3444 = vmatpush1.bf16.msra.mxu0 %v3397
      %3445 = vmatprep.subr.bf16.mxu0 %v3396
      %3446 = vmatpush1.bf16.msra.mxu0 %v3395
      %3447 = vmatprep.subr.bf16.mxu0 %v3394
      %3448 = vmatpush1.bf16.msra.mxu0 %v3393
      %3449 = vmatprep.subr.bf16.mxu0 %v3392
      %3450 = vmatpush1.bf16.msra.mxu0 %v3391
      %3451 = vmatprep.subr.bf16.mxu0 %v3390
      %3452 = vmatpush1.bf16.msra.mxu0 %v3389
      %3453 = vmatprep.subr.bf16.mxu0 0
      %3454 = vmatpush2.bf16.msra.mxu0 0
      %3455 = vmatprep.subr.bf16.mxu0 0
      %3456 = vmatpush2.bf16.msra.mxu0 0
      %3457 = vmatprep.subr.bf16.mxu0 0
      %3458 = vmatpush2.bf16.msra.mxu0 0
      %3459 = vmatprep.subr.bf16.mxu0 0
      %3460 = vmatpush2.bf16.msra.mxu0 0
      %3461 = vmatprep.subr.bf16.mxu0 0
      %3462 = vmatpush2.bf16.msra.mxu0 0
      %3463 = vmatprep.subr.bf16.mxu0 0
      %3464 = vmatpush2.bf16.msra.mxu0 0
      %3465 = vmatprep.subr.bf16.mxu0 0
      %3466 = vmatpush2.bf16.msra.mxu0 0
      %3467 = vmatprep.subr.bf16.mxu0 0
      %3468 = vmatpush2.bf16.msra.mxu0 0
      %3469 = vmatprep.mubr.bf16.mxu0 0
      %3470 = vmatmul.mubr.bf16.gmra.mxu0 %v3420
      %v3471 = vpop.f32.mrf.mxu0
      %v3472 = vadd.f32 0.0, %v3471
      %v3473 = vpop.f32.mrf.mxu0
      %v3474 = vadd.f32 0.0, %v3473
      %v3475 = vpop.f32.mrf.mxu0
      %v3476 = vadd.f32 0.0, %v3475
      %v3477 = vpop.f32.mrf.mxu0
      %v3478 = vadd.f32 0.0, %v3477
      %3479 = vmatprep.mubr.bf16.mxu0 0
      %3480 = vmatmul.mubr.bf16.gmra.mxu0 %v3423
      %v3481 = vpop.f32.mrf.mxu0
      %v3482 = vadd.f32 0.0, %v3481
      %v3483 = vpop.f32.mrf.mxu0
      %v3484 = vadd.f32 0.0, %v3483
      %v3485 = vpop.f32.mrf.mxu0
      %v3486 = vadd.f32 0.0, %v3485
      %v3487 = vpop.f32.mrf.mxu0
      %v3488 = vadd.f32 0.0, %v3487
      %3489 = vmatprep.mubr.bf16.mxu0 0
      %3490 = vmatmul.mubr.bf16.gmra.mxu0 %v3426
      %v3491 = vpop.f32.mrf.mxu0
      %v3492 = vadd.f32 0.0, %v3491
      %v3493 = vpop.f32.mrf.mxu0
      %v3494 = vadd.f32 0.0, %v3493
      %v3495 = vpop.f32.mrf.mxu0
      %v3496 = vadd.f32 0.0, %v3495
      %v3497 = vpop.f32.mrf.mxu0
      %v3498 = vadd.f32 0.0, %v3497
      %3499 = vmatprep.mubr.bf16.mxu0 0
      %3500 = vmatmul.mubr.bf16.gmra.mxu0 %v3429
      %v3501 = vpop.f32.mrf.mxu0
      %v3502 = vadd.f32 0.0, %v3501
      %v3503 = vpop.f32.mrf.mxu0
      %v3504 = vadd.f32 0.0, %v3503
      %v3505 = vpop.f32.mrf.mxu0
      %v3506 = vadd.f32 0.0, %v3505
      %v3507 = vpop.f32.mrf.mxu0
      %v3508 = vadd.f32 0.0, %v3507
      %3509 = vdwg.mxu0
      %v3510 = vadd.f32 %v3276, %v3472
      %v3511 = vadd.f32 %v3277, %v3474
      %v3512 = vadd.f32 %v3278, %v3476
      %v3513 = vadd.f32 %v3279, %v3478
      %v3514 = vadd.f32 %v3280, %v3482
      %v3515 = vadd.f32 %v3281, %v3484
      %v3516 = vadd.f32 %v3282, %v3486
      %v3517 = vadd.f32 %v3283, %v3488
      %v3518 = vadd.f32 %v3284, %v3492
      %v3519 = vadd.f32 %v3285, %v3494
      %v3520 = vadd.f32 %v3286, %v3496
      %v3521 = vadd.f32 %v3287, %v3498
      %v3522 = vadd.f32 %v3288, %v3502
      %v3523 = vadd.f32 %v3289, %v3504
      %v3524 = vadd.f32 %v3290, %v3506
      %v3525 = vadd.f32 %v3291, %v3508
      %v3526 = vrot.slane %v2622, 4
      %v3527 = vrot.slane %v2623, 4
      %v3528 = vsel %vm1660, %v3526, %v3527
      %v3529 = vrot.slane %v2624, 4
      %v3530 = vrot.slane %v2625, 4
      %v3531 = vsel %vm1660, %v3529, %v3530
      %v3532 = vrot.slane %v2626, 4
      %v3533 = vrot.slane %v2627, 4
      %v3534 = vsel %vm1660, %v3532, %v3533
      %v3535 = vrot.slane %v2628, 4
      %v3536 = vrot.slane %v2629, 4
      %v3537 = vsel %vm1660, %v3535, %v3536
      %v3538 = vrot.slane %v2630, 4
      %v3539 = vrot.slane %v2631, 4
      %v3540 = vsel %vm1660, %v3538, %v3539
      %v3541 = vrot.slane %v2632, 4
      %v3542 = vrot.slane %v2633, 4
      %v3543 = vsel %vm1660, %v3541, %v3542
      %v3544 = vrot.slane %v2634, 4
      %v3545 = vrot.slane %v2635, 4
      %v3546 = vsel %vm1660, %v3544, %v3545
      %v3547 = vrot.slane %v2636, 4
      %v3548 = vrot.slane %v2637, 4
      %v3549 = vsel %vm1660, %v3547, %v3548
      %v3558 = vpack.c.bf16 %v3531, %v3528
      %v3559 = vpack.c.bf16 %v3537, %v3534
      %v3560 = vpack.c.bf16 %v3543, %v3540
      %v3561 = vpack.c.bf16 %v3549, %v3546
      %s3562 = scalar_lea.vmem %s3, 480
      %v3563 = vld [vmem:[%s3562] sm:$0xff]
      %v3564 = vld [vmem:[%s3562 + $0x8] sm:$0xff]
      %v3565 = vld [vmem:[%s3562 + $0x10] sm:$0xff]
      %v3566 = vld [vmem:[%s3562 + $0x18] sm:$0xff]
      %v3567 = vld [vmem:[%s3562 + $0x20] sm:$0xff]
      %v3568 = vld [vmem:[%s3562 + $0x28] sm:$0xff]
      %v3569 = vld [vmem:[%s3562 + $0x30] sm:$0xff]
      %v3570 = vld [vmem:[%s3562 + $0x38] sm:$0xff]
      %v3571 = vld [vmem:[%s3562 + $0x40] sm:$0xff]
      %v3572 = vld [vmem:[%s3562 + $0x48] sm:$0xff]
      %v3573 = vld [vmem:[%s3562 + $0x50] sm:$0xff]
      %v3574 = vld [vmem:[%s3562 + $0x58] sm:$0xff]
      %v3575 = vld [vmem:[%s3562 + $0x60] sm:$0xff]
      %v3576 = vld [vmem:[%s3562 + $0x68] sm:$0xff]
      %v3577 = vld [vmem:[%s3562 + $0x70] sm:$0xff]
      %v3593 = vunpack.c.l.b16 %v3563
      %v3594 = vunpack.c.h.b16 %v3563
      %v3595 = vunpack.c.l.b16 %v3564
      %v3596 = vunpack.c.h.b16 %v3564
      %v3597 = vunpack.c.l.b16 %v3565
      %v3598 = vunpack.c.h.b16 %v3565
      %v3599 = vunpack.c.l.b16 %v3566
      %v3600 = vunpack.c.h.b16 %v3566
      %v3601 = vunpack.c.l.b16 %v3567
      %v3602 = vunpack.c.h.b16 %v3567
      %v3603 = vunpack.c.l.b16 %v3568
      %v3604 = vunpack.c.h.b16 %v3568
      %v3605 = vunpack.c.l.b16 %v3569
      %v3606 = vunpack.c.h.b16 %v3569
      %v3607 = vunpack.c.l.b16 %v3570
      %v3608 = vunpack.c.h.b16 %v3570
      %v3609 = vunpack.c.l.b16 %v3571
      %v3610 = vunpack.c.h.b16 %v3571
      %v3611 = vunpack.c.l.b16 %v3572
      %v3612 = vunpack.c.h.b16 %v3572
      %v3613 = vunpack.c.l.b16 %v3573
      %v3614 = vunpack.c.h.b16 %v3573
      %v3615 = vunpack.c.l.b16 %v3574
      %v3616 = vunpack.c.h.b16 %v3574
      %v3617 = vunpack.c.l.b16 %v3575
      %v3618 = vunpack.c.h.b16 %v3575
      %v3619 = vunpack.c.l.b16 %v3576
      %v3620 = vunpack.c.h.b16 %v3576
      %v3621 = vunpack.c.l.b16 %v3577
      %v3622 = vunpack.c.h.b16 %v3577
      %v3623 = vpack.c.b16 %v3595, %v3593
      %v3624 = vpack.c.b16 %v3596, %v3594
      %v3625 = vpack.c.b16 %v3599, %v3597
      %v3626 = vpack.c.b16 %v3600, %v3598
      %v3627 = vpack.c.b16 %v3603, %v3601
      %v3628 = vpack.c.b16 %v3604, %v3602
      %v3629 = vpack.c.b16 %v3607, %v3605
      %v3630 = vpack.c.b16 %v3608, %v3606
      %v3631 = vpack.c.b16 %v3611, %v3609
      %v3632 = vpack.c.b16 %v3612, %v3610
      %v3633 = vpack.c.b16 %v3615, %v3613
      %v3634 = vpack.c.b16 %v3616, %v3614
      %v3635 = vpack.c.b16 %v3619, %v3617
      %v3636 = vpack.c.b16 %v3620, %v3618
      %v3637 = vpack.c.b16 %v3621, %v3621
      %v3638 = vpack.c.b16 %v3622, %v3622
      %v3654 = vsel %vm2800, %v3558, 0
      %v3657 = vsel %vm2800, %v3559, 0
      %v3660 = vsel %vm2800, %v3560, 0
      %v3663 = vsel %vm2800, %v3561, 0
      %v3666 = vsel %vm1660, %v3637, 0
      %v3669 = vsel %vm1660, %v3638, 0
      %3671 = vmatprep.subr.bf16.mxu0 %v3669
      %3672 = vmatpush1.bf16.msra.mxu0 %v3666
      %3673 = vmatprep.subr.bf16.mxu0 %v3636
      %3674 = vmatpush1.bf16.msra.mxu0 %v3635
      %3675 = vmatprep.subr.bf16.mxu0 %v3634
      %3676 = vmatpush1.bf16.msra.mxu0 %v3633
      %3677 = vmatprep.subr.bf16.mxu0 %v3632
      %3678 = vmatpush1.bf16.msra.mxu0 %v3631
      %3679 = vmatprep.subr.bf16.mxu0 %v3630
      %3680 = vmatpush1.bf16.msra.mxu0 %v3629
      %3681 = vmatprep.subr.bf16.mxu0 %v3628
      %3682 = vmatpush1.bf16.msra.mxu0 %v3627
      %3683 = vmatprep.subr.bf16.mxu0 %v3626
      %3684 = vmatpush1.bf16.msra.mxu0 %v3625
      %3685 = vmatprep.subr.bf16.mxu0 %v3624
      %3686 = vmatpush1.bf16.msra.mxu0 %v3623
      %3687 = vmatprep.subr.bf16.mxu0 0
      %3688 = vmatpush2.bf16.msra.mxu0 0
      %3689 = vmatprep.subr.bf16.mxu0 0
      %3690 = vmatpush2.bf16.msra.mxu0 0
      %3691 = vmatprep.subr.bf16.mxu0 0
      %3692 = vmatpush2.bf16.msra.mxu0 0
      %3693 = vmatprep.subr.bf16.mxu0 0
      %3694 = vmatpush2.bf16.msra.mxu0 0
      %3695 = vmatprep.subr.bf16.mxu0 0
      %3696 = vmatpush2.bf16.msra.mxu0 0
      %3697 = vmatprep.subr.bf16.mxu0 0
      %3698 = vmatpush2.bf16.msra.mxu0 0
      %3699 = vmatprep.subr.bf16.mxu0 0
      %3700 = vmatpush2.bf16.msra.mxu0 0
      %3701 = vmatprep.subr.bf16.mxu0 0
      %3702 = vmatpush2.bf16.msra.mxu0 0
      %3703 = vmatprep.mubr.bf16.mxu0 0
      %3704 = vmatmul.mubr.bf16.gmra.mxu0 %v3654
      %v3705 = vpop.f32.mrf.mxu0
      %v3706 = vadd.f32 0.0, %v3705
      %v3707 = vpop.f32.mrf.mxu0
      %v3708 = vadd.f32 0.0, %v3707
      %v3709 = vpop.f32.mrf.mxu0
      %v3710 = vadd.f32 0.0, %v3709
      %v3711 = vpop.f32.mrf.mxu0
      %v3712 = vadd.f32 0.0, %v3711
      %3713 = vmatprep.mubr.bf16.mxu0 0
      %3714 = vmatmul.mubr.bf16.gmra.mxu0 %v3657
      %v3715 = vpop.f32.mrf.mxu0
      %v3716 = vadd.f32 0.0, %v3715
      %v3717 = vpop.f32.mrf.mxu0
      %v3718 = vadd.f32 0.0, %v3717
      %v3719 = vpop.f32.mrf.mxu0
      %v3720 = vadd.f32 0.0, %v3719
      %v3721 = vpop.f32.mrf.mxu0
      %v3722 = vadd.f32 0.0, %v3721
      %3723 = vmatprep.mubr.bf16.mxu0 0
      %3724 = vmatmul.mubr.bf16.gmra.mxu0 %v3660
      %v3725 = vpop.f32.mrf.mxu0
      %v3726 = vadd.f32 0.0, %v3725
      %v3727 = vpop.f32.mrf.mxu0
      %v3728 = vadd.f32 0.0, %v3727
      %v3729 = vpop.f32.mrf.mxu0
      %v3730 = vadd.f32 0.0, %v3729
      %v3731 = vpop.f32.mrf.mxu0
      %v3732 = vadd.f32 0.0, %v3731
      %3733 = vmatprep.mubr.bf16.mxu0 0
      %3734 = vmatmul.mubr.bf16.gmra.mxu0 %v3663
      %v3735 = vpop.f32.mrf.mxu0
      %v3736 = vadd.f32 0.0, %v3735
      %v3737 = vpop.f32.mrf.mxu0
      %v3738 = vadd.f32 0.0, %v3737
      %v3739 = vpop.f32.mrf.mxu0
      %v3740 = vadd.f32 0.0, %v3739
      %v3741 = vpop.f32.mrf.mxu0
      %v3742 = vadd.f32 0.0, %v3741
      %3743 = vdwg.mxu0
      %v3744 = vadd.f32 %v3510, %v3706
      %v3745 = vadd.f32 %v3511, %v3708
      %v3746 = vadd.f32 %v3512, %v3710
      %v3747 = vadd.f32 %v3513, %v3712
      %v3748 = vadd.f32 %v3514, %v3716
      %v3749 = vadd.f32 %v3515, %v3718
      %v3750 = vadd.f32 %v3516, %v3720
      %v3751 = vadd.f32 %v3517, %v3722
      %v3752 = vadd.f32 %v3518, %v3726
      %v3753 = vadd.f32 %v3519, %v3728
      %v3754 = vadd.f32 %v3520, %v3730
      %v3755 = vadd.f32 %v3521, %v3732
      %v3756 = vadd.f32 %v3522, %v3736
      %v3757 = vadd.f32 %v3523, %v3738
      %v3758 = vadd.f32 %v3524, %v3740
      %v3759 = vadd.f32 %v3525, %v3742
      %3776 = vrot.lane.b32.xlu0 %v3744, 48
      %v3777 = vpop.permute.xlu0 %3776
      %3778 = vrot.lane.b32.xlu0 %v3745, 48
      %v3779 = vpop.permute.xlu0 %3778
      %3780 = vrot.lane.b32.xlu0 %v3746, 48
      %v3781 = vpop.permute.xlu0 %3780
      %3782 = vrot.lane.b32.xlu0 %v3747, 48
      %v3783 = vpop.permute.xlu0 %3782
      %3784 = vrot.lane.b32.xlu0 %v3748, 48
      %v3785 = vpop.permute.xlu0 %3784
      %3786 = vrot.lane.b32.xlu0 %v3749, 48
      %v3787 = vpop.permute.xlu0 %3786
      %3788 = vrot.lane.b32.xlu0 %v3750, 48
      %v3789 = vpop.permute.xlu0 %3788
      %3790 = vrot.lane.b32.xlu0 %v3751, 48
      %v3791 = vpop.permute.xlu0 %3790
      %3792 = vrot.lane.b32.xlu0 %v3752, 48
      %v3793 = vpop.permute.xlu0 %3792
      %3794 = vrot.lane.b32.xlu0 %v3753, 48
      %v3795 = vpop.permute.xlu0 %3794
      %3796 = vrot.lane.b32.xlu0 %v3754, 48
      %v3797 = vpop.permute.xlu0 %3796
      %3798 = vrot.lane.b32.xlu0 %v3755, 48
      %v3799 = vpop.permute.xlu0 %3798
      %3800 = vrot.lane.b32.xlu0 %v3756, 48
      %v3801 = vpop.permute.xlu0 %3800
      %3802 = vrot.lane.b32.xlu0 %v3757, 48
      %v3803 = vpop.permute.xlu0 %3802
      %3804 = vrot.lane.b32.xlu0 %v3758, 48
      %v3805 = vpop.permute.xlu0 %3804
      %3806 = vrot.lane.b32.xlu0 %v3759, 48
      %v3807 = vpop.permute.xlu0 %3806
      %vm3808 = vcmask 392192
      %v3809 = vsel %vm3808, %v3777, %v3779
      %v3810 = vsel %vm3808, %v3781, %v3783
      %v3811 = vsel %vm3808, %v3785, %v3787
      %v3812 = vsel %vm3808, %v3789, %v3791
      %v3813 = vsel %vm3808, %v3793, %v3795
      %v3814 = vsel %vm3808, %v3797, %v3799
      %v3815 = vsel %vm3808, %v3801, %v3803
      %v3816 = vsel %vm3808, %v3805, %v3807
      %v3825 = vmax.f32 %v3744, %v3809
      %v3826 = vmax.f32 %v3746, %v3810
      %v3827 = vmax.f32 %v3748, %v3811
      %v3828 = vmax.f32 %v3750, %v3812
      %v3829 = vmax.f32 %v3752, %v3813
      %v3830 = vmax.f32 %v3754, %v3814
      %v3831 = vmax.f32 %v3756, %v3815
      %v3832 = vmax.f32 %v3758, %v3816
      %3833 = vrot.lane.b32.xlu0 %v3745, 96
      %v3834 = vpop.permute.xlu0 %3833
      %3835 = vrot.lane.b32.xlu0 %v3747, 96
      %v3836 = vpop.permute.xlu0 %3835
      %3837 = vrot.lane.b32.xlu0 %v3749, 96
      %v3838 = vpop.permute.xlu0 %3837
      %3839 = vrot.lane.b32.xlu0 %v3751, 96
      %v3840 = vpop.permute.xlu0 %3839
      %3841 = vrot.lane.b32.xlu0 %v3753, 96
      %v3842 = vpop.permute.xlu0 %3841
      %3843 = vrot.lane.b32.xlu0 %v3755, 96
      %v3844 = vpop.permute.xlu0 %3843
      %3845 = vrot.lane.b32.xlu0 %v3757, 96
      %v3846 = vpop.permute.xlu0 %3845
      %3847 = vrot.lane.b32.xlu0 %v3759, 96
      %v3848 = vpop.permute.xlu0 %3847
      %v3857 = vmax.f32 %v3825, %v3834
      %v3858 = vmax.f32 %v3826, %v3836
      %v3859 = vmax.f32 %v3827, %v3838
      %v3860 = vmax.f32 %v3828, %v3840
      %v3861 = vmax.f32 %v3829, %v3842
      %v3862 = vmax.f32 %v3830, %v3844
      %v3863 = vmax.f32 %v3831, %v3846
      %v3864 = vmax.f32 %v3832, %v3848
      %v3873 = vrot.slane %v3857, 1
      %v3874 = vrot.slane %v3858, 1
      %v3875 = vrot.slane %v3859, 1
      %v3876 = vrot.slane %v3860, 1
      %v3877 = vrot.slane %v3861, 1
      %v3878 = vrot.slane %v3862, 1
      %v3879 = vrot.slane %v3863, 1
      %v3880 = vrot.slane %v3864, 1
      %v3889 = vmax.f32 %v3857, %v3873
      %v3890 = vmax.f32 %v3858, %v3874
      %v3891 = vmax.f32 %v3859, %v3875
      %v3892 = vmax.f32 %v3860, %v3876
      %v3893 = vmax.f32 %v3861, %v3877
      %v3894 = vmax.f32 %v3862, %v3878
      %v3895 = vmax.f32 %v3863, %v3879
      %v3896 = vmax.f32 %v3864, %v3880
      %v3897 = vrot.slane %v3857, 2
      %v3898 = vrot.slane %v3858, 2
      %v3899 = vrot.slane %v3859, 2
      %v3900 = vrot.slane %v3860, 2
      %v3901 = vrot.slane %v3861, 2
      %v3902 = vrot.slane %v3862, 2
      %v3903 = vrot.slane %v3863, 2
      %v3904 = vrot.slane %v3864, 2
      %v3913 = vmax.f32 %v3889, %v3897
      %v3914 = vmax.f32 %v3890, %v3898
      %v3915 = vmax.f32 %v3891, %v3899
      %v3916 = vmax.f32 %v3892, %v3900
      %v3917 = vmax.f32 %v3893, %v3901
      %v3918 = vmax.f32 %v3894, %v3902
      %v3919 = vmax.f32 %v3895, %v3903
      %v3920 = vmax.f32 %v3896, %v3904
      %v3929 = vrot.slane %v3913, 1
      %v3930 = vrot.slane %v3914, 1
      %v3931 = vrot.slane %v3915, 1
      %v3932 = vrot.slane %v3916, 1
      %v3933 = vrot.slane %v3917, 1
      %v3934 = vrot.slane %v3918, 1
      %v3935 = vrot.slane %v3919, 1
      %v3936 = vrot.slane %v3920, 1
      %v3945 = vrot.slane %v3913, 2
      %v3946 = vrot.slane %v3914, 2
      %v3947 = vrot.slane %v3915, 2
      %v3948 = vrot.slane %v3916, 2
      %v3949 = vrot.slane %v3917, 2
      %v3950 = vrot.slane %v3918, 2
      %v3951 = vrot.slane %v3919, 2
      %v3952 = vrot.slane %v3920, 2
      %v3969 = vrot.slane %v3889, 3
      %v3970 = vrot.slane %v3890, 3
      %v3971 = vrot.slane %v3891, 3
      %v3972 = vrot.slane %v3892, 3
      %v3973 = vrot.slane %v3893, 3
      %v3974 = vrot.slane %v3894, 3
      %v3975 = vrot.slane %v3895, 3
      %v3976 = vrot.slane %v3896, 3
      %v3985 = vsel %vm2516, %v3913, %v3929
      %v3986 = vsel %vm2516, %v3914, %v3930
      %v3987 = vsel %vm2516, %v3915, %v3931
      %v3988 = vsel %vm2516, %v3916, %v3932
      %v3989 = vsel %vm2516, %v3917, %v3933
      %v3990 = vsel %vm2516, %v3918, %v3934
      %v3991 = vsel %vm2516, %v3919, %v3935
      %v3992 = vsel %vm2516, %v3920, %v3936
      %v3993 = vsel %vm2525, %v3985, %v3945
      %v3994 = vsel %vm2525, %v3986, %v3946
      %v3995 = vsel %vm2525, %v3987, %v3947
      %v3996 = vsel %vm2525, %v3988, %v3948
      %v3997 = vsel %vm2525, %v3989, %v3949
      %v3998 = vsel %vm2525, %v3990, %v3950
      %v3999 = vsel %vm2525, %v3991, %v3951
      %v4000 = vsel %vm2525, %v3992, %v3952
      %v4001 = vsel %vm2534, %v3993, %v3969
      %v4002 = vsel %vm2534, %v3994, %v3970
      %v4003 = vsel %vm2534, %v3995, %v3971
      %v4004 = vsel %vm2534, %v3996, %v3972
      %v4005 = vsel %vm2534, %v3997, %v3973
      %v4006 = vsel %vm2534, %v3998, %v3974
      %v4007 = vsel %vm2534, %v3999, %v3975
      %v4008 = vsel %vm2534, %v4000, %v3976
      %v4009 = vld [vmem:[%s4] sm:$0x1]
      %v4011 = vlaneseq
      %v4012 = vshrl.u32 %v4011, 7
      %v4013 = vsub.s32 0, %v4012
      %v4014 = vrot.slane %v4009, %v4013
      %v4016 = vadd.f32 %v4001, %v4014
      %v4017 = vadd.f32 %v4002, %v4014
      %v4018 = vadd.f32 %v4003, %v4014
      %v4019 = vadd.f32 %v4004, %v4014
      %v4020 = vadd.f32 %v4005, %v4014
      %v4021 = vadd.f32 %v4006, %v4014
      %v4022 = vadd.f32 %v4007, %v4014
      %v4023 = vadd.f32 %v4008, %v4014
      %v4024 = vmax.f32 %v4016, 0.0
      %v4025 = vmax.f32 %v4017, 0.0
      %v4026 = vmax.f32 %v4018, 0.0
      %v4027 = vmax.f32 %v4019, 0.0
      %v4028 = vmax.f32 %v4020, 0.0
      %v4029 = vmax.f32 %v4021, 0.0
      %v4030 = vmax.f32 %v4022, 0.0
      %v4031 = vmax.f32 %v4023, 0.0
      %v4032 = vcombine.low %v4024, %v4026
      %v4034 = vunpack.c.l.s4 1983009808
      %v4035 = vunpack.c.0.s8 %v4034
      %v4036 = vlaneseq
      %v4037 = vshrl.u32 %v4036, 7
      %v4038 = vsub.s32 %v4035, %v4037
      %v4039 = vrot.slane %v4032, %v4038
      %v4040 = vcombine.low %v4025, %v4027
      %v4042 = vunpack.c.l.s4 1983009808
      %v4043 = vunpack.c.0.s8 %v4042
      %v4044 = vlaneseq
      %v4045 = vshrl.u32 %v4044, 7
      %v4046 = vsub.s32 %v4043, %v4045
      %v4047 = vrot.slane %v4040, %v4046
      %v4048 = vcombine.low %v4028, %v4030
      %v4050 = vunpack.c.l.s4 1983009808
      %v4051 = vunpack.c.0.s8 %v4050
      %v4052 = vlaneseq
      %v4053 = vshrl.u32 %v4052, 7
      %v4054 = vsub.s32 %v4051, %v4053
      %v4055 = vrot.slane %v4048, %v4054
      %v4056 = vcombine.low %v4029, %v4031
      %v4058 = vunpack.c.l.s4 1983009808
      %v4059 = vunpack.c.0.s8 %v4058
      %v4060 = vlaneseq
      %v4061 = vshrl.u32 %v4060, 7
      %v4062 = vsub.s32 %v4059, %v4061
      %v4063 = vrot.slane %v4056, %v4062
      %v4064 = vcombine.low %v4039, %v4047
      %v4065 = vcombine.high %v4039, %v4047
      %v4067 = vunpack.c.l.s4 1934713408
      %v4068 = vunpack.c.0.s8 %v4067
      %v4069 = vlaneseq
      %v4070 = vshrl.u32 %v4069, 7
      %v4071 = vsub.s32 %v4068, %v4070
      %v4072 = vrot.slane %v4064, %v4071
      %v4074 = vunpack.c.l.s4 1934713408
      %v4075 = vunpack.c.0.s8 %v4074
      %v4076 = vlaneseq
      %v4077 = vshrl.u32 %v4076, 7
      %v4078 = vsub.s32 %v4075, %v4077
      %v4079 = vrot.slane %v4065, %v4078
      %v4080 = vcombine.low %v4055, %v4063
      %v4081 = vcombine.high %v4055, %v4063
      %v4083 = vunpack.c.l.s4 1934713408
      %v4084 = vunpack.c.0.s8 %v4083
      %v4085 = vlaneseq
      %v4086 = vshrl.u32 %v4085, 7
      %v4087 = vsub.s32 %v4084, %v4086
      %v4088 = vrot.slane %v4080, %v4087
      %v4090 = vunpack.c.l.s4 1934713408
      %v4091 = vunpack.c.0.s8 %v4090
      %v4092 = vlaneseq
      %v4093 = vshrl.u32 %v4092, 7
      %v4094 = vsub.s32 %v4091, %v4093
      %v4095 = vrot.slane %v4081, %v4094
      %v4096 = vcombine.low %v4072, %v4088
      %v4097 = vcombine.high %v4072, %v4088
      %v4098 = vcombine.low %v4079, %v4095
      %v4099 = vcombine.high %v4079, %v4095
      %4101 = vrot.lane.b32.xlu0 %v4097, 80
      %v4102 = vpop.permute.xlu0 %4101
      %4105 = vrot.lane.b32.xlu0 %v4098, 32
      %v4106 = vpop.permute.xlu0 %4105
      %4109 = vrot.lane.b32.xlu0 %v4099, 112
      %v4110 = vpop.permute.xlu0 %4109
      %vm4112 = vcmask 654336
      %v4113 = vsel %vm4112, %v4096, %v4102
      %vm4114 = vcmask 261120
      %v4115 = vsel %vm4114, %v4102, %v4106
      %vm4116 = vcmask 916480
      %v4117 = vsel %vm4116, %v4115, %v4110
      %v4118 = vpack.c.bf16 %v4113, %v4113
      %v4119 = vpack.c.bf16 %v4117, %v4117
      %v4120 = vpack.c.bf16 %v4110, %v4110
      %v4121 = vld [vmem:[%s5] sm:$0xf]
      %v4122 = vld [vmem:[%s5 + $0x4] sm:$0xf]
      %v4123 = vld [vmem:[%s5 + $0x8] sm:$0xf]
      %v4124 = vld [vmem:[%s5 + $0xc] sm:$0xf]
      %v4125 = vld [vmem:[%s5 + $0x10] sm:$0xf]
      %v4126 = vld [vmem:[%s5 + $0x14] sm:$0xf]
      %v4127 = vld [vmem:[%s5 + $0x18] sm:$0xf]
      %v4128 = vld [vmem:[%s5 + $0x1c] sm:$0xf]
      %v4129 = vld [vmem:[%s5 + $0x20] sm:$0xf]
      %v4130 = vld [vmem:[%s5 + $0x24] sm:$0xf]
      %v4131 = vld [vmem:[%s5 + $0x28] sm:$0xf]
      %v4132 = vld [vmem:[%s5 + $0x2c] sm:$0xf]
      %v4133 = vld [vmem:[%s5 + $0x30] sm:$0xf]
      %v4134 = vld [vmem:[%s5 + $0x34] sm:$0xf]
      %v4135 = vld [vmem:[%s5 + $0x38] sm:$0xf]
      %v4136 = vld [vmem:[%s5 + $0x3c] sm:$0xf]
      %v4137 = vld [vmem:[%s5 + $0x40] sm:$0xf]
      %v4138 = vld [vmem:[%s5 + $0x44] sm:$0xf]
      %v4139 = vld [vmem:[%s5 + $0x48] sm:$0xf]
      %v4140 = vld [vmem:[%s5 + $0x4c] sm:$0xf]
      %v4141 = vld [vmem:[%s5 + $0x50] sm:$0xf]
      %v4142 = vld [vmem:[%s5 + $0x54] sm:$0xf]
      %v4143 = vld [vmem:[%s5 + $0x58] sm:$0xf]
      %v4144 = vld [vmem:[%s5 + $0x5c] sm:$0xf]
      %v4145 = vld [vmem:[%s5 + $0x60] sm:$0xf]
      %v4146 = vld [vmem:[%s5 + $0x64] sm:$0xf]
      %v4147 = vld [vmem:[%s5 + $0x68] sm:$0xf]
      %v4148 = vld [vmem:[%s5 + $0x6c] sm:$0xf]
      %v4149 = vld [vmem:[%s5 + $0x70] sm:$0xf]
      %v4150 = vld [vmem:[%s5 + $0x74] sm:$0xf]
      %v4151 = vld [vmem:[%s5 + $0x78] sm:$0xf]
      %v4152 = vld [vmem:[%s5 + $0x7c] sm:$0xf]
      %v4153 = vld [vmem:[%s5 + $0x80] sm:$0xf]
      %v4154 = vld [vmem:[%s5 + $0x84] sm:$0xf]
      %v4155 = vld [vmem:[%s5 + $0x88] sm:$0xf]
      %v4156 = vld [vmem:[%s5 + $0x8c] sm:$0xf]
      %v4157 = vld [vmem:[%s5 + $0x90] sm:$0xf]
      %v4158 = vld [vmem:[%s5 + $0x94] sm:$0xf]
      %v4159 = vld [vmem:[%s5 + $0x98] sm:$0xf]
      %v4160 = vld [vmem:[%s5 + $0x9c] sm:$0xf]
      %v4161 = vld [vmem:[%s6] sm:$0x1]
      %v4163 = vlaneseq
      %v4164 = vshrl.u32 %v4163, 7
      %v4165 = vsub.s32 0, %v4164
      %v4166 = vrot.slane %v4161, %v4165
      %v4208 = vunpack.c.l.b16 %v4121
      %v4209 = vunpack.c.l.b16 %v4122
      %v4210 = vunpack.c.l.b16 %v4123
      %v4211 = vunpack.c.l.b16 %v4124
      %v4212 = vunpack.c.l.b16 %v4125
      %v4213 = vunpack.c.l.b16 %v4126
      %v4214 = vunpack.c.l.b16 %v4127
      %v4215 = vunpack.c.l.b16 %v4128
      %v4216 = vunpack.c.l.b16 %v4129
      %v4217 = vunpack.c.l.b16 %v4130
      %v4218 = vunpack.c.l.b16 %v4131
      %v4219 = vunpack.c.l.b16 %v4132
      %v4220 = vunpack.c.l.b16 %v4133
      %v4221 = vunpack.c.l.b16 %v4134
      %v4222 = vunpack.c.l.b16 %v4135
      %v4223 = vunpack.c.l.b16 %v4136
      %v4224 = vunpack.c.l.b16 %v4137
      %v4225 = vunpack.c.l.b16 %v4138
      %v4226 = vunpack.c.l.b16 %v4139
      %v4227 = vunpack.c.l.b16 %v4140
      %v4228 = vunpack.c.l.b16 %v4141
      %v4229 = vunpack.c.l.b16 %v4142
      %v4230 = vunpack.c.l.b16 %v4143
      %v4231 = vunpack.c.l.b16 %v4144
      %v4232 = vunpack.c.l.b16 %v4145
      %v4233 = vunpack.c.l.b16 %v4146
      %v4234 = vunpack.c.l.b16 %v4147
      %v4235 = vunpack.c.l.b16 %v4148
      %v4236 = vunpack.c.l.b16 %v4149
      %v4237 = vunpack.c.l.b16 %v4150
      %v4238 = vunpack.c.l.b16 %v4151
      %v4239 = vunpack.c.l.b16 %v4152
      %v4240 = vunpack.c.l.b16 %v4153
      %v4241 = vunpack.c.l.b16 %v4154
      %v4242 = vunpack.c.l.b16 %v4155
      %v4243 = vunpack.c.l.b16 %v4156
      %v4244 = vunpack.c.l.b16 %v4157
      %v4245 = vunpack.c.l.b16 %v4158
      %v4246 = vunpack.c.l.b16 %v4159
      %v4247 = vunpack.c.l.b16 %v4160
      %v4248 = vpack.c.b16 %v4209, %v4208
      %v4249 = vpack.c.b16 %v4211, %v4210
      %v4250 = vpack.c.b16 %v4213, %v4212
      %v4251 = vpack.c.b16 %v4215, %v4214
      %v4252 = vpack.c.b16 %v4217, %v4216
      %v4253 = vpack.c.b16 %v4219, %v4218
      %v4254 = vpack.c.b16 %v4221, %v4220
      %v4255 = vpack.c.b16 %v4223, %v4222
      %v4256 = vpack.c.b16 %v4225, %v4224
      %v4257 = vpack.c.b16 %v4227, %v4226
      %v4258 = vpack.c.b16 %v4229, %v4228
      %v4259 = vpack.c.b16 %v4231, %v4230
      %v4260 = vpack.c.b16 %v4233, %v4232
      %v4261 = vpack.c.b16 %v4235, %v4234
      %v4262 = vpack.c.b16 %v4237, %v4236
      %v4263 = vpack.c.b16 %v4239, %v4238
      %v4264 = vpack.c.b16 %v4241, %v4240
      %v4265 = vpack.c.b16 %v4243, %v4242
      %v4266 = vpack.c.b16 %v4245, %v4244
      %v4267 = vpack.c.b16 %v4247, %v4246
      %vm4288 = vcmask 523264
      %v4290 = vsel %vm4288, %v4120, 0
      %4292 = vmatprep.subr.bf16.mxu0 0
      %4293 = vmatpush1.bf16.msra.mxu0 %v4255
      %4294 = vmatprep.subr.bf16.mxu0 0
      %4295 = vmatpush1.bf16.msra.mxu0 %v4254
      %4296 = vmatprep.subr.bf16.mxu0 0
      %4297 = vmatpush1.bf16.msra.mxu0 %v4253
      %4298 = vmatprep.subr.bf16.mxu0 0
      %4299 = vmatpush1.bf16.msra.mxu0 %v4252
      %4300 = vmatprep.subr.bf16.mxu0 0
      %4301 = vmatpush1.bf16.msra.mxu0 %v4251
      %4302 = vmatprep.subr.bf16.mxu0 0
      %4303 = vmatpush1.bf16.msra.mxu0 %v4250
      %4304 = vmatprep.subr.bf16.mxu0 0
      %4305 = vmatpush1.bf16.msra.mxu0 %v4249
      %4306 = vmatprep.subr.bf16.mxu0 0
      %4307 = vmatpush1.bf16.msra.mxu0 %v4248
      %4308 = vmatprep.subr.bf16.mxu0 0
      %4309 = vmatpush2.bf16.msra.mxu0 %v4263
      %4310 = vmatprep.subr.bf16.mxu0 0
      %4311 = vmatpush2.bf16.msra.mxu0 %v4262
      %4312 = vmatprep.subr.bf16.mxu0 0
      %4313 = vmatpush2.bf16.msra.mxu0 %v4261
      %4314 = vmatprep.subr.bf16.mxu0 0
      %4315 = vmatpush2.bf16.msra.mxu0 %v4260
      %4316 = vmatprep.subr.bf16.mxu0 0
      %4317 = vmatpush2.bf16.msra.mxu0 %v4259
      %4318 = vmatprep.subr.bf16.mxu0 0
      %4319 = vmatpush2.bf16.msra.mxu0 %v4258
      %4320 = vmatprep.subr.bf16.mxu0 0
      %4321 = vmatpush2.bf16.msra.mxu0 %v4257
      %4322 = vmatprep.subr.bf16.mxu0 0
      %4323 = vmatpush2.bf16.msra.mxu0 %v4256
      %4324 = vmatprep.mubr.bf16.mxu0 %v4119
      %4325 = vmatmul.mubr.bf16.gmra.mxu0 %v4118
      %v4326 = vpop.f32.mrf.mxu0
      %v4327 = vadd.f32 %v4166, %v4326
      %v4328 = vpop.f32.mrf.mxu0
      %v4329 = vpop.f32.mrf.mxu0
      %v4330 = vpop.f32.mrf.mxu0
      %4331 = vdwg.mxu0
      %4332 = vmatprep.subr.bf16.mxu0 0
      %4333 = vmatpush1.bf16.msra.mxu0 0
      %4334 = vmatprep.subr.bf16.mxu0 0
      %4335 = vmatpush1.bf16.msra.mxu0 0
      %4336 = vmatprep.subr.bf16.mxu0 0
      %4337 = vmatpush1.bf16.msra.mxu0 0
      %4338 = vmatprep.subr.bf16.mxu0 0
      %4339 = vmatpush1.bf16.msra.mxu0 0
      %4340 = vmatprep.subr.bf16.mxu0 0
      %4341 = vmatpush1.bf16.msra.mxu0 %v4267
      %4342 = vmatprep.subr.bf16.mxu0 0
      %4343 = vmatpush1.bf16.msra.mxu0 %v4266
      %4344 = vmatprep.subr.bf16.mxu0 0
      %4345 = vmatpush1.bf16.msra.mxu0 %v4265
      %4346 = vmatprep.subr.bf16.mxu0 0
      %4347 = vmatpush1.bf16.msra.mxu0 %v4264
      %4348 = vmatprep.subr.bf16.mxu0 0
      %4349 = vmatpush2.bf16.msra.mxu0 0
      %4350 = vmatprep.subr.bf16.mxu0 0
      %4351 = vmatpush2.bf16.msra.mxu0 0
      %4352 = vmatprep.subr.bf16.mxu0 0
      %4353 = vmatpush2.bf16.msra.mxu0 0
      %4354 = vmatprep.subr.bf16.mxu0 0
      %4355 = vmatpush2.bf16.msra.mxu0 0
      %4356 = vmatprep.subr.bf16.mxu0 0
      %4357 = vmatpush2.bf16.msra.mxu0 0
      %4358 = vmatprep.subr.bf16.mxu0 0
      %4359 = vmatpush2.bf16.msra.mxu0 0
      %4360 = vmatprep.subr.bf16.mxu0 0
      %4361 = vmatpush2.bf16.msra.mxu0 0
      %4362 = vmatprep.subr.bf16.mxu0 0
      %4363 = vmatpush2.bf16.msra.mxu0 0
      %4364 = vmatprep.mubr.bf16.mxu0 0
      %4365 = vmatmul.mubr.bf16.gmra.mxu0 %v4290
      %v4366 = vpop.f32.mrf.mxu0
      %v4367 = vadd.f32 %v4327, %v4366
      %v4368 = vpop.f32.mrf.mxu0
      %v4369 = vpop.f32.mrf.mxu0
      %v4370 = vpop.f32.mrf.mxu0
      %4371 = vdwg.mxu0
      %v4372 = vmax.f32 %v4367, 0.0
      %v4373 = vpack.c.bf16 %v4372, %v4372
      %v4374 = vld [vmem:[%s7] sm:$0xf]
      %v4375 = vld [vmem:[%s7 + $0x4] sm:$0xf]
      %v4376 = vld [vmem:[%s7 + $0x8] sm:$0xf]
      %v4377 = vld [vmem:[%s7 + $0xc] sm:$0xf]
      %v4378 = vld [vmem:[%s7 + $0x10] sm:$0xf]
      %v4379 = vld [vmem:[%s7 + $0x14] sm:$0xf]
      %v4380 = vld [vmem:[%s7 + $0x18] sm:$0x1]
      %v4381 = vld [vmem:[%s8] sm:$0x1]
      %v4383 = vlaneseq
      %v4384 = vshrl.u32 %v4383, 7
      %v4385 = vsub.s32 0, %v4384
      %v4386 = vrot.slane %v4381, %v4385
      %v4395 = vunpack.c.l.b16 %v4374
      %v4396 = vunpack.c.l.b16 %v4375
      %v4397 = vunpack.c.l.b16 %v4376
      %v4398 = vunpack.c.l.b16 %v4377
      %v4399 = vunpack.c.l.b16 %v4378
      %v4400 = vunpack.c.l.b16 %v4379
      %v4401 = vunpack.c.l.b16 %v4380
      %v4402 = vpack.c.b16 %v4396, %v4395
      %v4403 = vpack.c.b16 %v4398, %v4397
      %v4404 = vpack.c.b16 %v4400, %v4399
      %v4405 = vpack.c.b16 %v4401, %v4401
      %vm4409 = vcmask 408576
      %v4411 = vsel %vm4409, %v4373, 0
      %v4414 = vsel %vm2516, %v4405, 0
      %4416 = vmatprep.subr.bf16.mxu0 0
      %4417 = vmatpush1.bf16.msra.mxu0 0
      %4418 = vmatprep.subr.bf16.mxu0 0
      %4419 = vmatpush1.bf16.msra.mxu0 0
      %4420 = vmatprep.subr.bf16.mxu0 0
      %4421 = vmatpush1.bf16.msra.mxu0 0
      %4422 = vmatprep.subr.bf16.mxu0 0
      %4423 = vmatpush1.bf16.msra.mxu0 0
      %4424 = vmatprep.subr.bf16.mxu0 0
      %4425 = vmatpush1.bf16.msra.mxu0 %v4414
      %4426 = vmatprep.subr.bf16.mxu0 0
      %4427 = vmatpush1.bf16.msra.mxu0 %v4404
      %4428 = vmatprep.subr.bf16.mxu0 0
      %4429 = vmatpush1.bf16.msra.mxu0 %v4403
      %4430 = vmatprep.subr.bf16.mxu0 0
      %4431 = vmatpush1.bf16.msra.mxu0 %v4402
      %4432 = vmatprep.subr.bf16.mxu0 0
      %4433 = vmatpush2.bf16.msra.mxu0 0
      %4434 = vmatprep.subr.bf16.mxu0 0
      %4435 = vmatpush2.bf16.msra.mxu0 0
      %4436 = vmatprep.subr.bf16.mxu0 0
      %4437 = vmatpush2.bf16.msra.mxu0 0
      %4438 = vmatprep.subr.bf16.mxu0 0
      %4439 = vmatpush2.bf16.msra.mxu0 0
      %4440 = vmatprep.subr.bf16.mxu0 0
      %4441 = vmatpush2.bf16.msra.mxu0 0
      %4442 = vmatprep.subr.bf16.mxu0 0
      %4443 = vmatpush2.bf16.msra.mxu0 0
      %4444 = vmatprep.subr.bf16.mxu0 0
      %4445 = vmatpush2.bf16.msra.mxu0 0
      %4446 = vmatprep.subr.bf16.mxu0 0
      %4447 = vmatpush2.bf16.msra.mxu0 0
      %4448 = vmatprep.mubr.bf16.mxu0 0
      %4449 = vmatmul.mubr.bf16.gmra.mxu0 %v4411
      %v4450 = vpop.f32.mrf.mxu0
      %v4451 = vadd.f32 %v4386, %v4450
      %v4452 = vpop.f32.mrf.mxu0
      %v4453 = vpop.f32.mrf.mxu0
      %v4454 = vpop.f32.mrf.mxu0
      %4455 = vdwg.mxu0
      %vm4456 = vcmask 80896
      %v4457 = vsel %vm4456, %v4451, -inf
      %4458 = vmax.xlane.f32.xlu0 %v4457
      %v4459 = vpop.xlane.xlu0 %4458
      %v4460 = vsub.f32 %v4451, %v4459
      %v4461 = vmul.f32 %v4460, 1.442695
      %v4462 = vpow.pop %v4461
      %v4463 = vsel %vm4456, %v4462, 0.0
      %4464 = vadd.xlane.f32.xlu0 %v4463
      %v4465 = vpop.xlane.xlu0 %4464
      %v4466 = vlog2.pop %v4465
      %v4467 = vmul.f32 %v4466, 0.6931472
      %v4468 = vadd.f32 %v4459, %v4467
      %v4469 = vsub.f32 %v4451, %v4468
      %4470 = vst.msk [vmem:[%s335] sm:$0xff] %vm4456, %v4469
      %p4471 = scmp.lt.s32.totalorder %s20, 1
      %s4472 = scalar_select %p4471, %s20, 1
      %s4473 = smul.addr %s4472, 8
      %s4474 = scalar_lea.vmem %s9, %s4473
      // Predicated region
      $region57: #{net_forward.1} parent=55 // pred_check
        %p4475 = pneg %p232
      $region58: #{net_forward.1} parent=55 // pred_check_branch
        %4477 = sbr.rel (%p4475) target = $region60
      $region59: #{net_forward.1} parent=55 // pred_region
        _
      $region60: #{net_forward.1} parent=55 // pred_fallthru
        _
    $region56: #{net_forward.1} parent=5 // pred_fallthru
      _
    %p4478 = scmp.le.s32.totalorder 2, %s15
    // Predicated region
    $region61: #{net_forward.1} parent=5 // pred_check
      %p4479 = pneg %p4478
    $region62: #{net_forward.1} parent=5 // pred_check_branch
      %4481 = sbr.rel (%p4479) target = $region64
    $region63: #{net_forward.1} parent=5 // pred_region
      %s4482 = ssub.s32 %s15, 2
      // Predicated region
      $region65: #{net_forward.1} parent=63 // pred_check
        %p4483 = pneg %p238
      $region66: #{net_forward.1} parent=63 // pred_check_branch
        %4485 = sbr.rel (%p4483) target = $region68
      $region67: #{net_forward.1} parent=63 // pred_region
        %p4486 = scmp.lt.s32.totalorder %s21, 1
        %s4487 = scalar_select %p4486, %s21, 1
        %s4488 = smul.addr %s4487, 8
        %s4489 = scalar_lea.vmem %s9, %s4488
      $region68: #{net_forward.1} parent=63 // pred_fallthru
        _
    $region64: #{net_forward.1} parent=5 // pred_fallthru
      _
  $region6: #{net_forward.1} parent=0 // loop_footer
    %s19 = sadd.s32 1, %s15
  $region7: #{net_forward.1} parent=0 // loop_footer_branch
    %14 = sbr.rel target = $region3
  $region8: #{net_forward.1} parent=0 // loop_exit
    _

</llo_original>
